<compile_context>
chip_gen: v7x
topology: tpu7x:2x2x1
jax: 0.10.0
libtpu: 0.0.40
codegen_flags: <defaults>
</compile_context>

<pallas_src>
import jax
import jax.numpy as jnp
from jax import lax
from jax.experimental import pallas as pl
from jax.experimental.pallas import tpu as pltpu

LANE_BLOCK = 128   # lane-aligned block width used for all fused weight slabs


def _retanh(x):
    # torch.tanh(torch.clamp(x, min=0))
    return jnp.tanh(jnp.maximum(x, 0.0))


def mrnn_kernel(
    data_ref,                     # (L*Np, D)   time-major, batch-padded, compute dtype
    h0v_ref, h0m_ref,             # (Np, Hp)    initial hidden states, f32
    wx_ref, bx_ref,               # (D, 3*LB), (1, 3*LB)   fused x-projection (+ all biases)
    whhv_ref, whhm_ref,           # (Hp, Hp)    recurrent weights (bias folded into bx)
    wv2t_ref,                     # (Hp, O)     h2o folded into thal
    wtc_ref,                      # (O, 2*LB)   [wd_t | prev_t placement identity]
    wmc_ref, bm_ref,              # (Hp, 2*LB), (1, 2*LB)   [h2o_dos | h2o_dos @ wt_m]
    out_ref,                      # (L*Np, LB)  out_m in lanes 0:O, zeros elsewhere (lane-dense)
    xa_ref,                       # VMEM scratch (L*Np, 3*LB) f32
):
    f32 = jnp.float32
    Np, Hp = h0v_ref.shape
    L = data_ref.shape[0] // Np
    O = wv2t_ref.shape[1]
    LB = out_ref.shape[1]
    cdt = wx_ref.dtype            # MXU operand dtype (bf16 or f32)

    # ---- phase 1: hoisted input projection, ALL time steps in one MXU pass ---------
    xa_ref[...] = (
        jnp.dot(data_ref[...], wx_ref[...], preferred_element_type=f32) + bx_ref[...]
    )

    # ---- hoist loop-invariant loads / broadcasts out of the unrolled body ----------
    w_hhv = whhv_ref[...]
    w_hhm = whhm_ref[...]
    w_v2t = wv2t_ref[...]
    w_tc = wtc_ref[...]
    w_mc = wmc_ref[...]
    b_m = jnp.broadcast_to(bm_ref[...], (Np, 2 * LB))

    # ---- phase 2: the serial recurrence ---------------------------------------------
    def step(t, carry):
        hv, hm, prev_t_pad, prevm_thal = carry          # all f32
        row = pl.multiple_of(t * Np, Np)                # sublane-aligned dynamic offset
        xa = xa_ref[pl.ds(row, Np), :]                  # (Np, 3*LB)
        xa_vis = xa[:, 0:Hp]                            # i2h(x)+b_i2h+b_h2h (lanes H: are b_h2h)
        xa_thal = xa[:, LB:LB + O]                      # hold*wt_h + b_h2o@wt_v + b_thal
        xa_mot = xa[:, 2 * LB:2 * LB + Hp]              # hold*wd_h + b_i2hd + b_h2hd

        # recurrent pre-activations (biases already folded into xa_*)
        hv_pre = jnp.dot(hv.astype(cdt), w_hhv, preferred_element_type=f32)
        hm_pre = jnp.dot(hm.astype(cdt), w_hhm, preferred_element_type=f32)

        # visual RNN
        hv_new = _retanh(xa_vis + prev_t_pad + hv_pre)

        # thalamic layer (h2o folded in; prev_m @ wt_m was precomputed last step)
        out_t = _retanh(
            jnp.dot(hv_new.astype(cdt), w_v2t, preferred_element_type=f32)
            + xa_thal + prevm_thal)

        # one matmul produces both the motor-input contribution and the zero-padded
        # prev_t for the next step's visual concat (no p_place matmul, no concat).
        t_proj = jnp.dot(out_t.astype(cdt), w_tc, preferred_element_type=f32)
        im_t = t_proj[:, 0:Hp]
        prev_t_pad_next = t_proj[:, LB:LB + Hp]

        # motor RNN
        hm_new = _retanh(im_t + xa_mot + hm_pre)

        # output projection fused with next step's prev_m @ wt_m
        m_full = jnp.dot(hm_new.astype(cdt), w_mc, preferred_element_type=f32) + b_m
        prevm_thal_next = m_full[:, LB:LB + O]

        # lane-dense, unmasked full-tile store (lanes O..LB-1 are exactly zero)
        out_ref[pl.ds(row, Np), :] = m_full[:, 0:LB]
        return hv_new, hm_new, prev_t_pad_next, prevm_thal_next

    init = (h0v_ref[...].astype(f32),
            h0m_ref[...].astype(f32),
            jnp.zeros((Np, Hp), f32),                   # outputs_t[:, -1, :] == 0
            jnp.zeros((Np, O), f32))                    # outputs_m[:, -1, :] @ wt_m == 0
    lax.fori_loop(0, L, step, init, unroll=min(L, 8))


def millies_rnn_forward(data, params, h0_v, h0_m, *, compute_dtype=jnp.bfloat16):
    """data: (N, L, D) f32.  Returns outputs_m: (N, L, O) f32."""
    f32 = jnp.float32
    N, L, D = data.shape
    Hp = h0_v.shape[1]                   # hidden_size + output_size (bidirc=True)
    O = params["h2o_w"].shape[0]
    H = Hp - O
    LB = LANE_BLOCK
    assert Hp <= LB and O <= LB, "kernel assumes hidden/output widths <= 128 lanes"
    # NOTE: 'hold' is hard-coded as the last input feature (data[:, :, -1]); the bias
    # folds below assume the exact bidirc=True layout of the PyTorch module.

    # ---- pad the batch to a row-dense sublane multiple -----------------------------
    sub = 16 if jnp.dtype(compute_dtype) == jnp.dtype(jnp.bfloat16) else 8
    Np = ((N + sub - 1) // sub) * sub

    data_t = jnp.transpose(data, (1, 0, 2))                          # (L, N, D) time-major
    if Np != N:
        data_t = jnp.pad(data_t, ((0, 0), (0, Np - N), (0, 0)))
        h0_v = jnp.pad(h0_v, ((0, Np - N), (0, 0)))
        h0_m = jnp.pad(h0_m, ((0, Np - N), (0, 0)))
    data_flat = data_t.reshape(L * Np, D).astype(compute_dtype)      # time folded into sublanes

    # ---- fold / fuse parameters once at trace time ---------------------------------
    wt = params["thal_w"].T.astype(f32)          # (2O+1, O): rows for [out_v | hold | prev_m]
    wt_v, wt_h, wt_m = wt[:O], wt[O], wt[O + 1:]
    wd = params["i2h_dos_w"].T.astype(f32)       # (O+1, Hp): rows for [out_t | hold]
    wd_t, wd_h = wd[:O], wd[O]

    # fused x-projection: [visual | hold->thal | hold->motor], 128-lane aligned blocks
    w_x = jnp.zeros((D, 3 * LB), f32)
    w_x = w_x.at[:, 0:H].set(params["i2h_w"].T)                 # i2h applies to full x (image+hold)
    w_x = w_x.at[D - 1, LB:LB + O].set(wt_h)                    # hold -> thal
    w_x = w_x.at[D - 1, 2 * LB:2 * LB + Hp].set(wd_h)           # hold -> motor

    b_x = jnp.zeros((1, 3 * LB), f32)
    b_x = b_x.at[0, 0:H].set(params["i2h_b"])
    b_x = b_x.at[0, 0:Hp].add(params["h2h_b"])                  # fold recurrent bias
    b_x = b_x.at[0, LB:LB + O].set(params["h2o_b"] @ wt_v + params["thal_b"])
    b_x = b_x.at[0, 2 * LB:2 * LB + Hp].set(params["i2h_dos_b"] + params["h2h_dos_b"])

    w_hh_v = params["h2h_w"].T                                  # (Hp, Hp), bias folded above
    w_hh_m = params["h2h_dos_w"].T                              # (Hp, Hp), bias folded above
    w_v2t = params["h2o_w"].T @ wt_v                            # (Hp, O): h2o folded into thal

    # [motor input from out_t | padded-identity placement of out_t for next step]
    w_tc = jnp.zeros((O, 2 * LB), f32)
    w_tc = w_tc.at[:, 0:Hp].set(wd_t)
    w_tc = w_tc.at[:, LB + H:LB + Hp].set(jnp.eye(O, dtype=f32))

    # [output projection | output projection followed by wt_m (next step's thal term)]
    w_mc = jnp.zeros((Hp, 2 * LB), f32)
    w_mc = w_mc.at[:, 0:O].set(params["h2o_dos_w"].T)
    w_mc = w_mc.at[:, LB:LB + O].set(params["h2o_dos_w"].T @ wt_m)

    b_m = jnp.zeros((1, 2 * LB), f32)
    b_m = b_m.at[0, 0:O].set(params["h2o_dos_b"])
    b_m = b_m.at[0, LB:LB + O].set(params["h2o_dos_b"] @ wt_m)

    cd = compute_dtype
    inputs = [data_flat,
              h0_v.astype(f32), h0_m.astype(f32),
              w_x.astype(cd), b_x,
              w_hh_v.astype(cd), w_hh_m.astype(cd),
              w_v2t.astype(cd), w_tc.astype(cd),
              w_mc.astype(cd), b_m]

    def full_spec(shape):
        n = len(shape)
        return pl.BlockSpec(shape, lambda i, _n=n: (0,) * _n)

    # explicit VMEM budget (default 2x input buffering + output + flat xa scratch),
    # capped at 64 MiB so the same setting stays valid on v7x's smaller VMEM.
    def _nbytes(x):
        return int(x.size) * jnp.dtype(x.dtype).itemsize
    out_bytes = L * Np * LB * 4
    scratch_bytes = L * Np * 3 * LB * 4
    est = 2 * (sum(_nbytes(x) for x in inputs) + out_bytes) + scratch_bytes
    vmem_limit = int(min(max(est + (8 << 20), 32 << 20), 64 << 20))

    out_flat = pl.pallas_call(
        mrnn_kernel,
        out_shape=jax.ShapeDtypeStruct((L * Np, LB), f32),
        grid_spec=pltpu.PrefetchScalarGridSpec(
            num_scalar_prefetch=0,
            grid=(1,),                                  # single invocation: whole sequence in VMEM
            in_specs=[full_spec(x.shape) for x in inputs],
            out_specs=full_spec((L * Np, LB)),
            scratch_shapes=[pltpu.VMEM((L * Np, 3 * LB), f32)]),
        compiler_params=pltpu.CompilerParams(
            dimension_semantics=("arbitrary",),
            vmem_limit_bytes=vmem_limit),
    )(*inputs)

    out = out_flat.reshape(L, Np, LB)[:, :N, :O]        # drop batch padding & zero lanes
    return jnp.transpose(out, (1, 0, 2))                # (N, L, O)


def init_params(key, input_size, hidden_size, output_size, bidirc=True):
    """Deterministic stand-in for PyTorch's default Linear init (uniform +/- 1/sqrt(fan_in))."""
    hp = hidden_size + output_size if bidirc else hidden_size
    shapes = {                                   # (out_features, in_features)
        "i2h":     (hp - output_size, input_size),
        "h2h":     (hp, hp),
        "h2o":     (output_size, hp),
        "thal":    (output_size, 2 * output_size + 1),
        "i2h_dos": (hp, output_size + 1),
        "h2h_dos": (hp, hp),
        "h2o_dos": (output_size, hp),
    }
    params = {}
    for name, (out_f, in_f) in shapes.items():
        key, kw, kb = jax.random.split(key, 3)
        bound = 1.0 / (in_f ** 0.5)
        params[name + "_w"] = jax.random.uniform(kw, (out_f, in_f), jnp.float32, -bound, bound)
        params[name + "_b"] = jax.random.uniform(kb, (out_f,), jnp.float32, -bound, bound)
    return params


def millies_rnn_reference(data, params, h0_v, h0_m, output_size):
    """Pure-JAX transcription of the PyTorch forward (bidirc=True) for validation."""
    N, L, _ = data.shape
    O = output_size
    lin = lambda x, w, b: x @ w.T + b

    h_v, h_m = h0_v, h0_m
    prev_t = jnp.zeros((N, O), jnp.float32)
    prev_m = jnp.zeros((N, O), jnp.float32)
    outs = []
    for i in range(L):
        x = data[:, i, :]
        hold = x[:, -1:]
        inp_vis = jnp.concatenate([x[:, :-1], hold], axis=1)
        iv = lin(inp_vis, params["i2h_w"], params["i2h_b"])
        iv = jnp.concatenate([iv, prev_t], axis=1)
        h_v = _retanh(iv + lin(h_v, params["h2h_w"], params["h2h_b"]))
        out_v = lin(h_v, params["h2o_w"], params["h2o_b"])
        inp_thal = jnp.concatenate([out_v, hold, prev_m], axis=1)
        out_t = _retanh(lin(inp_thal, params["thal_w"], params["thal_b"]))
        inp_mot = jnp.concatenate([out_t, hold], axis=1)
        h_m = _retanh(lin(inp_mot, params["i2h_dos_w"], params["i2h_dos_b"])
                      + lin(h_m, params["h2h_dos_w"], params["h2h_dos_b"]))
        out_m = lin(h_m, params["h2o_dos_w"], params["h2o_dos_b"])
        prev_t, prev_m = out_t, out_m
        outs.append(out_m)
    return jnp.stack(outs, axis=1)


if __name__ == "__main__":
    input_size = 17          # 16 "image" features + 1 trailing hold column
    hidden_size = 32
    output_size = 8
    batch = 2
    trial_len = 8
    hp = hidden_size + output_size   # bidirc=True effective hidden size

    key = jax.random.PRNGKey(0)
    k_data, k_h0v, k_h0m, k_par = jax.random.split(key, 4)
    data = jax.random.normal(k_data, (batch, trial_len, input_size), jnp.float32)
    # init_hidden() uses kaiming_uniform_ (random); replaced by a deterministic uniform draw.
    h0_v = jax.random.uniform(k_h0v, (batch, hp), jnp.float32, -1.0, 1.0)
    h0_m = jax.random.uniform(k_h0m, (batch, hp), jnp.float32, -1.0, 1.0)
    params = init_params(k_par, input_size, hidden_size, output_size, bidirc=True)

    ref = millies_rnn_reference(data, params, h0_v, h0_m, output_size)

    # Exact-precision path (f32 MXU operands): strict correctness check.
    out_f32 = jax.block_until_ready(
        millies_rnn_forward(data, params, h0_v, h0_m, compute_dtype=jnp.float32))
    assert out_f32.shape == (batch, trial_len, output_size), out_f32.shape
    assert jnp.allclose(out_f32, ref, atol=1e-3, rtol=1e-3), \
        float(jnp.max(jnp.abs(out_f32 - ref)))

    # Fast path (bf16 MXU operands, f32 accumulation/state/retanh): loose sanity check.
    out_bf16 = jax.block_until_ready(
        millies_rnn_forward(data, params, h0_v, h0_m, compute_dtype=jnp.bfloat16))
    assert out_bf16.shape == (batch, trial_len, output_size), out_bf16.shape
    assert jnp.allclose(out_bf16, ref, atol=1e-1, rtol=1e-1), \
        float(jnp.max(jnp.abs(out_bf16 - ref)))

    print("KERNEL_OK")
</pallas_src>

<mosaic_0001>
module attributes {stable_mosaic.version = 11 : i64} {
  func.func @mrnn_kernel(%arg0: i32, %arg1: memref<64x17xf32, #tpu.memory_space<vmem>>, %arg2: memref<8x40xf32, #tpu.memory_space<vmem>>, %arg3: memref<8x40xf32, #tpu.memory_space<vmem>>, %arg4: memref<17x384xf32, #tpu.memory_space<vmem>>, %arg5: memref<1x384xf32, #tpu.memory_space<vmem>>, %arg6: memref<40x40xf32, #tpu.memory_space<vmem>>, %arg7: memref<40x40xf32, #tpu.memory_space<vmem>>, %arg8: memref<40x8xf32, #tpu.memory_space<vmem>>, %arg9: memref<8x256xf32, #tpu.memory_space<vmem>>, %arg10: memref<40x256xf32, #tpu.memory_space<vmem>>, %arg11: memref<1x256xf32, #tpu.memory_space<vmem>>, %arg12: memref<64x128xf32, #tpu.memory_space<vmem>>, %arg13: memref<64x384xf32, #tpu.memory_space<vmem>>) attributes {dimension_semantics = [#tpu.dimension_semantics<arbitrary>], iteration_bounds = array<i64: 1>, scalar_prefetch = 0 : i64, scratch_operands = 1 : i64, tpu.core_type = #tpu.core_type<tc>, window_params = [{pipeline_mode = #tpu.pipeline_mode<synchronous>, transform_indices = @transform_0, window_bounds = array<i64: 64, 17>}, {pipeline_mode = #tpu.pipeline_mode<synchronous>, transform_indices = @transform_1, window_bounds = array<i64: 8, 40>}, {pipeline_mode = #tpu.pipeline_mode<synchronous>, transform_indices = @transform_2, window_bounds = array<i64: 8, 40>}, {pipeline_mode = #tpu.pipeline_mode<synchronous>, transform_indices = @transform_3, window_bounds = array<i64: 17, 384>}, {pipeline_mode = #tpu.pipeline_mode<synchronous>, transform_indices = @transform_4, window_bounds = array<i64: 1, 384>}, {pipeline_mode = #tpu.pipeline_mode<synchronous>, transform_indices = @transform_5, window_bounds = array<i64: 40, 40>}, {pipeline_mode = #tpu.pipeline_mode<synchronous>, transform_indices = @transform_6, window_bounds = array<i64: 40, 40>}, {pipeline_mode = #tpu.pipeline_mode<synchronous>, transform_indices = @transform_7, window_bounds = array<i64: 40, 8>}, {pipeline_mode = #tpu.pipeline_mode<synchronous>, transform_indices = @transform_8, window_bounds = array<i64: 8, 256>}, {pipeline_mode = #tpu.pipeline_mode<synchronous>, transform_indices = @transform_9, window_bounds = array<i64: 40, 256>}, {pipeline_mode = #tpu.pipeline_mode<synchronous>, transform_indices = @transform_10, window_bounds = array<i64: 1, 256>}, {pipeline_mode = #tpu.pipeline_mode<synchronous>, transform_indices = @transform_11, window_bounds = array<i64: 64, 128>}]} {
    %c0 = arith.constant 0 : index
    %c0_0 = arith.constant 0 : index
    %0 = vector.load %arg1[%c0, %c0_0] : memref<64x17xf32, #tpu.memory_space<vmem>>, vector<64x17xf32>
    %c0_1 = arith.constant 0 : index
    %c0_2 = arith.constant 0 : index
    %1 = vector.load %arg4[%c0_1, %c0_2] : memref<17x384xf32, #tpu.memory_space<vmem>>, vector<17x384xf32>
    %cst = arith.constant dense<0.000000e+00> : vector<64x384xf32>
    %2 = tpu.matmul %0, %1, %cst {dimension_numbers = #tpu.dot_dimension_numbers<[1], [0], [0], [1], [0, 0, 1, 1], [], []>} : vector<64x17xf32>, vector<17x384xf32>, vector<64x384xf32> -> vector<64x384xf32>
    %c0_3 = arith.constant 0 : index
    %c0_4 = arith.constant 0 : index
    %3 = vector.load %arg5[%c0_3, %c0_4] : memref<1x384xf32, #tpu.memory_space<vmem>>, vector<1x384xf32>
    %4 = vector.broadcast %3 : vector<1x384xf32> to vector<64x384xf32>
    %5 = arith.addf %2, %4 : vector<64x384xf32>
    %c0_5 = arith.constant 0 : index
    %c0_6 = arith.constant 0 : index
    %6 = vector.load %arg13[%c0_5, %c0_6] : memref<64x384xf32, #tpu.memory_space<vmem>>, vector<64x384xf32>
    tpu.vector_store %arg13[%c0_5, %c0_6], %5 {strides = array<i32>} : memref<64x384xf32, #tpu.memory_space<vmem>>, vector<64x384xf32>,
    %c0_7 = arith.constant 0 : index
    %c0_8 = arith.constant 0 : index
    %7 = vector.load %arg6[%c0_7, %c0_8] : memref<40x40xf32, #tpu.memory_space<vmem>>, vector<40x40xf32>
    %c0_9 = arith.constant 0 : index
    %c0_10 = arith.constant 0 : index
    %8 = vector.load %arg7[%c0_9, %c0_10] : memref<40x40xf32, #tpu.memory_space<vmem>>, vector<40x40xf32>
    %c0_11 = arith.constant 0 : index
    %c0_12 = arith.constant 0 : index
    %9 = vector.load %arg8[%c0_11, %c0_12] : memref<40x8xf32, #tpu.memory_space<vmem>>, vector<40x8xf32>
    %c0_13 = arith.constant 0 : index
    %c0_14 = arith.constant 0 : index
    %10 = vector.load %arg9[%c0_13, %c0_14] : memref<8x256xf32, #tpu.memory_space<vmem>>, vector<8x256xf32>
    %c0_15 = arith.constant 0 : index
    %c0_16 = arith.constant 0 : index
    %11 = vector.load %arg10[%c0_15, %c0_16] : memref<40x256xf32, #tpu.memory_space<vmem>>, vector<40x256xf32>
    %c0_17 = arith.constant 0 : index
    %c0_18 = arith.constant 0 : index
    %12 = vector.load %arg11[%c0_17, %c0_18] : memref<1x256xf32, #tpu.memory_space<vmem>>, vector<1x256xf32>
    %13 = vector.shape_cast %12 : vector<1x256xf32> to vector<1x256xf32>
    %14 = vector.broadcast %13 : vector<1x256xf32> to vector<8x256xf32>
    %c0_19 = arith.constant 0 : index
    %c0_20 = arith.constant 0 : index
    %15 = vector.load %arg2[%c0_19, %c0_20] : memref<8x40xf32, #tpu.memory_space<vmem>>, vector<8x40xf32>
    %c0_21 = arith.constant 0 : index
    %c0_22 = arith.constant 0 : index
    %16 = vector.load %arg3[%c0_21, %c0_22] : memref<8x40xf32, #tpu.memory_space<vmem>>, vector<8x40xf32>
    %cst_23 = arith.constant 0.000000e+00 : f32
    %17 = vector.broadcast %cst_23 : f32 to vector<8x40xf32>
    %cst_24 = arith.constant 0.000000e+00 : f32
    %18 = vector.broadcast %cst_24 : f32 to vector<8x8xf32>
    %c0_i32 = arith.constant 0 : i32
    %c8_i32 = arith.constant 8 : i32
    %19 = arith.muli %c0_i32, %c8_i32 : i32
    %20 = tpu.assume_multiple %19, 8 : i32
    %21 = arith.index_cast %20 : i32 to index
    %c0_25 = arith.constant 0 : index
    %22 = vector.load %arg13[%21, %c0_25] : memref<64x384xf32, #tpu.memory_space<vmem>>, vector<8x384xf32>
    %23 = vector.extract_strided_slice %22 {offsets = [0, 0], sizes = [8, 40], strides = [1, 1]} : vector<8x384xf32> to vector<8x40xf32>
    %24 = vector.extract_strided_slice %22 {offsets = [0, 128], sizes = [8, 8], strides = [1, 1]} : vector<8x384xf32> to vector<8x8xf32>
    %25 = vector.extract_strided_slice %22 {offsets = [0, 256], sizes = [8, 40], strides = [1, 1]} : vector<8x384xf32> to vector<8x40xf32>
    %cst_26 = arith.constant dense<0.000000e+00> : vector<8x40xf32>
    %26 = tpu.matmul %15, %7, %cst_26 {dimension_numbers = #tpu.dot_dimension_numbers<[1], [0], [0], [1], [0, 0, 1, 1], [], []>} : vector<8x40xf32>, vector<40x40xf32>, vector<8x40xf32> -> vector<8x40xf32>
    %cst_27 = arith.constant dense<0.000000e+00> : vector<8x40xf32>
    %27 = tpu.matmul %16, %8, %cst_27 {dimension_numbers = #tpu.dot_dimension_numbers<[1], [0], [0], [1], [0, 0, 1, 1], [], []>} : vector<8x40xf32>, vector<40x40xf32>, vector<8x40xf32> -> vector<8x40xf32>
    %28 = arith.addf %23, %17 : vector<8x40xf32>
    %29 = arith.addf %28, %26 : vector<8x40xf32>
    %cst_28 = arith.constant 0.000000e+00 : f32
    %30 = vector.broadcast %cst_28 : f32 to vector<8x40xf32>
    %31 = arith.maximumf %29, %30 : vector<8x40xf32>
    %32 = math.tanh %31 : vector<8x40xf32>
    %cst_29 = arith.constant dense<0.000000e+00> : vector<8x8xf32>
    %33 = tpu.matmul %32, %9, %cst_29 {dimension_numbers = #tpu.dot_dimension_numbers<[1], [0], [0], [1], [0, 0, 1, 1], [], []>} : vector<8x40xf32>, vector<40x8xf32>, vector<8x8xf32> -> vector<8x8xf32>
    %34 = arith.addf %33, %24 : vector<8x8xf32>
    %35 = arith.addf %34, %18 : vector<8x8xf32>
    %cst_30 = arith.constant 0.000000e+00 : f32
    %36 = vector.broadcast %cst_30 : f32 to vector<8x8xf32>
    %37 = arith.maximumf %35, %36 : vector<8x8xf32>
    %38 = math.tanh %37 : vector<8x8xf32>
    %cst_31 = arith.constant dense<0.000000e+00> : vector<8x256xf32>
    %39 = tpu.matmul %38, %10, %cst_31 {dimension_numbers = #tpu.dot_dimension_numbers<[1], [0], [0], [1], [0, 0, 1, 1], [], []>} : vector<8x8xf32>, vector<8x256xf32>, vector<8x256xf32> -> vector<8x256xf32>
    %40 = vector.extract_strided_slice %39 {offsets = [0, 0], sizes = [8, 40], strides = [1, 1]} : vector<8x256xf32> to vector<8x40xf32>
    %41 = vector.extract_strided_slice %39 {offsets = [0, 128], sizes = [8, 40], strides = [1, 1]} : vector<8x256xf32> to vector<8x40xf32>
    %42 = arith.addf %40, %25 : vector<8x40xf32>
    %43 = arith.addf %42, %27 : vector<8x40xf32>
    %cst_32 = arith.constant 0.000000e+00 : f32
    %44 = vector.broadcast %cst_32 : f32 to vector<8x40xf32>
    %45 = arith.maximumf %43, %44 : vector<8x40xf32>
    %46 = math.tanh %45 : vector<8x40xf32>
    %cst_33 = arith.constant dense<0.000000e+00> : vector<8x256xf32>
    %47 = tpu.matmul %46, %11, %cst_33 {dimension_numbers = #tpu.dot_dimension_numbers<[1], [0], [0], [1], [0, 0, 1, 1], [], []>} : vector<8x40xf32>, vector<40x256xf32>, vector<8x256xf32> -> vector<8x256xf32>
    %48 = arith.addf %47, %14 : vector<8x256xf32>
    %49 = vector.extract_strided_slice %48 {offsets = [0, 128], sizes = [8, 8], strides = [1, 1]} : vector<8x256xf32> to vector<8x8xf32>
    %50 = vector.extract_strided_slice %48 {offsets = [0, 0], sizes = [8, 128], strides = [1, 1]} : vector<8x256xf32> to vector<8x128xf32>
    %51 = arith.index_cast %20 : i32 to index
    %c0_34 = arith.constant 0 : index
    %52 = vector.load %arg12[%51, %c0_34] : memref<64x128xf32, #tpu.memory_space<vmem>>, vector<8x128xf32>
    tpu.vector_store %arg12[%51, %c0_34], %50 {strides = array<i32>} : memref<64x128xf32, #tpu.memory_space<vmem>>, vector<8x128xf32>,
    %c1_i32 = arith.constant 1 : i32
    %c8_i32_35 = arith.constant 8 : i32
    %53 = arith.muli %c1_i32, %c8_i32_35 : i32
    %54 = tpu.assume_multiple %53, 8 : i32
    %55 = arith.index_cast %54 : i32 to index
    %c0_36 = arith.constant 0 : index
    %56 = vector.load %arg13[%55, %c0_36] : memref<64x384xf32, #tpu.memory_space<vmem>>, vector<8x384xf32>
    %57 = vector.extract_strided_slice %56 {offsets = [0, 0], sizes = [8, 40], strides = [1, 1]} : vector<8x384xf32> to vector<8x40xf32>
    %58 = vector.extract_strided_slice %56 {offsets = [0, 128], sizes = [8, 8], strides = [1, 1]} : vector<8x384xf32> to vector<8x8xf32>
    %59 = vector.extract_strided_slice %56 {offsets = [0, 256], sizes = [8, 40], strides = [1, 1]} : vector<8x384xf32> to vector<8x40xf32>
    %cst_37 = arith.constant dense<0.000000e+00> : vector<8x40xf32>
    %60 = tpu.matmul %32, %7, %cst_37 {dimension_numbers = #tpu.dot_dimension_numbers<[1], [0], [0], [1], [0, 0, 1, 1], [], []>} : vector<8x40xf32>, vector<40x40xf32>, vector<8x40xf32> -> vector<8x40xf32>
    %cst_38 = arith.constant dense<0.000000e+00> : vector<8x40xf32>
    %61 = tpu.matmul %46, %8, %cst_38 {dimension_numbers = #tpu.dot_dimension_numbers<[1], [0], [0], [1], [0, 0, 1, 1], [], []>} : vector<8x40xf32>, vector<40x40xf32>, vector<8x40xf32> -> vector<8x40xf32>
    %62 = arith.addf %57, %41 : vector<8x40xf32>
    %63 = arith.addf %62, %60 : vector<8x40xf32>
    %cst_39 = arith.constant 0.000000e+00 : f32
    %64 = vector.broadcast %cst_39 : f32 to vector<8x40xf32>
    %65 = arith.maximumf %63, %64 : vector<8x40xf32>
    %66 = math.tanh %65 : vector<8x40xf32>
    %cst_40 = arith.constant dense<0.000000e+00> : vector<8x8xf32>
    %67 = tpu.matmul %66, %9, %cst_40 {dimension_numbers = #tpu.dot_dimension_numbers<[1], [0], [0], [1], [0, 0, 1, 1], [], []>} : vector<8x40xf32>, vector<40x8xf32>, vector<8x8xf32> -> vector<8x8xf32>
    %68 = arith.addf %67, %58 : vector<8x8xf32>
    %69 = arith.addf %68, %49 : vector<8x8xf32>
    %cst_41 = arith.constant 0.000000e+00 : f32
    %70 = vector.broadcast %cst_41 : f32 to vector<8x8xf32>
    %71 = arith.maximumf %69, %70 : vector<8x8xf32>
    %72 = math.tanh %71 : vector<8x8xf32>
    %cst_42 = arith.constant dense<0.000000e+00> : vector<8x256xf32>
    %73 = tpu.matmul %72, %10, %cst_42 {dimension_numbers = #tpu.dot_dimension_numbers<[1], [0], [0], [1], [0, 0, 1, 1], [], []>} : vector<8x8xf32>, vector<8x256xf32>, vector<8x256xf32> -> vector<8x256xf32>
    %74 = vector.extract_strided_slice %73 {offsets = [0, 0], sizes = [8, 40], strides = [1, 1]} : vector<8x256xf32> to vector<8x40xf32>
    %75 = vector.extract_strided_slice %73 {offsets = [0, 128], sizes = [8, 40], strides = [1, 1]} : vector<8x256xf32> to vector<8x40xf32>
    %76 = arith.addf %74, %59 : vector<8x40xf32>
    %77 = arith.addf %76, %61 : vector<8x40xf32>
    %cst_43 = arith.constant 0.000000e+00 : f32
    %78 = vector.broadcast %cst_43 : f32 to vector<8x40xf32>
    %79 = arith.maximumf %77, %78 : vector<8x40xf32>
    %80 = math.tanh %79 : vector<8x40xf32>
    %cst_44 = arith.constant dense<0.000000e+00> : vector<8x256xf32>
    %81 = tpu.matmul %80, %11, %cst_44 {dimension_numbers = #tpu.dot_dimension_numbers<[1], [0], [0], [1], [0, 0, 1, 1], [], []>} : vector<8x40xf32>, vector<40x256xf32>, vector<8x256xf32> -> vector<8x256xf32>
    %82 = arith.addf %81, %14 : vector<8x256xf32>
    %83 = vector.extract_strided_slice %82 {offsets = [0, 128], sizes = [8, 8], strides = [1, 1]} : vector<8x256xf32> to vector<8x8xf32>
    %84 = vector.extract_strided_slice %82 {offsets = [0, 0], sizes = [8, 128], strides = [1, 1]} : vector<8x256xf32> to vector<8x128xf32>
    %85 = arith.index_cast %54 : i32 to index
    %c0_45 = arith.constant 0 : index
    %86 = vector.load %arg12[%85, %c0_45] : memref<64x128xf32, #tpu.memory_space<vmem>>, vector<8x128xf32>
    tpu.vector_store %arg12[%85, %c0_45], %84 {strides = array<i32>} : memref<64x128xf32, #tpu.memory_space<vmem>>, vector<8x128xf32>,
    %c2_i32 = arith.constant 2 : i32
    %c8_i32_46 = arith.constant 8 : i32
    %87 = arith.muli %c2_i32, %c8_i32_46 : i32
    %88 = tpu.assume_multiple %87, 8 : i32
    %89 = arith.index_cast %88 : i32 to index
    %c0_47 = arith.constant 0 : index
    %90 = vector.load %arg13[%89, %c0_47] : memref<64x384xf32, #tpu.memory_space<vmem>>, vector<8x384xf32>
    %91 = vector.extract_strided_slice %90 {offsets = [0, 0], sizes = [8, 40], strides = [1, 1]} : vector<8x384xf32> to vector<8x40xf32>
    %92 = vector.extract_strided_slice %90 {offsets = [0, 128], sizes = [8, 8], strides = [1, 1]} : vector<8x384xf32> to vector<8x8xf32>
    %93 = vector.extract_strided_slice %90 {offsets = [0, 256], sizes = [8, 40], strides = [1, 1]} : vector<8x384xf32> to vector<8x40xf32>
    %cst_48 = arith.constant dense<0.000000e+00> : vector<8x40xf32>
    %94 = tpu.matmul %66, %7, %cst_48 {dimension_numbers = #tpu.dot_dimension_numbers<[1], [0], [0], [1], [0, 0, 1, 1], [], []>} : vector<8x40xf32>, vector<40x40xf32>, vector<8x40xf32> -> vector<8x40xf32>
    %cst_49 = arith.constant dense<0.000000e+00> : vector<8x40xf32>
    %95 = tpu.matmul %80, %8, %cst_49 {dimension_numbers = #tpu.dot_dimension_numbers<[1], [0], [0], [1], [0, 0, 1, 1], [], []>} : vector<8x40xf32>, vector<40x40xf32>, vector<8x40xf32> -> vector<8x40xf32>
    %96 = arith.addf %91, %75 : vector<8x40xf32>
    %97 = arith.addf %96, %94 : vector<8x40xf32>
    %cst_50 = arith.constant 0.000000e+00 : f32
    %98 = vector.broadcast %cst_50 : f32 to vector<8x40xf32>
    %99 = arith.maximumf %97, %98 : vector<8x40xf32>
    %100 = math.tanh %99 : vector<8x40xf32>
    %cst_51 = arith.constant dense<0.000000e+00> : vector<8x8xf32>
    %101 = tpu.matmul %100, %9, %cst_51 {dimension_numbers = #tpu.dot_dimension_numbers<[1], [0], [0], [1], [0, 0, 1, 1], [], []>} : vector<8x40xf32>, vector<40x8xf32>, vector<8x8xf32> -> vector<8x8xf32>
    %102 = arith.addf %101, %92 : vector<8x8xf32>
    %103 = arith.addf %102, %83 : vector<8x8xf32>
    %cst_52 = arith.constant 0.000000e+00 : f32
    %104 = vector.broadcast %cst_52 : f32 to vector<8x8xf32>
    %105 = arith.maximumf %103, %104 : vector<8x8xf32>
    %106 = math.tanh %105 : vector<8x8xf32>
    %cst_53 = arith.constant dense<0.000000e+00> : vector<8x256xf32>
    %107 = tpu.matmul %106, %10, %cst_53 {dimension_numbers = #tpu.dot_dimension_numbers<[1], [0], [0], [1], [0, 0, 1, 1], [], []>} : vector<8x8xf32>, vector<8x256xf32>, vector<8x256xf32> -> vector<8x256xf32>
    %108 = vector.extract_strided_slice %107 {offsets = [0, 0], sizes = [8, 40], strides = [1, 1]} : vector<8x256xf32> to vector<8x40xf32>
    %109 = vector.extract_strided_slice %107 {offsets = [0, 128], sizes = [8, 40], strides = [1, 1]} : vector<8x256xf32> to vector<8x40xf32>
    %110 = arith.addf %108, %93 : vector<8x40xf32>
    %111 = arith.addf %110, %95 : vector<8x40xf32>
    %cst_54 = arith.constant 0.000000e+00 : f32
    %112 = vector.broadcast %cst_54 : f32 to vector<8x40xf32>
    %113 = arith.maximumf %111, %112 : vector<8x40xf32>
    %114 = math.tanh %113 : vector<8x40xf32>
    %cst_55 = arith.constant dense<0.000000e+00> : vector<8x256xf32>
    %115 = tpu.matmul %114, %11, %cst_55 {dimension_numbers = #tpu.dot_dimension_numbers<[1], [0], [0], [1], [0, 0, 1, 1], [], []>} : vector<8x40xf32>, vector<40x256xf32>, vector<8x256xf32> -> vector<8x256xf32>
    %116 = arith.addf %115, %14 : vector<8x256xf32>
    %117 = vector.extract_strided_slice %116 {offsets = [0, 128], sizes = [8, 8], strides = [1, 1]} : vector<8x256xf32> to vector<8x8xf32>
    %118 = vector.extract_strided_slice %116 {offsets = [0, 0], sizes = [8, 128], strides = [1, 1]} : vector<8x256xf32> to vector<8x128xf32>
    %119 = arith.index_cast %88 : i32 to index
    %c0_56 = arith.constant 0 : index
    %120 = vector.load %arg12[%119, %c0_56] : memref<64x128xf32, #tpu.memory_space<vmem>>, vector<8x128xf32>
    tpu.vector_store %arg12[%119, %c0_56], %118 {strides = array<i32>} : memref<64x128xf32, #tpu.memory_space<vmem>>, vector<8x128xf32>,
    %c3_i32 = arith.constant 3 : i32
    %c8_i32_57 = arith.constant 8 : i32
    %121 = arith.muli %c3_i32, %c8_i32_57 : i32
    %122 = tpu.assume_multiple %121, 8 : i32
    %123 = arith.index_cast %122 : i32 to index
    %c0_58 = arith.constant 0 : index
    %124 = vector.load %arg13[%123, %c0_58] : memref<64x384xf32, #tpu.memory_space<vmem>>, vector<8x384xf32>
    %125 = vector.extract_strided_slice %124 {offsets = [0, 0], sizes = [8, 40], strides = [1, 1]} : vector<8x384xf32> to vector<8x40xf32>
    %126 = vector.extract_strided_slice %124 {offsets = [0, 128], sizes = [8, 8], strides = [1, 1]} : vector<8x384xf32> to vector<8x8xf32>
    %127 = vector.extract_strided_slice %124 {offsets = [0, 256], sizes = [8, 40], strides = [1, 1]} : vector<8x384xf32> to vector<8x40xf32>
    %cst_59 = arith.constant dense<0.000000e+00> : vector<8x40xf32>
    %128 = tpu.matmul %100, %7, %cst_59 {dimension_numbers = #tpu.dot_dimension_numbers<[1], [0], [0], [1], [0, 0, 1, 1], [], []>} : vector<8x40xf32>, vector<40x40xf32>, vector<8x40xf32> -> vector<8x40xf32>
    %cst_60 = arith.constant dense<0.000000e+00> : vector<8x40xf32>
    %129 = tpu.matmul %114, %8, %cst_60 {dimension_numbers = #tpu.dot_dimension_numbers<[1], [0], [0], [1], [0, 0, 1, 1], [], []>} : vector<8x40xf32>, vector<40x40xf32>, vector<8x40xf32> -> vector<8x40xf32>
    %130 = arith.addf %125, %109 : vector<8x40xf32>
    %131 = arith.addf %130, %128 : vector<8x40xf32>
    %cst_61 = arith.constant 0.000000e+00 : f32
    %132 = vector.broadcast %cst_61 : f32 to vector<8x40xf32>
    %133 = arith.maximumf %131, %132 : vector<8x40xf32>
    %134 = math.tanh %133 : vector<8x40xf32>
    %cst_62 = arith.constant dense<0.000000e+00> : vector<8x8xf32>
    %135 = tpu.matmul %134, %9, %cst_62 {dimension_numbers = #tpu.dot_dimension_numbers<[1], [0], [0], [1], [0, 0, 1, 1], [], []>} : vector<8x40xf32>, vector<40x8xf32>, vector<8x8xf32> -> vector<8x8xf32>
    %136 = arith.addf %135, %126 : vector<8x8xf32>
    %137 = arith.addf %136, %117 : vector<8x8xf32>
    %cst_63 = arith.constant 0.000000e+00 : f32
    %138 = vector.broadcast %cst_63 : f32 to vector<8x8xf32>
    %139 = arith.maximumf %137, %138 : vector<8x8xf32>
    %140 = math.tanh %139 : vector<8x8xf32>
    %cst_64 = arith.constant dense<0.000000e+00> : vector<8x256xf32>
    %141 = tpu.matmul %140, %10, %cst_64 {dimension_numbers = #tpu.dot_dimension_numbers<[1], [0], [0], [1], [0, 0, 1, 1], [], []>} : vector<8x8xf32>, vector<8x256xf32>, vector<8x256xf32> -> vector<8x256xf32>
    %142 = vector.extract_strided_slice %141 {offsets = [0, 0], sizes = [8, 40], strides = [1, 1]} : vector<8x256xf32> to vector<8x40xf32>
    %143 = vector.extract_strided_slice %141 {offsets = [0, 128], sizes = [8, 40], strides = [1, 1]} : vector<8x256xf32> to vector<8x40xf32>
    %144 = arith.addf %142, %127 : vector<8x40xf32>
    %145 = arith.addf %144, %129 : vector<8x40xf32>
    %cst_65 = arith.constant 0.000000e+00 : f32
    %146 = vector.broadcast %cst_65 : f32 to vector<8x40xf32>
    %147 = arith.maximumf %145, %146 : vector<8x40xf32>
    %148 = math.tanh %147 : vector<8x40xf32>
    %cst_66 = arith.constant dense<0.000000e+00> : vector<8x256xf32>
    %149 = tpu.matmul %148, %11, %cst_66 {dimension_numbers = #tpu.dot_dimension_numbers<[1], [0], [0], [1], [0, 0, 1, 1], [], []>} : vector<8x40xf32>, vector<40x256xf32>, vector<8x256xf32> -> vector<8x256xf32>
    %150 = arith.addf %149, %14 : vector<8x256xf32>
    %151 = vector.extract_strided_slice %150 {offsets = [0, 128], sizes = [8, 8], strides = [1, 1]} : vector<8x256xf32> to vector<8x8xf32>
    %152 = vector.extract_strided_slice %150 {offsets = [0, 0], sizes = [8, 128], strides = [1, 1]} : vector<8x256xf32> to vector<8x128xf32>
    %153 = arith.index_cast %122 : i32 to index
    %c0_67 = arith.constant 0 : index
    %154 = vector.load %arg12[%153, %c0_67] : memref<64x128xf32, #tpu.memory_space<vmem>>, vector<8x128xf32>
    tpu.vector_store %arg12[%153, %c0_67], %152 {strides = array<i32>} : memref<64x128xf32, #tpu.memory_space<vmem>>, vector<8x128xf32>,
    %c4_i32 = arith.constant 4 : i32
    %c8_i32_68 = arith.constant 8 : i32
    %155 = arith.muli %c4_i32, %c8_i32_68 : i32
    %156 = tpu.assume_multiple %155, 8 : i32
    %157 = arith.index_cast %156 : i32 to index
    %c0_69 = arith.constant 0 : index
    %158 = vector.load %arg13[%157, %c0_69] : memref<64x384xf32, #tpu.memory_space<vmem>>, vector<8x384xf32>
    %159 = vector.extract_strided_slice %158 {offsets = [0, 0], sizes = [8, 40], strides = [1, 1]} : vector<8x384xf32> to vector<8x40xf32>
    %160 = vector.extract_strided_slice %158 {offsets = [0, 128], sizes = [8, 8], strides = [1, 1]} : vector<8x384xf32> to vector<8x8xf32>
    %161 = vector.extract_strided_slice %158 {offsets = [0, 256], sizes = [8, 40], strides = [1, 1]} : vector<8x384xf32> to vector<8x40xf32>
    %cst_70 = arith.constant dense<0.000000e+00> : vector<8x40xf32>
    %162 = tpu.matmul %134, %7, %cst_70 {dimension_numbers = #tpu.dot_dimension_numbers<[1], [0], [0], [1], [0, 0, 1, 1], [], []>} : vector<8x40xf32>, vector<40x40xf32>, vector<8x40xf32> -> vector<8x40xf32>
    %cst_71 = arith.constant dense<0.000000e+00> : vector<8x40xf32>
    %163 = tpu.matmul %148, %8, %cst_71 {dimension_numbers = #tpu.dot_dimension_numbers<[1], [0], [0], [1], [0, 0, 1, 1], [], []>} : vector<8x40xf32>, vector<40x40xf32>, vector<8x40xf32> -> vector<8x40xf32>
    %164 = arith.addf %159, %143 : vector<8x40xf32>
    %165 = arith.addf %164, %162 : vector<8x40xf32>
    %cst_72 = arith.constant 0.000000e+00 : f32
    %166 = vector.broadcast %cst_72 : f32 to vector<8x40xf32>
    %167 = arith.maximumf %165, %166 : vector<8x40xf32>
    %168 = math.tanh %167 : vector<8x40xf32>
    %cst_73 = arith.constant dense<0.000000e+00> : vector<8x8xf32>
    %169 = tpu.matmul %168, %9, %cst_73 {dimension_numbers = #tpu.dot_dimension_numbers<[1], [0], [0], [1], [0, 0, 1, 1], [], []>} : vector<8x40xf32>, vector<40x8xf32>, vector<8x8xf32> -> vector<8x8xf32>
    %170 = arith.addf %169, %160 : vector<8x8xf32>
    %171 = arith.addf %170, %151 : vector<8x8xf32>
    %cst_74 = arith.constant 0.000000e+00 : f32
    %172 = vector.broadcast %cst_74 : f32 to vector<8x8xf32>
    %173 = arith.maximumf %171, %172 : vector<8x8xf32>
    %174 = math.tanh %173 : vector<8x8xf32>
    %cst_75 = arith.constant dense<0.000000e+00> : vector<8x256xf32>
    %175 = tpu.matmul %174, %10, %cst_75 {dimension_numbers = #tpu.dot_dimension_numbers<[1], [0], [0], [1], [0, 0, 1, 1], [], []>} : vector<8x8xf32>, vector<8x256xf32>, vector<8x256xf32> -> vector<8x256xf32>
    %176 = vector.extract_strided_slice %175 {offsets = [0, 0], sizes = [8, 40], strides = [1, 1]} : vector<8x256xf32> to vector<8x40xf32>
    %177 = vector.extract_strided_slice %175 {offsets = [0, 128], sizes = [8, 40], strides = [1, 1]} : vector<8x256xf32> to vector<8x40xf32>
    %178 = arith.addf %176, %161 : vector<8x40xf32>
    %179 = arith.addf %178, %163 : vector<8x40xf32>
    %cst_76 = arith.constant 0.000000e+00 : f32
    %180 = vector.broadcast %cst_76 : f32 to vector<8x40xf32>
    %181 = arith.maximumf %179, %180 : vector<8x40xf32>
    %182 = math.tanh %181 : vector<8x40xf32>
    %cst_77 = arith.constant dense<0.000000e+00> : vector<8x256xf32>
    %183 = tpu.matmul %182, %11, %cst_77 {dimension_numbers = #tpu.dot_dimension_numbers<[1], [0], [0], [1], [0, 0, 1, 1], [], []>} : vector<8x40xf32>, vector<40x256xf32>, vector<8x256xf32> -> vector<8x256xf32>
    %184 = arith.addf %183, %14 : vector<8x256xf32>
    %185 = vector.extract_strided_slice %184 {offsets = [0, 128], sizes = [8, 8], strides = [1, 1]} : vector<8x256xf32> to vector<8x8xf32>
    %186 = vector.extract_strided_slice %184 {offsets = [0, 0], sizes = [8, 128], strides = [1, 1]} : vector<8x256xf32> to vector<8x128xf32>
    %187 = arith.index_cast %156 : i32 to index
    %c0_78 = arith.constant 0 : index
    %188 = vector.load %arg12[%187, %c0_78] : memref<64x128xf32, #tpu.memory_space<vmem>>, vector<8x128xf32>
    tpu.vector_store %arg12[%187, %c0_78], %186 {strides = array<i32>} : memref<64x128xf32, #tpu.memory_space<vmem>>, vector<8x128xf32>,
    %c5_i32 = arith.constant 5 : i32
    %c8_i32_79 = arith.constant 8 : i32
    %189 = arith.muli %c5_i32, %c8_i32_79 : i32
    %190 = tpu.assume_multiple %189, 8 : i32
    %191 = arith.index_cast %190 : i32 to index
    %c0_80 = arith.constant 0 : index
    %192 = vector.load %arg13[%191, %c0_80] : memref<64x384xf32, #tpu.memory_space<vmem>>, vector<8x384xf32>
    %193 = vector.extract_strided_slice %192 {offsets = [0, 0], sizes = [8, 40], strides = [1, 1]} : vector<8x384xf32> to vector<8x40xf32>
    %194 = vector.extract_strided_slice %192 {offsets = [0, 128], sizes = [8, 8], strides = [1, 1]} : vector<8x384xf32> to vector<8x8xf32>
    %195 = vector.extract_strided_slice %192 {offsets = [0, 256], sizes = [8, 40], strides = [1, 1]} : vector<8x384xf32> to vector<8x40xf32>
    %cst_81 = arith.constant dense<0.000000e+00> : vector<8x40xf32>
    %196 = tpu.matmul %168, %7, %cst_81 {dimension_numbers = #tpu.dot_dimension_numbers<[1], [0], [0], [1], [0, 0, 1, 1], [], []>} : vector<8x40xf32>, vector<40x40xf32>, vector<8x40xf32> -> vector<8x40xf32>
    %cst_82 = arith.constant dense<0.000000e+00> : vector<8x40xf32>
    %197 = tpu.matmul %182, %8, %cst_82 {dimension_numbers = #tpu.dot_dimension_numbers<[1], [0], [0], [1], [0, 0, 1, 1], [], []>} : vector<8x40xf32>, vector<40x40xf32>, vector<8x40xf32> -> vector<8x40xf32>
    %198 = arith.addf %193, %177 : vector<8x40xf32>
    %199 = arith.addf %198, %196 : vector<8x40xf32>
    %cst_83 = arith.constant 0.000000e+00 : f32
    %200 = vector.broadcast %cst_83 : f32 to vector<8x40xf32>
    %201 = arith.maximumf %199, %200 : vector<8x40xf32>
    %202 = math.tanh %201 : vector<8x40xf32>
    %cst_84 = arith.constant dense<0.000000e+00> : vector<8x8xf32>
    %203 = tpu.matmul %202, %9, %cst_84 {dimension_numbers = #tpu.dot_dimension_numbers<[1], [0], [0], [1], [0, 0, 1, 1], [], []>} : vector<8x40xf32>, vector<40x8xf32>, vector<8x8xf32> -> vector<8x8xf32>
    %204 = arith.addf %203, %194 : vector<8x8xf32>
    %205 = arith.addf %204, %185 : vector<8x8xf32>
    %cst_85 = arith.constant 0.000000e+00 : f32
    %206 = vector.broadcast %cst_85 : f32 to vector<8x8xf32>
    %207 = arith.maximumf %205, %206 : vector<8x8xf32>
    %208 = math.tanh %207 : vector<8x8xf32>
    %cst_86 = arith.constant dense<0.000000e+00> : vector<8x256xf32>
    %209 = tpu.matmul %208, %10, %cst_86 {dimension_numbers = #tpu.dot_dimension_numbers<[1], [0], [0], [1], [0, 0, 1, 1], [], []>} : vector<8x8xf32>, vector<8x256xf32>, vector<8x256xf32> -> vector<8x256xf32>
    %210 = vector.extract_strided_slice %209 {offsets = [0, 0], sizes = [8, 40], strides = [1, 1]} : vector<8x256xf32> to vector<8x40xf32>
    %211 = vector.extract_strided_slice %209 {offsets = [0, 128], sizes = [8, 40], strides = [1, 1]} : vector<8x256xf32> to vector<8x40xf32>
    %212 = arith.addf %210, %195 : vector<8x40xf32>
    %213 = arith.addf %212, %197 : vector<8x40xf32>
    %cst_87 = arith.constant 0.000000e+00 : f32
    %214 = vector.broadcast %cst_87 : f32 to vector<8x40xf32>
    %215 = arith.maximumf %213, %214 : vector<8x40xf32>
    %216 = math.tanh %215 : vector<8x40xf32>
    %cst_88 = arith.constant dense<0.000000e+00> : vector<8x256xf32>
    %217 = tpu.matmul %216, %11, %cst_88 {dimension_numbers = #tpu.dot_dimension_numbers<[1], [0], [0], [1], [0, 0, 1, 1], [], []>} : vector<8x40xf32>, vector<40x256xf32>, vector<8x256xf32> -> vector<8x256xf32>
    %218 = arith.addf %217, %14 : vector<8x256xf32>
    %219 = vector.extract_strided_slice %218 {offsets = [0, 128], sizes = [8, 8], strides = [1, 1]} : vector<8x256xf32> to vector<8x8xf32>
    %220 = vector.extract_strided_slice %218 {offsets = [0, 0], sizes = [8, 128], strides = [1, 1]} : vector<8x256xf32> to vector<8x128xf32>
    %221 = arith.index_cast %190 : i32 to index
    %c0_89 = arith.constant 0 : index
    %222 = vector.load %arg12[%221, %c0_89] : memref<64x128xf32, #tpu.memory_space<vmem>>, vector<8x128xf32>
    tpu.vector_store %arg12[%221, %c0_89], %220 {strides = array<i32>} : memref<64x128xf32, #tpu.memory_space<vmem>>, vector<8x128xf32>,
    %c6_i32 = arith.constant 6 : i32
    %c8_i32_90 = arith.constant 8 : i32
    %223 = arith.muli %c6_i32, %c8_i32_90 : i32
    %224 = tpu.assume_multiple %223, 8 : i32
    %225 = arith.index_cast %224 : i32 to index
    %c0_91 = arith.constant 0 : index
    %226 = vector.load %arg13[%225, %c0_91] : memref<64x384xf32, #tpu.memory_space<vmem>>, vector<8x384xf32>
    %227 = vector.extract_strided_slice %226 {offsets = [0, 0], sizes = [8, 40], strides = [1, 1]} : vector<8x384xf32> to vector<8x40xf32>
    %228 = vector.extract_strided_slice %226 {offsets = [0, 128], sizes = [8, 8], strides = [1, 1]} : vector<8x384xf32> to vector<8x8xf32>
    %229 = vector.extract_strided_slice %226 {offsets = [0, 256], sizes = [8, 40], strides = [1, 1]} : vector<8x384xf32> to vector<8x40xf32>
    %cst_92 = arith.constant dense<0.000000e+00> : vector<8x40xf32>
    %230 = tpu.matmul %202, %7, %cst_92 {dimension_numbers = #tpu.dot_dimension_numbers<[1], [0], [0], [1], [0, 0, 1, 1], [], []>} : vector<8x40xf32>, vector<40x40xf32>, vector<8x40xf32> -> vector<8x40xf32>
    %cst_93 = arith.constant dense<0.000000e+00> : vector<8x40xf32>
    %231 = tpu.matmul %216, %8, %cst_93 {dimension_numbers = #tpu.dot_dimension_numbers<[1], [0], [0], [1], [0, 0, 1, 1], [], []>} : vector<8x40xf32>, vector<40x40xf32>, vector<8x40xf32> -> vector<8x40xf32>
    %232 = arith.addf %227, %211 : vector<8x40xf32>
    %233 = arith.addf %232, %230 : vector<8x40xf32>
    %cst_94 = arith.constant 0.000000e+00 : f32
    %234 = vector.broadcast %cst_94 : f32 to vector<8x40xf32>
    %235 = arith.maximumf %233, %234 : vector<8x40xf32>
    %236 = math.tanh %235 : vector<8x40xf32>
    %cst_95 = arith.constant dense<0.000000e+00> : vector<8x8xf32>
    %237 = tpu.matmul %236, %9, %cst_95 {dimension_numbers = #tpu.dot_dimension_numbers<[1], [0], [0], [1], [0, 0, 1, 1], [], []>} : vector<8x40xf32>, vector<40x8xf32>, vector<8x8xf32> -> vector<8x8xf32>
    %238 = arith.addf %237, %228 : vector<8x8xf32>
    %239 = arith.addf %238, %219 : vector<8x8xf32>
    %cst_96 = arith.constant 0.000000e+00 : f32
    %240 = vector.broadcast %cst_96 : f32 to vector<8x8xf32>
    %241 = arith.maximumf %239, %240 : vector<8x8xf32>
    %242 = math.tanh %241 : vector<8x8xf32>
    %cst_97 = arith.constant dense<0.000000e+00> : vector<8x256xf32>
    %243 = tpu.matmul %242, %10, %cst_97 {dimension_numbers = #tpu.dot_dimension_numbers<[1], [0], [0], [1], [0, 0, 1, 1], [], []>} : vector<8x8xf32>, vector<8x256xf32>, vector<8x256xf32> -> vector<8x256xf32>
    %244 = vector.extract_strided_slice %243 {offsets = [0, 0], sizes = [8, 40], strides = [1, 1]} : vector<8x256xf32> to vector<8x40xf32>
    %245 = vector.extract_strided_slice %243 {offsets = [0, 128], sizes = [8, 40], strides = [1, 1]} : vector<8x256xf32> to vector<8x40xf32>
    %246 = arith.addf %244, %229 : vector<8x40xf32>
    %247 = arith.addf %246, %231 : vector<8x40xf32>
    %cst_98 = arith.constant 0.000000e+00 : f32
    %248 = vector.broadcast %cst_98 : f32 to vector<8x40xf32>
    %249 = arith.maximumf %247, %248 : vector<8x40xf32>
    %250 = math.tanh %249 : vector<8x40xf32>
    %cst_99 = arith.constant dense<0.000000e+00> : vector<8x256xf32>
    %251 = tpu.matmul %250, %11, %cst_99 {dimension_numbers = #tpu.dot_dimension_numbers<[1], [0], [0], [1], [0, 0, 1, 1], [], []>} : vector<8x40xf32>, vector<40x256xf32>, vector<8x256xf32> -> vector<8x256xf32>
    %252 = arith.addf %251, %14 : vector<8x256xf32>
    %253 = vector.extract_strided_slice %252 {offsets = [0, 128], sizes = [8, 8], strides = [1, 1]} : vector<8x256xf32> to vector<8x8xf32>
    %254 = vector.extract_strided_slice %252 {offsets = [0, 0], sizes = [8, 128], strides = [1, 1]} : vector<8x256xf32> to vector<8x128xf32>
    %255 = arith.index_cast %224 : i32 to index
    %c0_100 = arith.constant 0 : index
    %256 = vector.load %arg12[%255, %c0_100] : memref<64x128xf32, #tpu.memory_space<vmem>>, vector<8x128xf32>
    tpu.vector_store %arg12[%255, %c0_100], %254 {strides = array<i32>} : memref<64x128xf32, #tpu.memory_space<vmem>>, vector<8x128xf32>,
    %c7_i32 = arith.constant 7 : i32
    %c8_i32_101 = arith.constant 8 : i32
    %257 = arith.muli %c7_i32, %c8_i32_101 : i32
    %258 = tpu.assume_multiple %257, 8 : i32
    %259 = arith.index_cast %258 : i32 to index
    %c0_102 = arith.constant 0 : index
    %260 = vector.load %arg13[%259, %c0_102] : memref<64x384xf32, #tpu.memory_space<vmem>>, vector<8x384xf32>
    %261 = vector.extract_strided_slice %260 {offsets = [0, 0], sizes = [8, 40], strides = [1, 1]} : vector<8x384xf32> to vector<8x40xf32>
    %262 = vector.extract_strided_slice %260 {offsets = [0, 128], sizes = [8, 8], strides = [1, 1]} : vector<8x384xf32> to vector<8x8xf32>
    %263 = vector.extract_strided_slice %260 {offsets = [0, 256], sizes = [8, 40], strides = [1, 1]} : vector<8x384xf32> to vector<8x40xf32>
    %cst_103 = arith.constant dense<0.000000e+00> : vector<8x40xf32>
    %264 = tpu.matmul %236, %7, %cst_103 {dimension_numbers = #tpu.dot_dimension_numbers<[1], [0], [0], [1], [0, 0, 1, 1], [], []>} : vector<8x40xf32>, vector<40x40xf32>, vector<8x40xf32> -> vector<8x40xf32>
    %cst_104 = arith.constant dense<0.000000e+00> : vector<8x40xf32>
    %265 = tpu.matmul %250, %8, %cst_104 {dimension_numbers = #tpu.dot_dimension_numbers<[1], [0], [0], [1], [0, 0, 1, 1], [], []>} : vector<8x40xf32>, vector<40x40xf32>, vector<8x40xf32> -> vector<8x40xf32>
    %266 = arith.addf %261, %245 : vector<8x40xf32>
    %267 = arith.addf %266, %264 : vector<8x40xf32>
    %cst_105 = arith.constant 0.000000e+00 : f32
    %268 = vector.broadcast %cst_105 : f32 to vector<8x40xf32>
    %269 = arith.maximumf %267, %268 : vector<8x40xf32>
    %270 = math.tanh %269 : vector<8x40xf32>
    %cst_106 = arith.constant dense<0.000000e+00> : vector<8x8xf32>
    %271 = tpu.matmul %270, %9, %cst_106 {dimension_numbers = #tpu.dot_dimension_numbers<[1], [0], [0], [1], [0, 0, 1, 1], [], []>} : vector<8x40xf32>, vector<40x8xf32>, vector<8x8xf32> -> vector<8x8xf32>
    %272 = arith.addf %271, %262 : vector<8x8xf32>
    %273 = arith.addf %272, %253 : vector<8x8xf32>
    %cst_107 = arith.constant 0.000000e+00 : f32
    %274 = vector.broadcast %cst_107 : f32 to vector<8x8xf32>
    %275 = arith.maximumf %273, %274 : vector<8x8xf32>
    %276 = math.tanh %275 : vector<8x8xf32>
    %cst_108 = arith.constant dense<0.000000e+00> : vector<8x256xf32>
    %277 = tpu.matmul %276, %10, %cst_108 {dimension_numbers = #tpu.dot_dimension_numbers<[1], [0], [0], [1], [0, 0, 1, 1], [], []>} : vector<8x8xf32>, vector<8x256xf32>, vector<8x256xf32> -> vector<8x256xf32>
    %278 = vector.extract_strided_slice %277 {offsets = [0, 0], sizes = [8, 40], strides = [1, 1]} : vector<8x256xf32> to vector<8x40xf32>
    %279 = vector.extract_strided_slice %277 {offsets = [0, 128], sizes = [8, 40], strides = [1, 1]} : vector<8x256xf32> to vector<8x40xf32>
    %280 = arith.addf %278, %263 : vector<8x40xf32>
    %281 = arith.addf %280, %265 : vector<8x40xf32>
    %cst_109 = arith.constant 0.000000e+00 : f32
    %282 = vector.broadcast %cst_109 : f32 to vector<8x40xf32>
    %283 = arith.maximumf %281, %282 : vector<8x40xf32>
    %284 = math.tanh %283 : vector<8x40xf32>
    %cst_110 = arith.constant dense<0.000000e+00> : vector<8x256xf32>
    %285 = tpu.matmul %284, %11, %cst_110 {dimension_numbers = #tpu.dot_dimension_numbers<[1], [0], [0], [1], [0, 0, 1, 1], [], []>} : vector<8x40xf32>, vector<40x256xf32>, vector<8x256xf32> -> vector<8x256xf32>
    %286 = arith.addf %285, %14 : vector<8x256xf32>
    %287 = vector.extract_strided_slice %286 {offsets = [0, 128], sizes = [8, 8], strides = [1, 1]} : vector<8x256xf32> to vector<8x8xf32>
    %288 = vector.extract_strided_slice %286 {offsets = [0, 0], sizes = [8, 128], strides = [1, 1]} : vector<8x256xf32> to vector<8x128xf32>
    %289 = arith.index_cast %258 : i32 to index
    %c0_111 = arith.constant 0 : index
    %290 = vector.load %arg12[%289, %c0_111] : memref<64x128xf32, #tpu.memory_space<vmem>>, vector<8x128xf32>
    tpu.vector_store %arg12[%289, %c0_111], %288 {strides = array<i32>} : memref<64x128xf32, #tpu.memory_space<vmem>>, vector<8x128xf32>,
    %c8_i32_112 = arith.constant 8 : i32
    return
  }
  func.func @transform_0(%arg0: i32) -> (i32, i32) {
    %c0_i32 = arith.constant 0 : i32
    %c0_i32_0 = arith.constant 0 : i32
    %c0_i32_1 = arith.constant 0 : i32
    return %c0_i32, %c0_i32_0 : i32, i32
  }
  func.func @transform_1(%arg0: i32) -> (i32, i32) {
    %c0_i32 = arith.constant 0 : i32
    %c0_i32_0 = arith.constant 0 : i32
    %c0_i32_1 = arith.constant 0 : i32
    return %c0_i32, %c0_i32_0 : i32, i32
  }
  func.func @transform_2(%arg0: i32) -> (i32, i32) {
    %c0_i32 = arith.constant 0 : i32
    %c0_i32_0 = arith.constant 0 : i32
    %c0_i32_1 = arith.constant 0 : i32
    return %c0_i32, %c0_i32_0 : i32, i32
  }
  func.func @transform_3(%arg0: i32) -> (i32, i32) {
    %c0_i32 = arith.constant 0 : i32
    %c0_i32_0 = arith.constant 0 : i32
    %c0_i32_1 = arith.constant 0 : i32
    return %c0_i32, %c0_i32_0 : i32, i32
  }
  func.func @transform_4(%arg0: i32) -> (i32, i32) {
    %c0_i32 = arith.constant 0 : i32
    %c0_i32_0 = arith.constant 0 : i32
    %c0_i32_1 = arith.constant 0 : i32
    return %c0_i32, %c0_i32_0 : i32, i32
  }
  func.func @transform_5(%arg0: i32) -> (i32, i32) {
    %c0_i32 = arith.constant 0 : i32
    %c0_i32_0 = arith.constant 0 : i32
    %c0_i32_1 = arith.constant 0 : i32
    return %c0_i32, %c0_i32_0 : i32, i32
  }
  func.func @transform_6(%arg0: i32) -> (i32, i32) {
    %c0_i32 = arith.constant 0 : i32
    %c0_i32_0 = arith.constant 0 : i32
    %c0_i32_1 = arith.constant 0 : i32
    return %c0_i32, %c0_i32_0 : i32, i32
  }
  func.func @transform_7(%arg0: i32) -> (i32, i32) {
    %c0_i32 = arith.constant 0 : i32
    %c0_i32_0 = arith.constant 0 : i32
    %c0_i32_1 = arith.constant 0 : i32
    return %c0_i32, %c0_i32_0 : i32, i32
  }
  func.func @transform_8(%arg0: i32) -> (i32, i32) {
    %c0_i32 = arith.constant 0 : i32
    %c0_i32_0 = arith.constant 0 : i32
    %c0_i32_1 = arith.constant 0 : i32
    return %c0_i32, %c0_i32_0 : i32, i32
  }
  func.func @transform_9(%arg0: i32) -> (i32, i32) {
    %c0_i32 = arith.constant 0 : i32
    %c0_i32_0 = arith.constant 0 : i32
    %c0_i32_1 = arith.constant 0 : i32
    return %c0_i32, %c0_i32_0 : i32, i32
  }
  func.func @transform_10(%arg0: i32) -> (i32, i32) {
    %c0_i32 = arith.constant 0 : i32
    %c0_i32_0 = arith.constant 0 : i32
    %c0_i32_1 = arith.constant 0 : i32
    return %c0_i32, %c0_i32_0 : i32, i32
  }
  func.func @transform_11(%arg0: i32) -> (i32, i32) {
    %c0_i32 = arith.constant 0 : i32
    %c0_i32_0 = arith.constant 0 : i32
    %c0_i32_1 = arith.constant 0 : i32
    return %c0_i32, %c0_i32_0 : i32, i32
  }
}

</mosaic_0001>

<llo_original>
// kernel: tpu_custom_call.1
$region0: #{tpu_custom_call.1}
  #allocation0 [shape = 'u32[]', space=smem, size = 0x4, offset = 0x4, fixed_abs, tag = 'smem constant byte address 0x4 - core index']
  #allocation1 [shape = 'u32[144,128]{1,0:T(1,128)}', space=vmem, size = 0x12000, scoped, tag = 'internal scratch']
  #allocation2 [shape = 'f32[64,384]{1,0:T(8,128)}', space=vmem, size = 0x18000, scoped, tag = 'scratch operand']
  %s0 = inlined_call_operand.vmem [shape: f32[64,17], index: 0, kind: input, shape index: {}]
  %s1 = inlined_call_operand.hbm [shape: f32[8,40], index: 1, kind: input, shape index: {}]
  %s2 = inlined_call_operand.hbm [shape: f32[8,40], index: 2, kind: input, shape index: {}]
  %s3 = inlined_call_operand.vmem [shape: f32[17,384], index: 3, kind: input, shape index: {}]
  %s4 = inlined_call_operand.hbm [shape: f32[1,384], index: 4, kind: input, shape index: {}]
  %s5 = inlined_call_operand.hbm [shape: f32[40,40], index: 5, kind: input, shape index: {}]
  %s6 = inlined_call_operand.hbm [shape: f32[40,40], index: 6, kind: input, shape index: {}]
  %s7 = inlined_call_operand.vmem [shape: f32[40,8], index: 7, kind: input, shape index: {}]
  %s8 = inlined_call_operand.hbm [shape: f32[8,256], index: 8, kind: input, shape index: {}]
  %s9 = inlined_call_operand.vmem [shape: f32[40,256], index: 9, kind: input, shape index: {}]
  %s10 = inlined_call_operand.vmem [shape: f32[1,256], index: 10, kind: input, shape index: {}]
  %s11 = inlined_call_operand.hbm [shape: f32[64,128], index: 11, kind: output, shape index: {}]
  %s12 = sld [smem:[#allocation0]]
  $region78: #{tpu_custom_call.1} parent=0
    _
  %s14 = ssub.s32 1, %s12
  %s15 = scalar_select 0, %s14, %s12
  $region1: #{tpu_custom_call.1} parent=0
    #allocation3 [shape = 'u8[4096]{0}', space=vmem, size = 0x1000, scoped, tag = 'input window, operand 1, single buffered']
    #allocation4 [shape = 's32[1]{0}', space=sflag, size = 0x4, scoped, tag = 'scoped memory for tpu_custom_call.1']
    #allocation5 [shape = 's32[1]{0}', space=sflag, size = 0x4, scoped, tag = 'scoped memory for tpu_custom_call.1']
    #allocation6 [shape = 'u8[4096]{0}', space=vmem, size = 0x1000, scoped, tag = 'input window, operand 2, single buffered']
    #allocation7 [shape = 's32[1]{0}', space=sflag, size = 0x4, scoped, tag = 'scoped memory for tpu_custom_call.1']
    #allocation8 [shape = 'u8[1536]{0}', space=vmem, size = 0x800, scoped, tag = 'input window, operand 4, single buffered']
    #allocation9 [shape = 'u8[20480]{0}', space=vmem, size = 0x5000, scoped, tag = 'input window, operand 5, single buffered']
    #allocation10 [shape = 's32[1]{0}', space=sflag, size = 0x4, scoped, tag = 'scoped memory for tpu_custom_call.1']
    #allocation11 [shape = 'u8[20480]{0}', space=vmem, size = 0x5000, scoped, tag = 'input window, operand 6, single buffered']
    #allocation12 [shape = 'u8[8192]{0}', space=vmem, size = 0x2000, scoped, tag = 'input window, operand 8, single buffered']
    #allocation13 [shape = 's32[1]{0}', space=sflag, size = 0x4, scoped, tag = 'scoped memory for tpu_custom_call.1']
    #allocation14 [shape = 'u8[32768]{0}', space=vmem, size = 0x8000, scoped, tag = 'output window, operand 0, single buffered']
    %16 = vsyncpa [#allocation4], 0
    %17 = vsyncpa [#allocation7], 0
    %18 = vsyncpa [#allocation10], 0
    %19 = vsyncpa [#allocation13], 0
    %20 = vsyncpa [#allocation5], 0
    // Predicated region
    $region2: #{tpu_custom_call.1} parent=1 // pred_check
      _
    $region3: #{tpu_custom_call.1} parent=1 // pred_check_branch
      %22 = sbr.rel (0) target = $region5
    $region4: #{tpu_custom_call.1} parent=1 // pred_region
      _
    $region5: #{tpu_custom_call.1} parent=1 // pred_fallthru
      _
    // Predicated region
    $region6: #{tpu_custom_call.1} parent=1 // pred_check
      _
    $region7: #{tpu_custom_call.1} parent=1 // pred_check_branch
      %24 = sbr.rel (0) target = $region9
    $region8: #{tpu_custom_call.1} parent=1 // pred_region
      %s26 = ssub.s32 128, 128
      %27 = vsyncadd [#allocation4], %s26
      %s29 = sshll.u32 [#allocation3], 4
      %s30 = int_to_ptr.vmem [resolvable:$true] %s29
      %32 = dma.hbm_to_vmem [thread:$0]  %s1, 128, %s30, [#allocation4]
    $region9: #{tpu_custom_call.1} parent=1 // pred_fallthru
      _
    // Predicated region
    $region10: #{tpu_custom_call.1} parent=1 // pred_check
      _
    $region11: #{tpu_custom_call.1} parent=1 // pred_check_branch
      %34 = sbr.rel (0) target = $region13
    $region12: #{tpu_custom_call.1} parent=1 // pred_region
      %s36 = ssub.s32 128, 128
      %37 = vsyncadd [#allocation7], %s36
      %s39 = sshll.u32 [#allocation6], 4
      %s40 = int_to_ptr.vmem [resolvable:$true] %s39
      %42 = dma.hbm_to_vmem [thread:$0]  %s2, 128, %s40, [#allocation7]
    $region13: #{tpu_custom_call.1} parent=1 // pred_fallthru
      _
    // Predicated region
    $region14: #{tpu_custom_call.1} parent=1 // pred_check
      _
    $region15: #{tpu_custom_call.1} parent=1 // pred_check_branch
      %44 = sbr.rel (0) target = $region17
    $region16: #{tpu_custom_call.1} parent=1 // pred_region
      _
    $region17: #{tpu_custom_call.1} parent=1 // pred_fallthru
      _
    // Predicated region
    $region18: #{tpu_custom_call.1} parent=1 // pred_check
      _
    $region19: #{tpu_custom_call.1} parent=1 // pred_check_branch
      %46 = sbr.rel (0) target = $region21
    $region20: #{tpu_custom_call.1} parent=1 // pred_region
      %s48 = ssub.s32 48, 48
      %49 = vsyncadd [#allocation7], %s48
      %s51 = sshll.u32 [#allocation8], 4
      %s52 = int_to_ptr.vmem [resolvable:$true] %s51
      %54 = dma.hbm_to_vmem [thread:$0]  %s4, 48, %s52, [#allocation7]
    $region21: #{tpu_custom_call.1} parent=1 // pred_fallthru
      _
    // Predicated region
    $region22: #{tpu_custom_call.1} parent=1 // pred_check
      _
    $region23: #{tpu_custom_call.1} parent=1 // pred_check_branch
      %56 = sbr.rel (0) target = $region25
    $region24: #{tpu_custom_call.1} parent=1 // pred_region
      %s58 = ssub.s32 640, 640
      %59 = vsyncadd [#allocation10], %s58
      %s60 = sshll.u32 [#allocation9], 4
      %s61 = int_to_ptr.vmem [resolvable:$true] %s60
      %66 = dma.hbm_to_vmem [thread:$0]  %s5, 640, %s61, [#allocation10], 128, 128, 8
    $region25: #{tpu_custom_call.1} parent=1 // pred_fallthru
      _
    // Predicated region
    $region26: #{tpu_custom_call.1} parent=1 // pred_check
      _
    $region27: #{tpu_custom_call.1} parent=1 // pred_check_branch
      %68 = sbr.rel (0) target = $region29
    $region28: #{tpu_custom_call.1} parent=1 // pred_region
      %s70 = ssub.s32 640, 640
      %71 = vsyncadd [#allocation10], %s70
      %s72 = sshll.u32 [#allocation11], 4
      %s73 = int_to_ptr.vmem [resolvable:$true] %s72
      %78 = dma.hbm_to_vmem [thread:$0]  %s6, 640, %s73, [#allocation10], 128, 128, 8
    $region29: #{tpu_custom_call.1} parent=1 // pred_fallthru
      _
    // Predicated region
    $region30: #{tpu_custom_call.1} parent=1 // pred_check
      _
    $region31: #{tpu_custom_call.1} parent=1 // pred_check_branch
      %80 = sbr.rel (0) target = $region33
    $region32: #{tpu_custom_call.1} parent=1 // pred_region
      _
    $region33: #{tpu_custom_call.1} parent=1 // pred_fallthru
      _
    // Predicated region
    $region34: #{tpu_custom_call.1} parent=1 // pred_check
      _
    $region35: #{tpu_custom_call.1} parent=1 // pred_check_branch
      %82 = sbr.rel (0) target = $region37
    $region36: #{tpu_custom_call.1} parent=1 // pred_region
      %s84 = ssub.s32 256, 256
      %85 = vsyncadd [#allocation13], %s84
      %s87 = sshll.u32 [#allocation12], 4
      %s88 = int_to_ptr.vmem [resolvable:$true] %s87
      %90 = dma.hbm_to_vmem [thread:$0]  %s8, 256, %s88, [#allocation13]
    $region37: #{tpu_custom_call.1} parent=1 // pred_fallthru
      _
    // Predicated region
    $region38: #{tpu_custom_call.1} parent=1 // pred_check
      _
    $region39: #{tpu_custom_call.1} parent=1 // pred_check_branch
      %92 = sbr.rel (0) target = $region41
    $region40: #{tpu_custom_call.1} parent=1 // pred_region
      _
    $region41: #{tpu_custom_call.1} parent=1 // pred_fallthru
      _
    // Predicated region
    $region42: #{tpu_custom_call.1} parent=1 // pred_check
      _
    $region43: #{tpu_custom_call.1} parent=1 // pred_check_branch
      %94 = sbr.rel (0) target = $region45
    $region44: #{tpu_custom_call.1} parent=1 // pred_region
      _
    $region45: #{tpu_custom_call.1} parent=1 // pred_fallthru
      _
    // Predicated region
    $region46: #{tpu_custom_call.1} parent=1 // pred_check
      _
    $region47: #{tpu_custom_call.1} parent=1 // pred_check_branch
      %96 = sbr.rel (0) target = $region49
    $region48: #{tpu_custom_call.1} parent=1 // pred_region
      %97 = dma.done [#allocation4], 128
    $region49: #{tpu_custom_call.1} parent=1 // pred_fallthru
      _
    // Predicated region
    $region50: #{tpu_custom_call.1} parent=1 // pred_check
      _
    $region51: #{tpu_custom_call.1} parent=1 // pred_check_branch
      %99 = sbr.rel (0) target = $region53
    $region52: #{tpu_custom_call.1} parent=1 // pred_region
      %100 = dma.done [#allocation7], 128
    $region53: #{tpu_custom_call.1} parent=1 // pred_fallthru
      _
    // Predicated region
    $region54: #{tpu_custom_call.1} parent=1 // pred_check
      _
    $region55: #{tpu_custom_call.1} parent=1 // pred_check_branch
      %102 = sbr.rel (0) target = $region57
    $region56: #{tpu_custom_call.1} parent=1 // pred_region
      %103 = dma.done [#allocation7], 48
    $region57: #{tpu_custom_call.1} parent=1 // pred_fallthru
      _
    // Predicated region
    $region58: #{tpu_custom_call.1} parent=1 // pred_check
      _
    $region59: #{tpu_custom_call.1} parent=1 // pred_check_branch
      %105 = sbr.rel (0) target = $region61
    $region60: #{tpu_custom_call.1} parent=1 // pred_region
      %106 = dma.done [#allocation10], 640
    $region61: #{tpu_custom_call.1} parent=1 // pred_fallthru
      _
    // Predicated region
    $region62: #{tpu_custom_call.1} parent=1 // pred_check
      _
    $region63: #{tpu_custom_call.1} parent=1 // pred_check_branch
      %108 = sbr.rel (0) target = $region65
    $region64: #{tpu_custom_call.1} parent=1 // pred_region
      %109 = dma.done [#allocation10], 640
    $region65: #{tpu_custom_call.1} parent=1 // pred_fallthru
      _
    // Predicated region
    $region66: #{tpu_custom_call.1} parent=1 // pred_check
      _
    $region67: #{tpu_custom_call.1} parent=1 // pred_check_branch
      %111 = sbr.rel (0) target = $region69
    $region68: #{tpu_custom_call.1} parent=1 // pred_region
      %112 = dma.done [#allocation13], 256
    $region69: #{tpu_custom_call.1} parent=1 // pred_fallthru
      _
    %v113 = vld [vmem:[%s0] sm:$0xff]
    %v114 = vld [vmem:[%s0 + $0x8] sm:$0xff]
    %v115 = vld [vmem:[%s0 + $0x10] sm:$0xff]
    %v116 = vld [vmem:[%s0 + $0x18] sm:$0xff]
    %v117 = vld [vmem:[%s0 + $0x20] sm:$0xff]
    %v118 = vld [vmem:[%s0 + $0x28] sm:$0xff]
    %v119 = vld [vmem:[%s0 + $0x30] sm:$0xff]
    %v120 = vld [vmem:[%s0 + $0x38] sm:$0xff]
    %v121 = vld [vmem:[%s3] sm:$0xff]
    %v122 = vld [vmem:[%s3 + $0x8] sm:$0xff]
    %v123 = vld [vmem:[%s3 + $0x10] sm:$0xff]
    %v124 = vld [vmem:[%s3 + $0x18] sm:$0xff]
    %v125 = vld [vmem:[%s3 + $0x20] sm:$0xff]
    %v126 = vld [vmem:[%s3 + $0x28] sm:$0xff]
    %v127 = vld [vmem:[%s3 + $0x30] sm:$0x1]
    %v128 = vld [vmem:[%s3 + $0x38] sm:$0x1]
    %v129 = vld [vmem:[%s3 + $0x40] sm:$0x1]
    %v130 = vld [vmem:[#allocation8] sm:$0x7]
    %v132 = vlaneseq
    %v133 = vshrl.u32 %v132, 7
    %v134 = vsub.s32 0, %v133
    %v135 = vrot.slane %v130, %v134
    %v136 = vlaneseq
    %v137 = vshrl.u32 %v136, 7
    %v138 = vsub.s32 1, %v137
    %v139 = vrot.slane %v130, %v138
    %v140 = vlaneseq
    %v141 = vshrl.u32 %v140, 7
    %v142 = vsub.s32 2, %v141
    %v143 = vrot.slane %v130, %v142
    %vm147 = vcmask 138240
    %v149 = vsel %vm147, %v113, 0
    %v152 = vsel %vm147, %v114, 0
    %v155 = vsel %vm147, %v115, 0
    %v158 = vsel %vm147, %v116, 0
    %v161 = vsel %vm147, %v117, 0
    %v164 = vsel %vm147, %v118, 0
    %v167 = vsel %vm147, %v119, 0
    %v170 = vsel %vm147, %v120, 0
    %vm172 = vcmask 1040384
    %v174 = vsel %vm172, %v127, 0
    %v177 = vsel %vm172, %v128, 0
    %v180 = vsel %vm172, %v129, 0
    %182 = vmatprep.subr.mxu0 %v122
    %183 = vmatpush1.msra.mxu0 %v121
    %184 = vmatprep.subr.mxu0 %v125
    %185 = vmatpush1.msra.mxu0 %v124
    %186 = vmatprep.subr.mxu0 %v177
    %187 = vmatpush1.msra.mxu0 %v174
    %188 = vmatprep.subr.mxu0 0.0
    %189 = vmatpush1.msra.mxu0 0.0
    %190 = vmatprep.subr.mxu0 0.0
    %191 = vmatpush1.msra.mxu0 0.0
    %192 = vmatprep.subr.mxu0 0.0
    %193 = vmatpush1.msra.mxu0 0.0
    %194 = vmatprep.subr.mxu0 0.0
    %195 = vmatpush1.msra.mxu0 0.0
    %196 = vmatprep.subr.mxu0 0.0
    %197 = vmatpush1.msra.mxu0 0.0
    %198 = vmatprep.subr.mxu0 0.0
    %199 = vmatpush1.msra.mxu0 0.0
    %200 = vmatprep.subr.mxu0 0.0
    %201 = vmatpush1.msra.mxu0 0.0
    %202 = vmatprep.subr.mxu0 0.0
    %203 = vmatpush1.msra.mxu0 0.0
    %204 = vmatprep.subr.mxu0 0.0
    %205 = vmatpush1.msra.mxu0 0.0
    %206 = vmatprep.subr.mxu0 0.0
    %207 = vmatpush1.msra.mxu0 0.0
    %208 = vmatprep.subr.mxu0 0.0
    %209 = vmatpush1.msra.mxu0 0.0
    %210 = vmatprep.subr.mxu0 0.0
    %211 = vmatpush1.msra.mxu0 0.0
    %212 = vmatprep.subr.mxu0 0.0
    %213 = vmatpush1.msra.mxu0 0.0
    %214 = vmatprep.subr.mxu0 0.0
    %215 = vmatpush1.msra.mxu0 0.0
    %216 = vmatprep.subr.mxu0 0.0
    %217 = vmatpush1.msra.mxu0 0.0
    %218 = vmatprep.subr.mxu0 0.0
    %219 = vmatpush1.msra.mxu0 0.0
    %220 = vmatprep.subr.mxu0 0.0
    %221 = vmatpush1.msra.mxu0 0.0
    %222 = vmatprep.subr.mxu0 0.0
    %223 = vmatpush1.msra.mxu0 0.0
    %224 = vmatprep.subr.mxu0 0.0
    %225 = vmatpush1.msra.mxu0 0.0
    %226 = vmatprep.subr.mxu0 0.0
    %227 = vmatpush1.msra.mxu0 0.0
    %228 = vmatprep.subr.mxu0 0.0
    %229 = vmatpush1.msra.mxu0 0.0
    %230 = vmatprep.subr.mxu0 0.0
    %231 = vmatpush1.msra.mxu0 0.0
    %232 = vmatprep.subr.mxu0 0.0
    %233 = vmatpush1.msra.mxu0 0.0
    %234 = vmatprep.subr.mxu0 0.0
    %235 = vmatpush1.msra.mxu0 0.0
    %236 = vmatprep.subr.mxu0 0.0
    %237 = vmatpush1.msra.mxu0 0.0
    %238 = vmatprep.subr.mxu0 0.0
    %239 = vmatpush1.msra.mxu0 0.0
    %240 = vmatprep.subr.mxu0 0.0
    %241 = vmatpush1.msra.mxu0 0.0
    %242 = vmatprep.subr.mxu0 0.0
    %243 = vmatpush1.msra.mxu0 0.0
    %244 = vmatprep.subr.mxu0 0.0
    %245 = vmatpush1.msra.mxu0 0.0
    %246 = vmatprep.mubr.f32.mxu0 0.0
    %247 = vmatmul.mubr.f32.gmra.mrb[0].mxu0 %v149
    %v248 = vpop.f32.mrb[0].mxu0
    %v249 = vadd.f32 %v135, %v248
    %v250 = vpop.f32.mrb[0].mxu0
    %v251 = vadd.f32 %v139, %v250
    %252 = vmatprep.mubr.f32.mxu0 0.0
    %253 = vmatmul.mubr.f32.gmra.mrb[0].mxu0 %v152
    %v254 = vpop.f32.mrb[0].mxu0
    %v255 = vadd.f32 %v135, %v254
    %v256 = vpop.f32.mrb[0].mxu0
    %v257 = vadd.f32 %v139, %v256
    %258 = vmatprep.mubr.f32.mxu0 0.0
    %259 = vmatmul.mubr.f32.gmra.mrb[0].mxu0 %v155
    %v260 = vpop.f32.mrb[0].mxu0
    %v261 = vadd.f32 %v135, %v260
    %v262 = vpop.f32.mrb[0].mxu0
    %v263 = vadd.f32 %v139, %v262
    %264 = vmatprep.mubr.f32.mxu0 0.0
    %265 = vmatmul.mubr.f32.gmra.mrb[0].mxu0 %v158
    %v266 = vpop.f32.mrb[0].mxu0
    %v267 = vadd.f32 %v135, %v266
    %v268 = vpop.f32.mrb[0].mxu0
    %v269 = vadd.f32 %v139, %v268
    %270 = vmatprep.mubr.f32.mxu0 0.0
    %271 = vmatmul.mubr.f32.gmra.mrb[0].mxu0 %v161
    %v272 = vpop.f32.mrb[0].mxu0
    %v273 = vadd.f32 %v135, %v272
    %v274 = vpop.f32.mrb[0].mxu0
    %v275 = vadd.f32 %v139, %v274
    %276 = vmatprep.mubr.f32.mxu0 0.0
    %277 = vmatmul.mubr.f32.gmra.mrb[0].mxu0 %v164
    %v278 = vpop.f32.mrb[0].mxu0
    %v279 = vadd.f32 %v135, %v278
    %v280 = vpop.f32.mrb[0].mxu0
    %v281 = vadd.f32 %v139, %v280
    %282 = vmatprep.mubr.f32.mxu0 0.0
    %283 = vmatmul.mubr.f32.gmra.mrb[0].mxu0 %v167
    %v284 = vpop.f32.mrb[0].mxu0
    %v285 = vadd.f32 %v135, %v284
    %v286 = vpop.f32.mrb[0].mxu0
    %v287 = vadd.f32 %v139, %v286
    %288 = vmatprep.mubr.f32.mxu0 0.0
    %289 = vmatmul.mubr.f32.gmra.mrb[0].mxu0 %v170
    %v290 = vpop.f32.mrb[0].mxu0
    %v291 = vadd.f32 %v135, %v290
    %v292 = vpop.f32.mrb[0].mxu0
    %v293 = vadd.f32 %v139, %v292
    %294 = vdwg.mxu0
    %295 = vmatprep.subr.mxu0 0.0
    %296 = vmatpush1.msra.mxu0 %v123
    %297 = vmatprep.subr.mxu0 0.0
    %298 = vmatpush1.msra.mxu0 %v126
    %299 = vmatprep.subr.mxu0 0.0
    %300 = vmatpush1.msra.mxu0 %v180
    %301 = vmatprep.subr.mxu0 0.0
    %302 = vmatpush1.msra.mxu0 0.0
    %303 = vmatprep.subr.mxu0 0.0
    %304 = vmatpush1.msra.mxu0 0.0
    %305 = vmatprep.subr.mxu0 0.0
    %306 = vmatpush1.msra.mxu0 0.0
    %307 = vmatprep.subr.mxu0 0.0
    %308 = vmatpush1.msra.mxu0 0.0
    %309 = vmatprep.subr.mxu0 0.0
    %310 = vmatpush1.msra.mxu0 0.0
    %311 = vmatprep.subr.mxu0 0.0
    %312 = vmatpush1.msra.mxu0 0.0
    %313 = vmatprep.subr.mxu0 0.0
    %314 = vmatpush1.msra.mxu0 0.0
    %315 = vmatprep.subr.mxu0 0.0
    %316 = vmatpush1.msra.mxu0 0.0
    %317 = vmatprep.subr.mxu0 0.0
    %318 = vmatpush1.msra.mxu0 0.0
    %319 = vmatprep.subr.mxu0 0.0
    %320 = vmatpush1.msra.mxu0 0.0
    %321 = vmatprep.subr.mxu0 0.0
    %322 = vmatpush1.msra.mxu0 0.0
    %323 = vmatprep.subr.mxu0 0.0
    %324 = vmatpush1.msra.mxu0 0.0
    %325 = vmatprep.subr.mxu0 0.0
    %326 = vmatpush1.msra.mxu0 0.0
    %327 = vmatprep.subr.mxu0 0.0
    %328 = vmatpush1.msra.mxu0 0.0
    %329 = vmatprep.subr.mxu0 0.0
    %330 = vmatpush1.msra.mxu0 0.0
    %331 = vmatprep.subr.mxu0 0.0
    %332 = vmatpush1.msra.mxu0 0.0
    %333 = vmatprep.subr.mxu0 0.0
    %334 = vmatpush1.msra.mxu0 0.0
    %335 = vmatprep.subr.mxu0 0.0
    %336 = vmatpush1.msra.mxu0 0.0
    %337 = vmatprep.subr.mxu0 0.0
    %338 = vmatpush1.msra.mxu0 0.0
    %339 = vmatprep.subr.mxu0 0.0
    %340 = vmatpush1.msra.mxu0 0.0
    %341 = vmatprep.subr.mxu0 0.0
    %342 = vmatpush1.msra.mxu0 0.0
    %343 = vmatprep.subr.mxu0 0.0
    %344 = vmatpush1.msra.mxu0 0.0
    %345 = vmatprep.subr.mxu0 0.0
    %346 = vmatpush1.msra.mxu0 0.0
    %347 = vmatprep.subr.mxu0 0.0
    %348 = vmatpush1.msra.mxu0 0.0
    %349 = vmatprep.subr.mxu0 0.0
    %350 = vmatpush1.msra.mxu0 0.0
    %351 = vmatprep.subr.mxu0 0.0
    %352 = vmatpush1.msra.mxu0 0.0
    %353 = vmatprep.subr.mxu0 0.0
    %354 = vmatpush1.msra.mxu0 0.0
    %355 = vmatprep.subr.mxu0 0.0
    %356 = vmatpush1.msra.mxu0 0.0
    %357 = vmatprep.subr.mxu0 0.0
    %358 = vmatpush1.msra.mxu0 0.0
    %359 = vmatprep.mubr.f32.mxu0 0.0
    %360 = vmatmul.mubr.f32.gmra.mrb[0].mxu0 %v149
    %v361 = vpop.f32.mrb[0].mxu0
    %v362 = vadd.f32 %v143, %v361
    %v363 = vpop.f32.mrb[0].mxu0
    %364 = vmatprep.mubr.f32.mxu0 0.0
    %365 = vmatmul.mubr.f32.gmra.mrb[0].mxu0 %v152
    %v366 = vpop.f32.mrb[0].mxu0
    %v367 = vadd.f32 %v143, %v366
    %v368 = vpop.f32.mrb[0].mxu0
    %369 = vmatprep.mubr.f32.mxu0 0.0
    %370 = vmatmul.mubr.f32.gmra.mrb[0].mxu0 %v155
    %v371 = vpop.f32.mrb[0].mxu0
    %v372 = vadd.f32 %v143, %v371
    %v373 = vpop.f32.mrb[0].mxu0
    %374 = vmatprep.mubr.f32.mxu0 0.0
    %375 = vmatmul.mubr.f32.gmra.mrb[0].mxu0 %v158
    %v376 = vpop.f32.mrb[0].mxu0
    %v377 = vadd.f32 %v143, %v376
    %v378 = vpop.f32.mrb[0].mxu0
    %379 = vmatprep.mubr.f32.mxu0 0.0
    %380 = vmatmul.mubr.f32.gmra.mrb[0].mxu0 %v161
    %v381 = vpop.f32.mrb[0].mxu0
    %v382 = vadd.f32 %v143, %v381
    %v383 = vpop.f32.mrb[0].mxu0
    %384 = vmatprep.mubr.f32.mxu0 0.0
    %385 = vmatmul.mubr.f32.gmra.mrb[0].mxu0 %v164
    %v386 = vpop.f32.mrb[0].mxu0
    %v387 = vadd.f32 %v143, %v386
    %v388 = vpop.f32.mrb[0].mxu0
    %389 = vmatprep.mubr.f32.mxu0 0.0
    %390 = vmatmul.mubr.f32.gmra.mrb[0].mxu0 %v167
    %v391 = vpop.f32.mrb[0].mxu0
    %v392 = vadd.f32 %v143, %v391
    %v393 = vpop.f32.mrb[0].mxu0
    %394 = vmatprep.mubr.f32.mxu0 0.0
    %395 = vmatmul.mubr.f32.gmra.mrb[0].mxu0 %v170
    %v396 = vpop.f32.mrb[0].mxu0
    %v397 = vadd.f32 %v143, %v396
    %v398 = vpop.f32.mrb[0].mxu0
    %399 = vdwg.mxu0
    %400 = vst [vmem:[#allocation2] sm:$0xff] %v249
    %401 = vst [vmem:[#allocation2 + $0x8] sm:$0xff] %v251
    %402 = vst [vmem:[#allocation2 + $0x10] sm:$0xff] %v362
    %403 = vst [vmem:[#allocation2 + $0x18] sm:$0xff] %v255
    %404 = vst [vmem:[#allocation2 + $0x20] sm:$0xff] %v257
    %405 = vst [vmem:[#allocation2 + $0x28] sm:$0xff] %v367
    %406 = vst [vmem:[#allocation2 + $0x30] sm:$0xff] %v261
    %407 = vst [vmem:[#allocation2 + $0x38] sm:$0xff] %v263
    %408 = vst [vmem:[#allocation2 + $0x40] sm:$0xff] %v372
    %409 = vst [vmem:[#allocation2 + $0x48] sm:$0xff] %v267
    %410 = vst [vmem:[#allocation2 + $0x50] sm:$0xff] %v269
    %411 = vst [vmem:[#allocation2 + $0x58] sm:$0xff] %v377
    %412 = vst [vmem:[#allocation2 + $0x60] sm:$0xff] %v273
    %413 = vst [vmem:[#allocation2 + $0x68] sm:$0xff] %v275
    %414 = vst [vmem:[#allocation2 + $0x70] sm:$0xff] %v382
    %415 = vst [vmem:[#allocation2 + $0x78] sm:$0xff] %v279
    %416 = vst [vmem:[#allocation2 + $0x80] sm:$0xff] %v281
    %417 = vst [vmem:[#allocation2 + $0x88] sm:$0xff] %v387
    %418 = vst [vmem:[#allocation2 + $0x90] sm:$0xff] %v285
    %419 = vst [vmem:[#allocation2 + $0x98] sm:$0xff] %v287
    %420 = vst [vmem:[#allocation2 + $0xa0] sm:$0xff] %v392
    %421 = vst [vmem:[#allocation2 + $0xa8] sm:$0xff] %v291
    %422 = vst [vmem:[#allocation2 + $0xb0] sm:$0xff] %v293
    %423 = vst [vmem:[#allocation2 + $0xb8] sm:$0xff] %v397
    %v424 = vld [vmem:[#allocation9] sm:$0xff]
    %v425 = vld [vmem:[#allocation9 + $0x8] sm:$0xff]
    %v426 = vld [vmem:[#allocation9 + $0x10] sm:$0xff]
    %v427 = vld [vmem:[#allocation9 + $0x18] sm:$0xff]
    %v428 = vld [vmem:[#allocation9 + $0x20] sm:$0xff]
    %v429 = vld [vmem:[#allocation11] sm:$0xff]
    %v430 = vld [vmem:[#allocation11 + $0x8] sm:$0xff]
    %v431 = vld [vmem:[#allocation11 + $0x10] sm:$0xff]
    %v432 = vld [vmem:[#allocation11 + $0x18] sm:$0xff]
    %v433 = vld [vmem:[#allocation11 + $0x20] sm:$0xff]
    %v434 = vld [vmem:[%s7] sm:$0xff]
    %v435 = vld [vmem:[%s7 + $0x8] sm:$0xff]
    %v436 = vld [vmem:[%s7 + $0x10] sm:$0xff]
    %v437 = vld [vmem:[%s7 + $0x18] sm:$0xff]
    %v438 = vld [vmem:[%s7 + $0x20] sm:$0xff]
    %v439 = vld [vmem:[#allocation12] sm:$0xff]
    %v440 = vld [vmem:[#allocation12 + $0x8] sm:$0xff]
    %v441 = vld [vmem:[%s9] sm:$0xff]
    %v442 = vld [vmem:[%s9 + $0x8] sm:$0xff]
    %v443 = vld [vmem:[%s9 + $0x10] sm:$0xff]
    %v444 = vld [vmem:[%s9 + $0x18] sm:$0xff]
    %v445 = vld [vmem:[%s9 + $0x20] sm:$0xff]
    %v446 = vld [vmem:[%s9 + $0x28] sm:$0xff]
    %v447 = vld [vmem:[%s9 + $0x30] sm:$0xff]
    %v448 = vld [vmem:[%s9 + $0x38] sm:$0xff]
    %v449 = vld [vmem:[%s9 + $0x40] sm:$0xff]
    %v450 = vld [vmem:[%s9 + $0x48] sm:$0xff]
    %v451 = vld [vmem:[%s10] sm:$0x3]
    %v453 = vlaneseq
    %v454 = vshrl.u32 %v453, 7
    %v455 = vsub.s32 0, %v454
    %v456 = vrot.slane %v451, %v455
    %v457 = vlaneseq
    %v458 = vshrl.u32 %v457, 7
    %v459 = vsub.s32 1, %v458
    %v460 = vrot.slane %v451, %v459
    %v463 = vld [vmem:[#allocation3] sm:$0xff]
    %v464 = vld [vmem:[#allocation6] sm:$0xff]
    %s465 = smul.u32 0, 3
    %s466 = smul.addr %s465, 8
    %s467 = scalar_lea.vmem [#allocation2], %s466
    %v468 = vld [vmem:[%s467] sm:$0xff]
    %v469 = vld [vmem:[%s467 + $0x8] sm:$0xff]
    %v470 = vld [vmem:[%s467 + $0x10] sm:$0xff]
    %vm471 = vcmask 326656
    %v473 = vsel %vm471, %v463, 0
    %475 = vmatprep.subr.mxu0 0.0
    %476 = vmatpush1.msra.mxu0 %v424
    %477 = vmatprep.subr.mxu0 0.0
    %478 = vmatpush1.msra.mxu0 %v425
    %479 = vmatprep.subr.mxu0 0.0
    %480 = vmatpush1.msra.mxu0 %v426
    %481 = vmatprep.subr.mxu0 0.0
    %482 = vmatpush1.msra.mxu0 %v427
    %483 = vmatprep.subr.mxu0 0.0
    %484 = vmatpush1.msra.mxu0 %v428
    %485 = vmatprep.subr.mxu0 0.0
    %486 = vmatpush1.msra.mxu0 0.0
    %487 = vmatprep.subr.mxu0 0.0
    %488 = vmatpush1.msra.mxu0 0.0
    %489 = vmatprep.subr.mxu0 0.0
    %490 = vmatpush1.msra.mxu0 0.0
    %491 = vmatprep.subr.mxu0 0.0
    %492 = vmatpush1.msra.mxu0 0.0
    %493 = vmatprep.subr.mxu0 0.0
    %494 = vmatpush1.msra.mxu0 0.0
    %495 = vmatprep.subr.mxu0 0.0
    %496 = vmatpush1.msra.mxu0 0.0
    %497 = vmatprep.subr.mxu0 0.0
    %498 = vmatpush1.msra.mxu0 0.0
    %499 = vmatprep.subr.mxu0 0.0
    %500 = vmatpush1.msra.mxu0 0.0
    %501 = vmatprep.subr.mxu0 0.0
    %502 = vmatpush1.msra.mxu0 0.0
    %503 = vmatprep.subr.mxu0 0.0
    %504 = vmatpush1.msra.mxu0 0.0
    %505 = vmatprep.subr.mxu0 0.0
    %506 = vmatpush1.msra.mxu0 0.0
    %507 = vmatprep.subr.mxu0 0.0
    %508 = vmatpush1.msra.mxu0 0.0
    %509 = vmatprep.subr.mxu0 0.0
    %510 = vmatpush1.msra.mxu0 0.0
    %511 = vmatprep.subr.mxu0 0.0
    %512 = vmatpush1.msra.mxu0 0.0
    %513 = vmatprep.subr.mxu0 0.0
    %514 = vmatpush1.msra.mxu0 0.0
    %515 = vmatprep.subr.mxu0 0.0
    %516 = vmatpush1.msra.mxu0 0.0
    %517 = vmatprep.subr.mxu0 0.0
    %518 = vmatpush1.msra.mxu0 0.0
    %519 = vmatprep.subr.mxu0 0.0
    %520 = vmatpush1.msra.mxu0 0.0
    %521 = vmatprep.subr.mxu0 0.0
    %522 = vmatpush1.msra.mxu0 0.0
    %523 = vmatprep.subr.mxu0 0.0
    %524 = vmatpush1.msra.mxu0 0.0
    %525 = vmatprep.subr.mxu0 0.0
    %526 = vmatpush1.msra.mxu0 0.0
    %527 = vmatprep.subr.mxu0 0.0
    %528 = vmatpush1.msra.mxu0 0.0
    %529 = vmatprep.subr.mxu0 0.0
    %530 = vmatpush1.msra.mxu0 0.0
    %531 = vmatprep.subr.mxu0 0.0
    %532 = vmatpush1.msra.mxu0 0.0
    %533 = vmatprep.subr.mxu0 0.0
    %534 = vmatpush1.msra.mxu0 0.0
    %535 = vmatprep.subr.mxu0 0.0
    %536 = vmatpush1.msra.mxu0 0.0
    %537 = vmatprep.subr.mxu0 0.0
    %538 = vmatpush1.msra.mxu0 0.0
    %539 = vmatprep.mubr.f32.mxu0 0.0
    %540 = vmatmul.mubr.f32.gmra.mrb[0].mxu0 %v473
    %v541 = vpop.f32.mrb[0].mxu0
    %v542 = vadd.f32 0.0, %v541
    %v543 = vpop.f32.mrb[0].mxu0
    %544 = vdwg.mxu0
    %v546 = vsel %vm471, %v464, 0
    %548 = vmatprep.subr.mxu0 0.0
    %549 = vmatpush1.msra.mxu0 %v429
    %550 = vmatprep.subr.mxu0 0.0
    %551 = vmatpush1.msra.mxu0 %v430
    %552 = vmatprep.subr.mxu0 0.0
    %553 = vmatpush1.msra.mxu0 %v431
    %554 = vmatprep.subr.mxu0 0.0
    %555 = vmatpush1.msra.mxu0 %v432
    %556 = vmatprep.subr.mxu0 0.0
    %557 = vmatpush1.msra.mxu0 %v433
    %558 = vmatprep.subr.mxu0 0.0
    %559 = vmatpush1.msra.mxu0 0.0
    %560 = vmatprep.subr.mxu0 0.0
    %561 = vmatpush1.msra.mxu0 0.0
    %562 = vmatprep.subr.mxu0 0.0
    %563 = vmatpush1.msra.mxu0 0.0
    %564 = vmatprep.subr.mxu0 0.0
    %565 = vmatpush1.msra.mxu0 0.0
    %566 = vmatprep.subr.mxu0 0.0
    %567 = vmatpush1.msra.mxu0 0.0
    %568 = vmatprep.subr.mxu0 0.0
    %569 = vmatpush1.msra.mxu0 0.0
    %570 = vmatprep.subr.mxu0 0.0
    %571 = vmatpush1.msra.mxu0 0.0
    %572 = vmatprep.subr.mxu0 0.0
    %573 = vmatpush1.msra.mxu0 0.0
    %574 = vmatprep.subr.mxu0 0.0
    %575 = vmatpush1.msra.mxu0 0.0
    %576 = vmatprep.subr.mxu0 0.0
    %577 = vmatpush1.msra.mxu0 0.0
    %578 = vmatprep.subr.mxu0 0.0
    %579 = vmatpush1.msra.mxu0 0.0
    %580 = vmatprep.subr.mxu0 0.0
    %581 = vmatpush1.msra.mxu0 0.0
    %582 = vmatprep.subr.mxu0 0.0
    %583 = vmatpush1.msra.mxu0 0.0
    %584 = vmatprep.subr.mxu0 0.0
    %585 = vmatpush1.msra.mxu0 0.0
    %586 = vmatprep.subr.mxu0 0.0
    %587 = vmatpush1.msra.mxu0 0.0
    %588 = vmatprep.subr.mxu0 0.0
    %589 = vmatpush1.msra.mxu0 0.0
    %590 = vmatprep.subr.mxu0 0.0
    %591 = vmatpush1.msra.mxu0 0.0
    %592 = vmatprep.subr.mxu0 0.0
    %593 = vmatpush1.msra.mxu0 0.0
    %594 = vmatprep.subr.mxu0 0.0
    %595 = vmatpush1.msra.mxu0 0.0
    %596 = vmatprep.subr.mxu0 0.0
    %597 = vmatpush1.msra.mxu0 0.0
    %598 = vmatprep.subr.mxu0 0.0
    %599 = vmatpush1.msra.mxu0 0.0
    %600 = vmatprep.subr.mxu0 0.0
    %601 = vmatpush1.msra.mxu0 0.0
    %602 = vmatprep.subr.mxu0 0.0
    %603 = vmatpush1.msra.mxu0 0.0
    %604 = vmatprep.subr.mxu0 0.0
    %605 = vmatpush1.msra.mxu0 0.0
    %606 = vmatprep.subr.mxu0 0.0
    %607 = vmatpush1.msra.mxu0 0.0
    %608 = vmatprep.subr.mxu0 0.0
    %609 = vmatpush1.msra.mxu0 0.0
    %610 = vmatprep.subr.mxu0 0.0
    %611 = vmatpush1.msra.mxu0 0.0
    %612 = vmatprep.mubr.f32.mxu0 0.0
    %613 = vmatmul.mubr.f32.gmra.mrb[0].mxu0 %v546
    %v614 = vpop.f32.mrb[0].mxu0
    %v615 = vadd.f32 0.0, %v614
    %v616 = vpop.f32.mrb[0].mxu0
    %617 = vdwg.mxu0
    %v618 = vadd.f32 %v468, 0.0
    %v619 = vadd.f32 %v618, %v542
    %v620 = vmax.f32 %v619, 0.0
    %v621 = vtanh.pop %v620
    %v623 = vsel %vm471, %v621, 0
    %625 = vmatprep.subr.mxu0 0.0
    %626 = vmatpush1.msra.mxu0 %v434
    %627 = vmatprep.subr.mxu0 0.0
    %628 = vmatpush1.msra.mxu0 %v435
    %629 = vmatprep.subr.mxu0 0.0
    %630 = vmatpush1.msra.mxu0 %v436
    %631 = vmatprep.subr.mxu0 0.0
    %632 = vmatpush1.msra.mxu0 %v437
    %633 = vmatprep.subr.mxu0 0.0
    %634 = vmatpush1.msra.mxu0 %v438
    %635 = vmatprep.subr.mxu0 0.0
    %636 = vmatpush1.msra.mxu0 0.0
    %637 = vmatprep.subr.mxu0 0.0
    %638 = vmatpush1.msra.mxu0 0.0
    %639 = vmatprep.subr.mxu0 0.0
    %640 = vmatpush1.msra.mxu0 0.0
    %641 = vmatprep.subr.mxu0 0.0
    %642 = vmatpush1.msra.mxu0 0.0
    %643 = vmatprep.subr.mxu0 0.0
    %644 = vmatpush1.msra.mxu0 0.0
    %645 = vmatprep.subr.mxu0 0.0
    %646 = vmatpush1.msra.mxu0 0.0
    %647 = vmatprep.subr.mxu0 0.0
    %648 = vmatpush1.msra.mxu0 0.0
    %649 = vmatprep.subr.mxu0 0.0
    %650 = vmatpush1.msra.mxu0 0.0
    %651 = vmatprep.subr.mxu0 0.0
    %652 = vmatpush1.msra.mxu0 0.0
    %653 = vmatprep.subr.mxu0 0.0
    %654 = vmatpush1.msra.mxu0 0.0
    %655 = vmatprep.subr.mxu0 0.0
    %656 = vmatpush1.msra.mxu0 0.0
    %657 = vmatprep.subr.mxu0 0.0
    %658 = vmatpush1.msra.mxu0 0.0
    %659 = vmatprep.subr.mxu0 0.0
    %660 = vmatpush1.msra.mxu0 0.0
    %661 = vmatprep.subr.mxu0 0.0
    %662 = vmatpush1.msra.mxu0 0.0
    %663 = vmatprep.subr.mxu0 0.0
    %664 = vmatpush1.msra.mxu0 0.0
    %665 = vmatprep.subr.mxu0 0.0
    %666 = vmatpush1.msra.mxu0 0.0
    %667 = vmatprep.subr.mxu0 0.0
    %668 = vmatpush1.msra.mxu0 0.0
    %669 = vmatprep.subr.mxu0 0.0
    %670 = vmatpush1.msra.mxu0 0.0
    %671 = vmatprep.subr.mxu0 0.0
    %672 = vmatpush1.msra.mxu0 0.0
    %673 = vmatprep.subr.mxu0 0.0
    %674 = vmatpush1.msra.mxu0 0.0
    %675 = vmatprep.subr.mxu0 0.0
    %676 = vmatpush1.msra.mxu0 0.0
    %677 = vmatprep.subr.mxu0 0.0
    %678 = vmatpush1.msra.mxu0 0.0
    %679 = vmatprep.subr.mxu0 0.0
    %680 = vmatpush1.msra.mxu0 0.0
    %681 = vmatprep.subr.mxu0 0.0
    %682 = vmatpush1.msra.mxu0 0.0
    %683 = vmatprep.subr.mxu0 0.0
    %684 = vmatpush1.msra.mxu0 0.0
    %685 = vmatprep.subr.mxu0 0.0
    %686 = vmatpush1.msra.mxu0 0.0
    %687 = vmatprep.subr.mxu0 0.0
    %688 = vmatpush1.msra.mxu0 0.0
    %689 = vmatprep.mubr.f32.mxu0 0.0
    %690 = vmatmul.mubr.f32.gmra.mrb[0].mxu0 %v623
    %v691 = vpop.f32.mrb[0].mxu0
    %v692 = vadd.f32 %v469, %v691
    %v693 = vpop.f32.mrb[0].mxu0
    %694 = vdwg.mxu0
    %v695 = vadd.f32 %v692, 0.0
    %v696 = vmax.f32 %v695, 0.0
    %v697 = vtanh.pop %v696
    %vm698 = vcmask 64512
    %v700 = vsel %vm698, %v697, 0
    %702 = vmatprep.subr.mxu0 %v440
    %703 = vmatpush1.msra.mxu0 %v439
    %704 = vmatprep.subr.mxu0 0.0
    %705 = vmatpush1.msra.mxu0 0.0
    %706 = vmatprep.subr.mxu0 0.0
    %707 = vmatpush1.msra.mxu0 0.0
    %708 = vmatprep.subr.mxu0 0.0
    %709 = vmatpush1.msra.mxu0 0.0
    %710 = vmatprep.subr.mxu0 0.0
    %711 = vmatpush1.msra.mxu0 0.0
    %712 = vmatprep.subr.mxu0 0.0
    %713 = vmatpush1.msra.mxu0 0.0
    %714 = vmatprep.subr.mxu0 0.0
    %715 = vmatpush1.msra.mxu0 0.0
    %716 = vmatprep.subr.mxu0 0.0
    %717 = vmatpush1.msra.mxu0 0.0
    %718 = vmatprep.subr.mxu0 0.0
    %719 = vmatpush1.msra.mxu0 0.0
    %720 = vmatprep.subr.mxu0 0.0
    %721 = vmatpush1.msra.mxu0 0.0
    %722 = vmatprep.subr.mxu0 0.0
    %723 = vmatpush1.msra.mxu0 0.0
    %724 = vmatprep.subr.mxu0 0.0
    %725 = vmatpush1.msra.mxu0 0.0
    %726 = vmatprep.subr.mxu0 0.0
    %727 = vmatpush1.msra.mxu0 0.0
    %728 = vmatprep.subr.mxu0 0.0
    %729 = vmatpush1.msra.mxu0 0.0
    %730 = vmatprep.subr.mxu0 0.0
    %731 = vmatpush1.msra.mxu0 0.0
    %732 = vmatprep.subr.mxu0 0.0
    %733 = vmatpush1.msra.mxu0 0.0
    %734 = vmatprep.subr.mxu0 0.0
    %735 = vmatpush1.msra.mxu0 0.0
    %736 = vmatprep.subr.mxu0 0.0
    %737 = vmatpush1.msra.mxu0 0.0
    %738 = vmatprep.subr.mxu0 0.0
    %739 = vmatpush1.msra.mxu0 0.0
    %740 = vmatprep.subr.mxu0 0.0
    %741 = vmatpush1.msra.mxu0 0.0
    %742 = vmatprep.subr.mxu0 0.0
    %743 = vmatpush1.msra.mxu0 0.0
    %744 = vmatprep.subr.mxu0 0.0
    %745 = vmatpush1.msra.mxu0 0.0
    %746 = vmatprep.subr.mxu0 0.0
    %747 = vmatpush1.msra.mxu0 0.0
    %748 = vmatprep.subr.mxu0 0.0
    %749 = vmatpush1.msra.mxu0 0.0
    %750 = vmatprep.subr.mxu0 0.0
    %751 = vmatpush1.msra.mxu0 0.0
    %752 = vmatprep.subr.mxu0 0.0
    %753 = vmatpush1.msra.mxu0 0.0
    %754 = vmatprep.subr.mxu0 0.0
    %755 = vmatpush1.msra.mxu0 0.0
    %756 = vmatprep.subr.mxu0 0.0
    %757 = vmatpush1.msra.mxu0 0.0
    %758 = vmatprep.subr.mxu0 0.0
    %759 = vmatpush1.msra.mxu0 0.0
    %760 = vmatprep.subr.mxu0 0.0
    %761 = vmatpush1.msra.mxu0 0.0
    %762 = vmatprep.subr.mxu0 0.0
    %763 = vmatpush1.msra.mxu0 0.0
    %764 = vmatprep.subr.mxu0 0.0
    %765 = vmatpush1.msra.mxu0 0.0
    %766 = vmatprep.mubr.f32.mxu0 0.0
    %767 = vmatmul.mubr.f32.gmra.mrb[0].mxu0 %v700
    %v768 = vpop.f32.mrb[0].mxu0
    %v769 = vadd.f32 0.0, %v768
    %v770 = vpop.f32.mrb[0].mxu0
    %v771 = vadd.f32 0.0, %v770
    %772 = vdwg.mxu0
    %v773 = vadd.f32 %v769, %v470
    %v774 = vadd.f32 %v773, %v615
    %v775 = vmax.f32 %v774, 0.0
    %v776 = vtanh.pop %v775
    %v778 = vsel %vm471, %v776, 0
    %780 = vmatprep.subr.mxu0 %v442
    %781 = vmatpush1.msra.mxu0 %v441
    %782 = vmatprep.subr.mxu0 %v444
    %783 = vmatpush1.msra.mxu0 %v443
    %784 = vmatprep.subr.mxu0 %v446
    %785 = vmatpush1.msra.mxu0 %v445
    %786 = vmatprep.subr.mxu0 %v448
    %787 = vmatpush1.msra.mxu0 %v447
    %788 = vmatprep.subr.mxu0 %v450
    %789 = vmatpush1.msra.mxu0 %v449
    %790 = vmatprep.subr.mxu0 0.0
    %791 = vmatpush1.msra.mxu0 0.0
    %792 = vmatprep.subr.mxu0 0.0
    %793 = vmatpush1.msra.mxu0 0.0
    %794 = vmatprep.subr.mxu0 0.0
    %795 = vmatpush1.msra.mxu0 0.0
    %796 = vmatprep.subr.mxu0 0.0
    %797 = vmatpush1.msra.mxu0 0.0
    %798 = vmatprep.subr.mxu0 0.0
    %799 = vmatpush1.msra.mxu0 0.0
    %800 = vmatprep.subr.mxu0 0.0
    %801 = vmatpush1.msra.mxu0 0.0
    %802 = vmatprep.subr.mxu0 0.0
    %803 = vmatpush1.msra.mxu0 0.0
    %804 = vmatprep.subr.mxu0 0.0
    %805 = vmatpush1.msra.mxu0 0.0
    %806 = vmatprep.subr.mxu0 0.0
    %807 = vmatpush1.msra.mxu0 0.0
    %808 = vmatprep.subr.mxu0 0.0
    %809 = vmatpush1.msra.mxu0 0.0
    %810 = vmatprep.subr.mxu0 0.0
    %811 = vmatpush1.msra.mxu0 0.0
    %812 = vmatprep.subr.mxu0 0.0
    %813 = vmatpush1.msra.mxu0 0.0
    %814 = vmatprep.subr.mxu0 0.0
    %815 = vmatpush1.msra.mxu0 0.0
    %816 = vmatprep.subr.mxu0 0.0
    %817 = vmatpush1.msra.mxu0 0.0
    %818 = vmatprep.subr.mxu0 0.0
    %819 = vmatpush1.msra.mxu0 0.0
    %820 = vmatprep.subr.mxu0 0.0
    %821 = vmatpush1.msra.mxu0 0.0
    %822 = vmatprep.subr.mxu0 0.0
    %823 = vmatpush1.msra.mxu0 0.0
    %824 = vmatprep.subr.mxu0 0.0
    %825 = vmatpush1.msra.mxu0 0.0
    %826 = vmatprep.subr.mxu0 0.0
    %827 = vmatpush1.msra.mxu0 0.0
    %828 = vmatprep.subr.mxu0 0.0
    %829 = vmatpush1.msra.mxu0 0.0
    %830 = vmatprep.subr.mxu0 0.0
    %831 = vmatpush1.msra.mxu0 0.0
    %832 = vmatprep.subr.mxu0 0.0
    %833 = vmatpush1.msra.mxu0 0.0
    %834 = vmatprep.subr.mxu0 0.0
    %835 = vmatpush1.msra.mxu0 0.0
    %836 = vmatprep.subr.mxu0 0.0
    %837 = vmatpush1.msra.mxu0 0.0
    %838 = vmatprep.subr.mxu0 0.0
    %839 = vmatpush1.msra.mxu0 0.0
    %840 = vmatprep.subr.mxu0 0.0
    %841 = vmatpush1.msra.mxu0 0.0
    %842 = vmatprep.subr.mxu0 0.0
    %843 = vmatpush1.msra.mxu0 0.0
    %844 = vmatprep.mubr.f32.mxu0 0.0
    %845 = vmatmul.mubr.f32.gmra.mrb[0].mxu0 %v778
    %v846 = vpop.f32.mrb[0].mxu0
    %v847 = vadd.f32 %v456, %v846
    %v848 = vpop.f32.mrb[0].mxu0
    %v849 = vadd.f32 %v460, %v848
    %850 = vdwg.mxu0
    %851 = vst [vmem:[#allocation14] sm:$0xff] %v847
    %s852 = smul.u32 1, 3
    %s853 = smul.addr %s852, 8
    %s854 = scalar_lea.vmem [#allocation2], %s853
    %v855 = vld [vmem:[%s854] sm:$0xff]
    %v856 = vld [vmem:[%s854 + $0x8] sm:$0xff]
    %v857 = vld [vmem:[%s854 + $0x10] sm:$0xff]
    %858 = vmatprep.subr.mxu0 0.0
    %859 = vmatpush1.msra.mxu0 %v424
    %860 = vmatprep.subr.mxu0 0.0
    %861 = vmatpush1.msra.mxu0 %v425
    %862 = vmatprep.subr.mxu0 0.0
    %863 = vmatpush1.msra.mxu0 %v426
    %864 = vmatprep.subr.mxu0 0.0
    %865 = vmatpush1.msra.mxu0 %v427
    %866 = vmatprep.subr.mxu0 0.0
    %867 = vmatpush1.msra.mxu0 %v428
    %868 = vmatprep.subr.mxu0 0.0
    %869 = vmatpush1.msra.mxu0 0.0
    %870 = vmatprep.subr.mxu0 0.0
    %871 = vmatpush1.msra.mxu0 0.0
    %872 = vmatprep.subr.mxu0 0.0
    %873 = vmatpush1.msra.mxu0 0.0
    %874 = vmatprep.subr.mxu0 0.0
    %875 = vmatpush1.msra.mxu0 0.0
    %876 = vmatprep.subr.mxu0 0.0
    %877 = vmatpush1.msra.mxu0 0.0
    %878 = vmatprep.subr.mxu0 0.0
    %879 = vmatpush1.msra.mxu0 0.0
    %880 = vmatprep.subr.mxu0 0.0
    %881 = vmatpush1.msra.mxu0 0.0
    %882 = vmatprep.subr.mxu0 0.0
    %883 = vmatpush1.msra.mxu0 0.0
    %884 = vmatprep.subr.mxu0 0.0
    %885 = vmatpush1.msra.mxu0 0.0
    %886 = vmatprep.subr.mxu0 0.0
    %887 = vmatpush1.msra.mxu0 0.0
    %888 = vmatprep.subr.mxu0 0.0
    %889 = vmatpush1.msra.mxu0 0.0
    %890 = vmatprep.subr.mxu0 0.0
    %891 = vmatpush1.msra.mxu0 0.0
    %892 = vmatprep.subr.mxu0 0.0
    %893 = vmatpush1.msra.mxu0 0.0
    %894 = vmatprep.subr.mxu0 0.0
    %895 = vmatpush1.msra.mxu0 0.0
    %896 = vmatprep.subr.mxu0 0.0
    %897 = vmatpush1.msra.mxu0 0.0
    %898 = vmatprep.subr.mxu0 0.0
    %899 = vmatpush1.msra.mxu0 0.0
    %900 = vmatprep.subr.mxu0 0.0
    %901 = vmatpush1.msra.mxu0 0.0
    %902 = vmatprep.subr.mxu0 0.0
    %903 = vmatpush1.msra.mxu0 0.0
    %904 = vmatprep.subr.mxu0 0.0
    %905 = vmatpush1.msra.mxu0 0.0
    %906 = vmatprep.subr.mxu0 0.0
    %907 = vmatpush1.msra.mxu0 0.0
    %908 = vmatprep.subr.mxu0 0.0
    %909 = vmatpush1.msra.mxu0 0.0
    %910 = vmatprep.subr.mxu0 0.0
    %911 = vmatpush1.msra.mxu0 0.0
    %912 = vmatprep.subr.mxu0 0.0
    %913 = vmatpush1.msra.mxu0 0.0
    %914 = vmatprep.subr.mxu0 0.0
    %915 = vmatpush1.msra.mxu0 0.0
    %916 = vmatprep.subr.mxu0 0.0
    %917 = vmatpush1.msra.mxu0 0.0
    %918 = vmatprep.subr.mxu0 0.0
    %919 = vmatpush1.msra.mxu0 0.0
    %920 = vmatprep.subr.mxu0 0.0
    %921 = vmatpush1.msra.mxu0 0.0
    %922 = vmatprep.mubr.f32.mxu0 0.0
    %923 = vmatmul.mubr.f32.gmra.mrb[0].mxu0 %v623
    %v924 = vpop.f32.mrb[0].mxu0
    %v925 = vadd.f32 0.0, %v924
    %v926 = vpop.f32.mrb[0].mxu0
    %927 = vdwg.mxu0
    %928 = vmatprep.subr.mxu0 0.0
    %929 = vmatpush1.msra.mxu0 %v429
    %930 = vmatprep.subr.mxu0 0.0
    %931 = vmatpush1.msra.mxu0 %v430
    %932 = vmatprep.subr.mxu0 0.0
    %933 = vmatpush1.msra.mxu0 %v431
    %934 = vmatprep.subr.mxu0 0.0
    %935 = vmatpush1.msra.mxu0 %v432
    %936 = vmatprep.subr.mxu0 0.0
    %937 = vmatpush1.msra.mxu0 %v433
    %938 = vmatprep.subr.mxu0 0.0
    %939 = vmatpush1.msra.mxu0 0.0
    %940 = vmatprep.subr.mxu0 0.0
    %941 = vmatpush1.msra.mxu0 0.0
    %942 = vmatprep.subr.mxu0 0.0
    %943 = vmatpush1.msra.mxu0 0.0
    %944 = vmatprep.subr.mxu0 0.0
    %945 = vmatpush1.msra.mxu0 0.0
    %946 = vmatprep.subr.mxu0 0.0
    %947 = vmatpush1.msra.mxu0 0.0
    %948 = vmatprep.subr.mxu0 0.0
    %949 = vmatpush1.msra.mxu0 0.0
    %950 = vmatprep.subr.mxu0 0.0
    %951 = vmatpush1.msra.mxu0 0.0
    %952 = vmatprep.subr.mxu0 0.0
    %953 = vmatpush1.msra.mxu0 0.0
    %954 = vmatprep.subr.mxu0 0.0
    %955 = vmatpush1.msra.mxu0 0.0
    %956 = vmatprep.subr.mxu0 0.0
    %957 = vmatpush1.msra.mxu0 0.0
    %958 = vmatprep.subr.mxu0 0.0
    %959 = vmatpush1.msra.mxu0 0.0
    %960 = vmatprep.subr.mxu0 0.0
    %961 = vmatpush1.msra.mxu0 0.0
    %962 = vmatprep.subr.mxu0 0.0
    %963 = vmatpush1.msra.mxu0 0.0
    %964 = vmatprep.subr.mxu0 0.0
    %965 = vmatpush1.msra.mxu0 0.0
    %966 = vmatprep.subr.mxu0 0.0
    %967 = vmatpush1.msra.mxu0 0.0
    %968 = vmatprep.subr.mxu0 0.0
    %969 = vmatpush1.msra.mxu0 0.0
    %970 = vmatprep.subr.mxu0 0.0
    %971 = vmatpush1.msra.mxu0 0.0
    %972 = vmatprep.subr.mxu0 0.0
    %973 = vmatpush1.msra.mxu0 0.0
    %974 = vmatprep.subr.mxu0 0.0
    %975 = vmatpush1.msra.mxu0 0.0
    %976 = vmatprep.subr.mxu0 0.0
    %977 = vmatpush1.msra.mxu0 0.0
    %978 = vmatprep.subr.mxu0 0.0
    %979 = vmatpush1.msra.mxu0 0.0
    %980 = vmatprep.subr.mxu0 0.0
    %981 = vmatpush1.msra.mxu0 0.0
    %982 = vmatprep.subr.mxu0 0.0
    %983 = vmatpush1.msra.mxu0 0.0
    %984 = vmatprep.subr.mxu0 0.0
    %985 = vmatpush1.msra.mxu0 0.0
    %986 = vmatprep.subr.mxu0 0.0
    %987 = vmatpush1.msra.mxu0 0.0
    %988 = vmatprep.subr.mxu0 0.0
    %989 = vmatpush1.msra.mxu0 0.0
    %990 = vmatprep.subr.mxu0 0.0
    %991 = vmatpush1.msra.mxu0 0.0
    %992 = vmatprep.mubr.f32.mxu0 0.0
    %993 = vmatmul.mubr.f32.gmra.mrb[0].mxu0 %v778
    %v994 = vpop.f32.mrb[0].mxu0
    %v995 = vadd.f32 0.0, %v994
    %v996 = vpop.f32.mrb[0].mxu0
    %997 = vdwg.mxu0
    %v998 = vadd.f32 %v855, %v771
    %v999 = vadd.f32 %v998, %v925
    %v1000 = vmax.f32 %v999, 0.0
    %v1001 = vtanh.pop %v1000
    %v1003 = vsel %vm471, %v1001, 0
    %1005 = vmatprep.subr.mxu0 0.0
    %1006 = vmatpush1.msra.mxu0 %v434
    %1007 = vmatprep.subr.mxu0 0.0
    %1008 = vmatpush1.msra.mxu0 %v435
    %1009 = vmatprep.subr.mxu0 0.0
    %1010 = vmatpush1.msra.mxu0 %v436
    %1011 = vmatprep.subr.mxu0 0.0
    %1012 = vmatpush1.msra.mxu0 %v437
    %1013 = vmatprep.subr.mxu0 0.0
    %1014 = vmatpush1.msra.mxu0 %v438
    %1015 = vmatprep.subr.mxu0 0.0
    %1016 = vmatpush1.msra.mxu0 0.0
    %1017 = vmatprep.subr.mxu0 0.0
    %1018 = vmatpush1.msra.mxu0 0.0
    %1019 = vmatprep.subr.mxu0 0.0
    %1020 = vmatpush1.msra.mxu0 0.0
    %1021 = vmatprep.subr.mxu0 0.0
    %1022 = vmatpush1.msra.mxu0 0.0
    %1023 = vmatprep.subr.mxu0 0.0
    %1024 = vmatpush1.msra.mxu0 0.0
    %1025 = vmatprep.subr.mxu0 0.0
    %1026 = vmatpush1.msra.mxu0 0.0
    %1027 = vmatprep.subr.mxu0 0.0
    %1028 = vmatpush1.msra.mxu0 0.0
    %1029 = vmatprep.subr.mxu0 0.0
    %1030 = vmatpush1.msra.mxu0 0.0
    %1031 = vmatprep.subr.mxu0 0.0
    %1032 = vmatpush1.msra.mxu0 0.0
    %1033 = vmatprep.subr.mxu0 0.0
    %1034 = vmatpush1.msra.mxu0 0.0
    %1035 = vmatprep.subr.mxu0 0.0
    %1036 = vmatpush1.msra.mxu0 0.0
    %1037 = vmatprep.subr.mxu0 0.0
    %1038 = vmatpush1.msra.mxu0 0.0
    %1039 = vmatprep.subr.mxu0 0.0
    %1040 = vmatpush1.msra.mxu0 0.0
    %1041 = vmatprep.subr.mxu0 0.0
    %1042 = vmatpush1.msra.mxu0 0.0
    %1043 = vmatprep.subr.mxu0 0.0
    %1044 = vmatpush1.msra.mxu0 0.0
    %1045 = vmatprep.subr.mxu0 0.0
    %1046 = vmatpush1.msra.mxu0 0.0
    %1047 = vmatprep.subr.mxu0 0.0
    %1048 = vmatpush1.msra.mxu0 0.0
    %1049 = vmatprep.subr.mxu0 0.0
    %1050 = vmatpush1.msra.mxu0 0.0
    %1051 = vmatprep.subr.mxu0 0.0
    %1052 = vmatpush1.msra.mxu0 0.0
    %1053 = vmatprep.subr.mxu0 0.0
    %1054 = vmatpush1.msra.mxu0 0.0
    %1055 = vmatprep.subr.mxu0 0.0
    %1056 = vmatpush1.msra.mxu0 0.0
    %1057 = vmatprep.subr.mxu0 0.0
    %1058 = vmatpush1.msra.mxu0 0.0
    %1059 = vmatprep.subr.mxu0 0.0
    %1060 = vmatpush1.msra.mxu0 0.0
    %1061 = vmatprep.subr.mxu0 0.0
    %1062 = vmatpush1.msra.mxu0 0.0
    %1063 = vmatprep.subr.mxu0 0.0
    %1064 = vmatpush1.msra.mxu0 0.0
    %1065 = vmatprep.subr.mxu0 0.0
    %1066 = vmatpush1.msra.mxu0 0.0
    %1067 = vmatprep.subr.mxu0 0.0
    %1068 = vmatpush1.msra.mxu0 0.0
    %1069 = vmatprep.mubr.f32.mxu0 0.0
    %1070 = vmatmul.mubr.f32.gmra.mrb[0].mxu0 %v1003
    %v1071 = vpop.f32.mrb[0].mxu0
    %v1072 = vadd.f32 %v856, %v1071
    %v1073 = vpop.f32.mrb[0].mxu0
    %1074 = vdwg.mxu0
    %v1075 = vadd.f32 %v1072, %v849
    %v1076 = vmax.f32 %v1075, 0.0
    %v1077 = vtanh.pop %v1076
    %v1079 = vsel %vm698, %v1077, 0
    %1081 = vmatprep.subr.mxu0 %v440
    %1082 = vmatpush1.msra.mxu0 %v439
    %1083 = vmatprep.subr.mxu0 0.0
    %1084 = vmatpush1.msra.mxu0 0.0
    %1085 = vmatprep.subr.mxu0 0.0
    %1086 = vmatpush1.msra.mxu0 0.0
    %1087 = vmatprep.subr.mxu0 0.0
    %1088 = vmatpush1.msra.mxu0 0.0
    %1089 = vmatprep.subr.mxu0 0.0
    %1090 = vmatpush1.msra.mxu0 0.0
    %1091 = vmatprep.subr.mxu0 0.0
    %1092 = vmatpush1.msra.mxu0 0.0
    %1093 = vmatprep.subr.mxu0 0.0
    %1094 = vmatpush1.msra.mxu0 0.0
    %1095 = vmatprep.subr.mxu0 0.0
    %1096 = vmatpush1.msra.mxu0 0.0
    %1097 = vmatprep.subr.mxu0 0.0
    %1098 = vmatpush1.msra.mxu0 0.0
    %1099 = vmatprep.subr.mxu0 0.0
    %1100 = vmatpush1.msra.mxu0 0.0
    %1101 = vmatprep.subr.mxu0 0.0
    %1102 = vmatpush1.msra.mxu0 0.0
    %1103 = vmatprep.subr.mxu0 0.0
    %1104 = vmatpush1.msra.mxu0 0.0
    %1105 = vmatprep.subr.mxu0 0.0
    %1106 = vmatpush1.msra.mxu0 0.0
    %1107 = vmatprep.subr.mxu0 0.0
    %1108 = vmatpush1.msra.mxu0 0.0
    %1109 = vmatprep.subr.mxu0 0.0
    %1110 = vmatpush1.msra.mxu0 0.0
    %1111 = vmatprep.subr.mxu0 0.0
    %1112 = vmatpush1.msra.mxu0 0.0
    %1113 = vmatprep.subr.mxu0 0.0
    %1114 = vmatpush1.msra.mxu0 0.0
    %1115 = vmatprep.subr.mxu0 0.0
    %1116 = vmatpush1.msra.mxu0 0.0
    %1117 = vmatprep.subr.mxu0 0.0
    %1118 = vmatpush1.msra.mxu0 0.0
    %1119 = vmatprep.subr.mxu0 0.0
    %1120 = vmatpush1.msra.mxu0 0.0
    %1121 = vmatprep.subr.mxu0 0.0
    %1122 = vmatpush1.msra.mxu0 0.0
    %1123 = vmatprep.subr.mxu0 0.0
    %1124 = vmatpush1.msra.mxu0 0.0
    %1125 = vmatprep.subr.mxu0 0.0
    %1126 = vmatpush1.msra.mxu0 0.0
    %1127 = vmatprep.subr.mxu0 0.0
    %1128 = vmatpush1.msra.mxu0 0.0
    %1129 = vmatprep.subr.mxu0 0.0
    %1130 = vmatpush1.msra.mxu0 0.0
    %1131 = vmatprep.subr.mxu0 0.0
    %1132 = vmatpush1.msra.mxu0 0.0
    %1133 = vmatprep.subr.mxu0 0.0
    %1134 = vmatpush1.msra.mxu0 0.0
    %1135 = vmatprep.subr.mxu0 0.0
    %1136 = vmatpush1.msra.mxu0 0.0
    %1137 = vmatprep.subr.mxu0 0.0
    %1138 = vmatpush1.msra.mxu0 0.0
    %1139 = vmatprep.subr.mxu0 0.0
    %1140 = vmatpush1.msra.mxu0 0.0
    %1141 = vmatprep.subr.mxu0 0.0
    %1142 = vmatpush1.msra.mxu0 0.0
    %1143 = vmatprep.subr.mxu0 0.0
    %1144 = vmatpush1.msra.mxu0 0.0
    %1145 = vmatprep.mubr.f32.mxu0 0.0
    %1146 = vmatmul.mubr.f32.gmra.mrb[0].mxu0 %v1079
    %v1147 = vpop.f32.mrb[0].mxu0
    %v1148 = vadd.f32 0.0, %v1147
    %v1149 = vpop.f32.mrb[0].mxu0
    %v1150 = vadd.f32 0.0, %v1149
    %1151 = vdwg.mxu0
    %v1152 = vadd.f32 %v1148, %v857
    %v1153 = vadd.f32 %v1152, %v995
    %v1154 = vmax.f32 %v1153, 0.0
    %v1155 = vtanh.pop %v1154
    %v1157 = vsel %vm471, %v1155, 0
    %1159 = vmatprep.subr.mxu0 %v442
    %1160 = vmatpush1.msra.mxu0 %v441
    %1161 = vmatprep.subr.mxu0 %v444
    %1162 = vmatpush1.msra.mxu0 %v443
    %1163 = vmatprep.subr.mxu0 %v446
    %1164 = vmatpush1.msra.mxu0 %v445
    %1165 = vmatprep.subr.mxu0 %v448
    %1166 = vmatpush1.msra.mxu0 %v447
    %1167 = vmatprep.subr.mxu0 %v450
    %1168 = vmatpush1.msra.mxu0 %v449
    %1169 = vmatprep.subr.mxu0 0.0
    %1170 = vmatpush1.msra.mxu0 0.0
    %1171 = vmatprep.subr.mxu0 0.0
    %1172 = vmatpush1.msra.mxu0 0.0
    %1173 = vmatprep.subr.mxu0 0.0
    %1174 = vmatpush1.msra.mxu0 0.0
    %1175 = vmatprep.subr.mxu0 0.0
    %1176 = vmatpush1.msra.mxu0 0.0
    %1177 = vmatprep.subr.mxu0 0.0
    %1178 = vmatpush1.msra.mxu0 0.0
    %1179 = vmatprep.subr.mxu0 0.0
    %1180 = vmatpush1.msra.mxu0 0.0
    %1181 = vmatprep.subr.mxu0 0.0
    %1182 = vmatpush1.msra.mxu0 0.0
    %1183 = vmatprep.subr.mxu0 0.0
    %1184 = vmatpush1.msra.mxu0 0.0
    %1185 = vmatprep.subr.mxu0 0.0
    %1186 = vmatpush1.msra.mxu0 0.0
    %1187 = vmatprep.subr.mxu0 0.0
    %1188 = vmatpush1.msra.mxu0 0.0
    %1189 = vmatprep.subr.mxu0 0.0
    %1190 = vmatpush1.msra.mxu0 0.0
    %1191 = vmatprep.subr.mxu0 0.0
    %1192 = vmatpush1.msra.mxu0 0.0
    %1193 = vmatprep.subr.mxu0 0.0
    %1194 = vmatpush1.msra.mxu0 0.0
    %1195 = vmatprep.subr.mxu0 0.0
    %1196 = vmatpush1.msra.mxu0 0.0
    %1197 = vmatprep.subr.mxu0 0.0
    %1198 = vmatpush1.msra.mxu0 0.0
    %1199 = vmatprep.subr.mxu0 0.0
    %1200 = vmatpush1.msra.mxu0 0.0
    %1201 = vmatprep.subr.mxu0 0.0
    %1202 = vmatpush1.msra.mxu0 0.0
    %1203 = vmatprep.subr.mxu0 0.0
    %1204 = vmatpush1.msra.mxu0 0.0
    %1205 = vmatprep.subr.mxu0 0.0
    %1206 = vmatpush1.msra.mxu0 0.0
    %1207 = vmatprep.subr.mxu0 0.0
    %1208 = vmatpush1.msra.mxu0 0.0
    %1209 = vmatprep.subr.mxu0 0.0
    %1210 = vmatpush1.msra.mxu0 0.0
    %1211 = vmatprep.subr.mxu0 0.0
    %1212 = vmatpush1.msra.mxu0 0.0
    %1213 = vmatprep.subr.mxu0 0.0
    %1214 = vmatpush1.msra.mxu0 0.0
    %1215 = vmatprep.subr.mxu0 0.0
    %1216 = vmatpush1.msra.mxu0 0.0
    %1217 = vmatprep.subr.mxu0 0.0
    %1218 = vmatpush1.msra.mxu0 0.0
    %1219 = vmatprep.subr.mxu0 0.0
    %1220 = vmatpush1.msra.mxu0 0.0
    %1221 = vmatprep.subr.mxu0 0.0
    %1222 = vmatpush1.msra.mxu0 0.0
    %1223 = vmatprep.mubr.f32.mxu0 0.0
    %1224 = vmatmul.mubr.f32.gmra.mrb[0].mxu0 %v1157
    %v1225 = vpop.f32.mrb[0].mxu0
    %v1226 = vadd.f32 %v456, %v1225
    %v1227 = vpop.f32.mrb[0].mxu0
    %v1228 = vadd.f32 %v460, %v1227
    %1229 = vdwg.mxu0
    %s1230 = scalar_lea.vmem [#allocation14], 8
    %1231 = vst [vmem:[%s1230] sm:$0xff] %v1226
    %s1232 = smul.u32 2, 3
    %s1233 = smul.addr %s1232, 8
    %s1234 = scalar_lea.vmem [#allocation2], %s1233
    %v1235 = vld [vmem:[%s1234] sm:$0xff]
    %v1236 = vld [vmem:[%s1234 + $0x8] sm:$0xff]
    %v1237 = vld [vmem:[%s1234 + $0x10] sm:$0xff]
    %1238 = vmatprep.subr.mxu0 0.0
    %1239 = vmatpush1.msra.mxu0 %v424
    %1240 = vmatprep.subr.mxu0 0.0
    %1241 = vmatpush1.msra.mxu0 %v425
    %1242 = vmatprep.subr.mxu0 0.0
    %1243 = vmatpush1.msra.mxu0 %v426
    %1244 = vmatprep.subr.mxu0 0.0
    %1245 = vmatpush1.msra.mxu0 %v427
    %1246 = vmatprep.subr.mxu0 0.0
    %1247 = vmatpush1.msra.mxu0 %v428
    %1248 = vmatprep.subr.mxu0 0.0
    %1249 = vmatpush1.msra.mxu0 0.0
    %1250 = vmatprep.subr.mxu0 0.0
    %1251 = vmatpush1.msra.mxu0 0.0
    %1252 = vmatprep.subr.mxu0 0.0
    %1253 = vmatpush1.msra.mxu0 0.0
    %1254 = vmatprep.subr.mxu0 0.0
    %1255 = vmatpush1.msra.mxu0 0.0
    %1256 = vmatprep.subr.mxu0 0.0
    %1257 = vmatpush1.msra.mxu0 0.0
    %1258 = vmatprep.subr.mxu0 0.0
    %1259 = vmatpush1.msra.mxu0 0.0
    %1260 = vmatprep.subr.mxu0 0.0
    %1261 = vmatpush1.msra.mxu0 0.0
    %1262 = vmatprep.subr.mxu0 0.0
    %1263 = vmatpush1.msra.mxu0 0.0
    %1264 = vmatprep.subr.mxu0 0.0
    %1265 = vmatpush1.msra.mxu0 0.0
    %1266 = vmatprep.subr.mxu0 0.0
    %1267 = vmatpush1.msra.mxu0 0.0
    %1268 = vmatprep.subr.mxu0 0.0
    %1269 = vmatpush1.msra.mxu0 0.0
    %1270 = vmatprep.subr.mxu0 0.0
    %1271 = vmatpush1.msra.mxu0 0.0
    %1272 = vmatprep.subr.mxu0 0.0
    %1273 = vmatpush1.msra.mxu0 0.0
    %1274 = vmatprep.subr.mxu0 0.0
    %1275 = vmatpush1.msra.mxu0 0.0
    %1276 = vmatprep.subr.mxu0 0.0
    %1277 = vmatpush1.msra.mxu0 0.0
    %1278 = vmatprep.subr.mxu0 0.0
    %1279 = vmatpush1.msra.mxu0 0.0
    %1280 = vmatprep.subr.mxu0 0.0
    %1281 = vmatpush1.msra.mxu0 0.0
    %1282 = vmatprep.subr.mxu0 0.0
    %1283 = vmatpush1.msra.mxu0 0.0
    %1284 = vmatprep.subr.mxu0 0.0
    %1285 = vmatpush1.msra.mxu0 0.0
    %1286 = vmatprep.subr.mxu0 0.0
    %1287 = vmatpush1.msra.mxu0 0.0
    %1288 = vmatprep.subr.mxu0 0.0
    %1289 = vmatpush1.msra.mxu0 0.0
    %1290 = vmatprep.subr.mxu0 0.0
    %1291 = vmatpush1.msra.mxu0 0.0
    %1292 = vmatprep.subr.mxu0 0.0
    %1293 = vmatpush1.msra.mxu0 0.0
    %1294 = vmatprep.subr.mxu0 0.0
    %1295 = vmatpush1.msra.mxu0 0.0
    %1296 = vmatprep.subr.mxu0 0.0
    %1297 = vmatpush1.msra.mxu0 0.0
    %1298 = vmatprep.subr.mxu0 0.0
    %1299 = vmatpush1.msra.mxu0 0.0
    %1300 = vmatprep.subr.mxu0 0.0
    %1301 = vmatpush1.msra.mxu0 0.0
    %1302 = vmatprep.mubr.f32.mxu0 0.0
    %1303 = vmatmul.mubr.f32.gmra.mrb[0].mxu0 %v1003
    %v1304 = vpop.f32.mrb[0].mxu0
    %v1305 = vadd.f32 0.0, %v1304
    %v1306 = vpop.f32.mrb[0].mxu0
    %1307 = vdwg.mxu0
    %1308 = vmatprep.subr.mxu0 0.0
    %1309 = vmatpush1.msra.mxu0 %v429
    %1310 = vmatprep.subr.mxu0 0.0
    %1311 = vmatpush1.msra.mxu0 %v430
    %1312 = vmatprep.subr.mxu0 0.0
    %1313 = vmatpush1.msra.mxu0 %v431
    %1314 = vmatprep.subr.mxu0 0.0
    %1315 = vmatpush1.msra.mxu0 %v432
    %1316 = vmatprep.subr.mxu0 0.0
    %1317 = vmatpush1.msra.mxu0 %v433
    %1318 = vmatprep.subr.mxu0 0.0
    %1319 = vmatpush1.msra.mxu0 0.0
    %1320 = vmatprep.subr.mxu0 0.0
    %1321 = vmatpush1.msra.mxu0 0.0
    %1322 = vmatprep.subr.mxu0 0.0
    %1323 = vmatpush1.msra.mxu0 0.0
    %1324 = vmatprep.subr.mxu0 0.0
    %1325 = vmatpush1.msra.mxu0 0.0
    %1326 = vmatprep.subr.mxu0 0.0
    %1327 = vmatpush1.msra.mxu0 0.0
    %1328 = vmatprep.subr.mxu0 0.0
    %1329 = vmatpush1.msra.mxu0 0.0
    %1330 = vmatprep.subr.mxu0 0.0
    %1331 = vmatpush1.msra.mxu0 0.0
    %1332 = vmatprep.subr.mxu0 0.0
    %1333 = vmatpush1.msra.mxu0 0.0
    %1334 = vmatprep.subr.mxu0 0.0
    %1335 = vmatpush1.msra.mxu0 0.0
    %1336 = vmatprep.subr.mxu0 0.0
    %1337 = vmatpush1.msra.mxu0 0.0
    %1338 = vmatprep.subr.mxu0 0.0
    %1339 = vmatpush1.msra.mxu0 0.0
    %1340 = vmatprep.subr.mxu0 0.0
    %1341 = vmatpush1.msra.mxu0 0.0
    %1342 = vmatprep.subr.mxu0 0.0
    %1343 = vmatpush1.msra.mxu0 0.0
    %1344 = vmatprep.subr.mxu0 0.0
    %1345 = vmatpush1.msra.mxu0 0.0
    %1346 = vmatprep.subr.mxu0 0.0
    %1347 = vmatpush1.msra.mxu0 0.0
    %1348 = vmatprep.subr.mxu0 0.0
    %1349 = vmatpush1.msra.mxu0 0.0
    %1350 = vmatprep.subr.mxu0 0.0
    %1351 = vmatpush1.msra.mxu0 0.0
    %1352 = vmatprep.subr.mxu0 0.0
    %1353 = vmatpush1.msra.mxu0 0.0
    %1354 = vmatprep.subr.mxu0 0.0
    %1355 = vmatpush1.msra.mxu0 0.0
    %1356 = vmatprep.subr.mxu0 0.0
    %1357 = vmatpush1.msra.mxu0 0.0
    %1358 = vmatprep.subr.mxu0 0.0
    %1359 = vmatpush1.msra.mxu0 0.0
    %1360 = vmatprep.subr.mxu0 0.0
    %1361 = vmatpush1.msra.mxu0 0.0
    %1362 = vmatprep.subr.mxu0 0.0
    %1363 = vmatpush1.msra.mxu0 0.0
    %1364 = vmatprep.subr.mxu0 0.0
    %1365 = vmatpush1.msra.mxu0 0.0
    %1366 = vmatprep.subr.mxu0 0.0
    %1367 = vmatpush1.msra.mxu0 0.0
    %1368 = vmatprep.subr.mxu0 0.0
    %1369 = vmatpush1.msra.mxu0 0.0
    %1370 = vmatprep.subr.mxu0 0.0
    %1371 = vmatpush1.msra.mxu0 0.0
    %1372 = vmatprep.mubr.f32.mxu0 0.0
    %1373 = vmatmul.mubr.f32.gmra.mrb[0].mxu0 %v1157
    %v1374 = vpop.f32.mrb[0].mxu0
    %v1375 = vadd.f32 0.0, %v1374
    %v1376 = vpop.f32.mrb[0].mxu0
    %1377 = vdwg.mxu0
    %v1378 = vadd.f32 %v1235, %v1150
    %v1379 = vadd.f32 %v1378, %v1305
    %v1380 = vmax.f32 %v1379, 0.0
    %v1381 = vtanh.pop %v1380
    %v1383 = vsel %vm471, %v1381, 0
    %1385 = vmatprep.subr.mxu0 0.0
    %1386 = vmatpush1.msra.mxu0 %v434
    %1387 = vmatprep.subr.mxu0 0.0
    %1388 = vmatpush1.msra.mxu0 %v435
    %1389 = vmatprep.subr.mxu0 0.0
    %1390 = vmatpush1.msra.mxu0 %v436
    %1391 = vmatprep.subr.mxu0 0.0
    %1392 = vmatpush1.msra.mxu0 %v437
    %1393 = vmatprep.subr.mxu0 0.0
    %1394 = vmatpush1.msra.mxu0 %v438
    %1395 = vmatprep.subr.mxu0 0.0
    %1396 = vmatpush1.msra.mxu0 0.0
    %1397 = vmatprep.subr.mxu0 0.0
    %1398 = vmatpush1.msra.mxu0 0.0
    %1399 = vmatprep.subr.mxu0 0.0
    %1400 = vmatpush1.msra.mxu0 0.0
    %1401 = vmatprep.subr.mxu0 0.0
    %1402 = vmatpush1.msra.mxu0 0.0
    %1403 = vmatprep.subr.mxu0 0.0
    %1404 = vmatpush1.msra.mxu0 0.0
    %1405 = vmatprep.subr.mxu0 0.0
    %1406 = vmatpush1.msra.mxu0 0.0
    %1407 = vmatprep.subr.mxu0 0.0
    %1408 = vmatpush1.msra.mxu0 0.0
    %1409 = vmatprep.subr.mxu0 0.0
    %1410 = vmatpush1.msra.mxu0 0.0
    %1411 = vmatprep.subr.mxu0 0.0
    %1412 = vmatpush1.msra.mxu0 0.0
    %1413 = vmatprep.subr.mxu0 0.0
    %1414 = vmatpush1.msra.mxu0 0.0
    %1415 = vmatprep.subr.mxu0 0.0
    %1416 = vmatpush1.msra.mxu0 0.0
    %1417 = vmatprep.subr.mxu0 0.0
    %1418 = vmatpush1.msra.mxu0 0.0
    %1419 = vmatprep.subr.mxu0 0.0
    %1420 = vmatpush1.msra.mxu0 0.0
    %1421 = vmatprep.subr.mxu0 0.0
    %1422 = vmatpush1.msra.mxu0 0.0
    %1423 = vmatprep.subr.mxu0 0.0
    %1424 = vmatpush1.msra.mxu0 0.0
    %1425 = vmatprep.subr.mxu0 0.0
    %1426 = vmatpush1.msra.mxu0 0.0
    %1427 = vmatprep.subr.mxu0 0.0
    %1428 = vmatpush1.msra.mxu0 0.0
    %1429 = vmatprep.subr.mxu0 0.0
    %1430 = vmatpush1.msra.mxu0 0.0
    %1431 = vmatprep.subr.mxu0 0.0
    %1432 = vmatpush1.msra.mxu0 0.0
    %1433 = vmatprep.subr.mxu0 0.0
    %1434 = vmatpush1.msra.mxu0 0.0
    %1435 = vmatprep.subr.mxu0 0.0
    %1436 = vmatpush1.msra.mxu0 0.0
    %1437 = vmatprep.subr.mxu0 0.0
    %1438 = vmatpush1.msra.mxu0 0.0
    %1439 = vmatprep.subr.mxu0 0.0
    %1440 = vmatpush1.msra.mxu0 0.0
    %1441 = vmatprep.subr.mxu0 0.0
    %1442 = vmatpush1.msra.mxu0 0.0
    %1443 = vmatprep.subr.mxu0 0.0
    %1444 = vmatpush1.msra.mxu0 0.0
    %1445 = vmatprep.subr.mxu0 0.0
    %1446 = vmatpush1.msra.mxu0 0.0
    %1447 = vmatprep.subr.mxu0 0.0
    %1448 = vmatpush1.msra.mxu0 0.0
    %1449 = vmatprep.mubr.f32.mxu0 0.0
    %1450 = vmatmul.mubr.f32.gmra.mrb[0].mxu0 %v1383
    %v1451 = vpop.f32.mrb[0].mxu0
    %v1452 = vadd.f32 %v1236, %v1451
    %v1453 = vpop.f32.mrb[0].mxu0
    %1454 = vdwg.mxu0
    %v1455 = vadd.f32 %v1452, %v1228
    %v1456 = vmax.f32 %v1455, 0.0
    %v1457 = vtanh.pop %v1456
    %v1459 = vsel %vm698, %v1457, 0
    %1461 = vmatprep.subr.mxu0 %v440
    %1462 = vmatpush1.msra.mxu0 %v439
    %1463 = vmatprep.subr.mxu0 0.0
    %1464 = vmatpush1.msra.mxu0 0.0
    %1465 = vmatprep.subr.mxu0 0.0
    %1466 = vmatpush1.msra.mxu0 0.0
    %1467 = vmatprep.subr.mxu0 0.0
    %1468 = vmatpush1.msra.mxu0 0.0
    %1469 = vmatprep.subr.mxu0 0.0
    %1470 = vmatpush1.msra.mxu0 0.0
    %1471 = vmatprep.subr.mxu0 0.0
    %1472 = vmatpush1.msra.mxu0 0.0
    %1473 = vmatprep.subr.mxu0 0.0
    %1474 = vmatpush1.msra.mxu0 0.0
    %1475 = vmatprep.subr.mxu0 0.0
    %1476 = vmatpush1.msra.mxu0 0.0
    %1477 = vmatprep.subr.mxu0 0.0
    %1478 = vmatpush1.msra.mxu0 0.0
    %1479 = vmatprep.subr.mxu0 0.0
    %1480 = vmatpush1.msra.mxu0 0.0
    %1481 = vmatprep.subr.mxu0 0.0
    %1482 = vmatpush1.msra.mxu0 0.0
    %1483 = vmatprep.subr.mxu0 0.0
    %1484 = vmatpush1.msra.mxu0 0.0
    %1485 = vmatprep.subr.mxu0 0.0
    %1486 = vmatpush1.msra.mxu0 0.0
    %1487 = vmatprep.subr.mxu0 0.0
    %1488 = vmatpush1.msra.mxu0 0.0
    %1489 = vmatprep.subr.mxu0 0.0
    %1490 = vmatpush1.msra.mxu0 0.0
    %1491 = vmatprep.subr.mxu0 0.0
    %1492 = vmatpush1.msra.mxu0 0.0
    %1493 = vmatprep.subr.mxu0 0.0
    %1494 = vmatpush1.msra.mxu0 0.0
    %1495 = vmatprep.subr.mxu0 0.0
    %1496 = vmatpush1.msra.mxu0 0.0
    %1497 = vmatprep.subr.mxu0 0.0
    %1498 = vmatpush1.msra.mxu0 0.0
    %1499 = vmatprep.subr.mxu0 0.0
    %1500 = vmatpush1.msra.mxu0 0.0
    %1501 = vmatprep.subr.mxu0 0.0
    %1502 = vmatpush1.msra.mxu0 0.0
    %1503 = vmatprep.subr.mxu0 0.0
    %1504 = vmatpush1.msra.mxu0 0.0
    %1505 = vmatprep.subr.mxu0 0.0
    %1506 = vmatpush1.msra.mxu0 0.0
    %1507 = vmatprep.subr.mxu0 0.0
    %1508 = vmatpush1.msra.mxu0 0.0
    %1509 = vmatprep.subr.mxu0 0.0
    %1510 = vmatpush1.msra.mxu0 0.0
    %1511 = vmatprep.subr.mxu0 0.0
    %1512 = vmatpush1.msra.mxu0 0.0
    %1513 = vmatprep.subr.mxu0 0.0
    %1514 = vmatpush1.msra.mxu0 0.0
    %1515 = vmatprep.subr.mxu0 0.0
    %1516 = vmatpush1.msra.mxu0 0.0
    %1517 = vmatprep.subr.mxu0 0.0
    %1518 = vmatpush1.msra.mxu0 0.0
    %1519 = vmatprep.subr.mxu0 0.0
    %1520 = vmatpush1.msra.mxu0 0.0
    %1521 = vmatprep.subr.mxu0 0.0
    %1522 = vmatpush1.msra.mxu0 0.0
    %1523 = vmatprep.subr.mxu0 0.0
    %1524 = vmatpush1.msra.mxu0 0.0
    %1525 = vmatprep.mubr.f32.mxu0 0.0
    %1526 = vmatmul.mubr.f32.gmra.mrb[0].mxu0 %v1459
    %v1527 = vpop.f32.mrb[0].mxu0
    %v1528 = vadd.f32 0.0, %v1527
    %v1529 = vpop.f32.mrb[0].mxu0
    %v1530 = vadd.f32 0.0, %v1529
    %1531 = vdwg.mxu0
    %v1532 = vadd.f32 %v1528, %v1237
    %v1533 = vadd.f32 %v1532, %v1375
    %v1534 = vmax.f32 %v1533, 0.0
    %v1535 = vtanh.pop %v1534
    %v1537 = vsel %vm471, %v1535, 0
    %1539 = vmatprep.subr.mxu0 %v442
    %1540 = vmatpush1.msra.mxu0 %v441
    %1541 = vmatprep.subr.mxu0 %v444
    %1542 = vmatpush1.msra.mxu0 %v443
    %1543 = vmatprep.subr.mxu0 %v446
    %1544 = vmatpush1.msra.mxu0 %v445
    %1545 = vmatprep.subr.mxu0 %v448
    %1546 = vmatpush1.msra.mxu0 %v447
    %1547 = vmatprep.subr.mxu0 %v450
    %1548 = vmatpush1.msra.mxu0 %v449
    %1549 = vmatprep.subr.mxu0 0.0
    %1550 = vmatpush1.msra.mxu0 0.0
    %1551 = vmatprep.subr.mxu0 0.0
    %1552 = vmatpush1.msra.mxu0 0.0
    %1553 = vmatprep.subr.mxu0 0.0
    %1554 = vmatpush1.msra.mxu0 0.0
    %1555 = vmatprep.subr.mxu0 0.0
    %1556 = vmatpush1.msra.mxu0 0.0
    %1557 = vmatprep.subr.mxu0 0.0
    %1558 = vmatpush1.msra.mxu0 0.0
    %1559 = vmatprep.subr.mxu0 0.0
    %1560 = vmatpush1.msra.mxu0 0.0
    %1561 = vmatprep.subr.mxu0 0.0
    %1562 = vmatpush1.msra.mxu0 0.0
    %1563 = vmatprep.subr.mxu0 0.0
    %1564 = vmatpush1.msra.mxu0 0.0
    %1565 = vmatprep.subr.mxu0 0.0
    %1566 = vmatpush1.msra.mxu0 0.0
    %1567 = vmatprep.subr.mxu0 0.0
    %1568 = vmatpush1.msra.mxu0 0.0
    %1569 = vmatprep.subr.mxu0 0.0
    %1570 = vmatpush1.msra.mxu0 0.0
    %1571 = vmatprep.subr.mxu0 0.0
    %1572 = vmatpush1.msra.mxu0 0.0
    %1573 = vmatprep.subr.mxu0 0.0
    %1574 = vmatpush1.msra.mxu0 0.0
    %1575 = vmatprep.subr.mxu0 0.0
    %1576 = vmatpush1.msra.mxu0 0.0
    %1577 = vmatprep.subr.mxu0 0.0
    %1578 = vmatpush1.msra.mxu0 0.0
    %1579 = vmatprep.subr.mxu0 0.0
    %1580 = vmatpush1.msra.mxu0 0.0
    %1581 = vmatprep.subr.mxu0 0.0
    %1582 = vmatpush1.msra.mxu0 0.0
    %1583 = vmatprep.subr.mxu0 0.0
    %1584 = vmatpush1.msra.mxu0 0.0
    %1585 = vmatprep.subr.mxu0 0.0
    %1586 = vmatpush1.msra.mxu0 0.0
    %1587 = vmatprep.subr.mxu0 0.0
    %1588 = vmatpush1.msra.mxu0 0.0
    %1589 = vmatprep.subr.mxu0 0.0
    %1590 = vmatpush1.msra.mxu0 0.0
    %1591 = vmatprep.subr.mxu0 0.0
    %1592 = vmatpush1.msra.mxu0 0.0
    %1593 = vmatprep.subr.mxu0 0.0
    %1594 = vmatpush1.msra.mxu0 0.0
    %1595 = vmatprep.subr.mxu0 0.0
    %1596 = vmatpush1.msra.mxu0 0.0
    %1597 = vmatprep.subr.mxu0 0.0
    %1598 = vmatpush1.msra.mxu0 0.0
    %1599 = vmatprep.subr.mxu0 0.0
    %1600 = vmatpush1.msra.mxu0 0.0
    %1601 = vmatprep.subr.mxu0 0.0
    %1602 = vmatpush1.msra.mxu0 0.0
    %1603 = vmatprep.mubr.f32.mxu0 0.0
    %1604 = vmatmul.mubr.f32.gmra.mrb[0].mxu0 %v1537
    %v1605 = vpop.f32.mrb[0].mxu0
    %v1606 = vadd.f32 %v456, %v1605
    %v1607 = vpop.f32.mrb[0].mxu0
    %v1608 = vadd.f32 %v460, %v1607
    %1609 = vdwg.mxu0
    %s1610 = scalar_lea.vmem [#allocation14], 16
    %1611 = vst [vmem:[%s1610] sm:$0xff] %v1606
    %s1612 = smul.u32 3, 3
    %s1613 = smul.addr %s1612, 8
    %s1614 = scalar_lea.vmem [#allocation2], %s1613
    %v1615 = vld [vmem:[%s1614] sm:$0xff]
    %v1616 = vld [vmem:[%s1614 + $0x8] sm:$0xff]
    %v1617 = vld [vmem:[%s1614 + $0x10] sm:$0xff]
    %1618 = vmatprep.subr.mxu0 0.0
    %1619 = vmatpush1.msra.mxu0 %v424
    %1620 = vmatprep.subr.mxu0 0.0
    %1621 = vmatpush1.msra.mxu0 %v425
    %1622 = vmatprep.subr.mxu0 0.0
    %1623 = vmatpush1.msra.mxu0 %v426
    %1624 = vmatprep.subr.mxu0 0.0
    %1625 = vmatpush1.msra.mxu0 %v427
    %1626 = vmatprep.subr.mxu0 0.0
    %1627 = vmatpush1.msra.mxu0 %v428
    %1628 = vmatprep.subr.mxu0 0.0
    %1629 = vmatpush1.msra.mxu0 0.0
    %1630 = vmatprep.subr.mxu0 0.0
    %1631 = vmatpush1.msra.mxu0 0.0
    %1632 = vmatprep.subr.mxu0 0.0
    %1633 = vmatpush1.msra.mxu0 0.0
    %1634 = vmatprep.subr.mxu0 0.0
    %1635 = vmatpush1.msra.mxu0 0.0
    %1636 = vmatprep.subr.mxu0 0.0
    %1637 = vmatpush1.msra.mxu0 0.0
    %1638 = vmatprep.subr.mxu0 0.0
    %1639 = vmatpush1.msra.mxu0 0.0
    %1640 = vmatprep.subr.mxu0 0.0
    %1641 = vmatpush1.msra.mxu0 0.0
    %1642 = vmatprep.subr.mxu0 0.0
    %1643 = vmatpush1.msra.mxu0 0.0
    %1644 = vmatprep.subr.mxu0 0.0
    %1645 = vmatpush1.msra.mxu0 0.0
    %1646 = vmatprep.subr.mxu0 0.0
    %1647 = vmatpush1.msra.mxu0 0.0
    %1648 = vmatprep.subr.mxu0 0.0
    %1649 = vmatpush1.msra.mxu0 0.0
    %1650 = vmatprep.subr.mxu0 0.0
    %1651 = vmatpush1.msra.mxu0 0.0
    %1652 = vmatprep.subr.mxu0 0.0
    %1653 = vmatpush1.msra.mxu0 0.0
    %1654 = vmatprep.subr.mxu0 0.0
    %1655 = vmatpush1.msra.mxu0 0.0
    %1656 = vmatprep.subr.mxu0 0.0
    %1657 = vmatpush1.msra.mxu0 0.0
    %1658 = vmatprep.subr.mxu0 0.0
    %1659 = vmatpush1.msra.mxu0 0.0
    %1660 = vmatprep.subr.mxu0 0.0
    %1661 = vmatpush1.msra.mxu0 0.0
    %1662 = vmatprep.subr.mxu0 0.0
    %1663 = vmatpush1.msra.mxu0 0.0
    %1664 = vmatprep.subr.mxu0 0.0
    %1665 = vmatpush1.msra.mxu0 0.0
    %1666 = vmatprep.subr.mxu0 0.0
    %1667 = vmatpush1.msra.mxu0 0.0
    %1668 = vmatprep.subr.mxu0 0.0
    %1669 = vmatpush1.msra.mxu0 0.0
    %1670 = vmatprep.subr.mxu0 0.0
    %1671 = vmatpush1.msra.mxu0 0.0
    %1672 = vmatprep.subr.mxu0 0.0
    %1673 = vmatpush1.msra.mxu0 0.0
    %1674 = vmatprep.subr.mxu0 0.0
    %1675 = vmatpush1.msra.mxu0 0.0
    %1676 = vmatprep.subr.mxu0 0.0
    %1677 = vmatpush1.msra.mxu0 0.0
    %1678 = vmatprep.subr.mxu0 0.0
    %1679 = vmatpush1.msra.mxu0 0.0
    %1680 = vmatprep.subr.mxu0 0.0
    %1681 = vmatpush1.msra.mxu0 0.0
    %1682 = vmatprep.mubr.f32.mxu0 0.0
    %1683 = vmatmul.mubr.f32.gmra.mrb[0].mxu0 %v1383
    %v1684 = vpop.f32.mrb[0].mxu0
    %v1685 = vadd.f32 0.0, %v1684
    %v1686 = vpop.f32.mrb[0].mxu0
    %1687 = vdwg.mxu0
    %1688 = vmatprep.subr.mxu0 0.0
    %1689 = vmatpush1.msra.mxu0 %v429
    %1690 = vmatprep.subr.mxu0 0.0
    %1691 = vmatpush1.msra.mxu0 %v430
    %1692 = vmatprep.subr.mxu0 0.0
    %1693 = vmatpush1.msra.mxu0 %v431
    %1694 = vmatprep.subr.mxu0 0.0
    %1695 = vmatpush1.msra.mxu0 %v432
    %1696 = vmatprep.subr.mxu0 0.0
    %1697 = vmatpush1.msra.mxu0 %v433
    %1698 = vmatprep.subr.mxu0 0.0
    %1699 = vmatpush1.msra.mxu0 0.0
    %1700 = vmatprep.subr.mxu0 0.0
    %1701 = vmatpush1.msra.mxu0 0.0
    %1702 = vmatprep.subr.mxu0 0.0
    %1703 = vmatpush1.msra.mxu0 0.0
    %1704 = vmatprep.subr.mxu0 0.0
    %1705 = vmatpush1.msra.mxu0 0.0
    %1706 = vmatprep.subr.mxu0 0.0
    %1707 = vmatpush1.msra.mxu0 0.0
    %1708 = vmatprep.subr.mxu0 0.0
    %1709 = vmatpush1.msra.mxu0 0.0
    %1710 = vmatprep.subr.mxu0 0.0
    %1711 = vmatpush1.msra.mxu0 0.0
    %1712 = vmatprep.subr.mxu0 0.0
    %1713 = vmatpush1.msra.mxu0 0.0
    %1714 = vmatprep.subr.mxu0 0.0
    %1715 = vmatpush1.msra.mxu0 0.0
    %1716 = vmatprep.subr.mxu0 0.0
    %1717 = vmatpush1.msra.mxu0 0.0
    %1718 = vmatprep.subr.mxu0 0.0
    %1719 = vmatpush1.msra.mxu0 0.0
    %1720 = vmatprep.subr.mxu0 0.0
    %1721 = vmatpush1.msra.mxu0 0.0
    %1722 = vmatprep.subr.mxu0 0.0
    %1723 = vmatpush1.msra.mxu0 0.0
    %1724 = vmatprep.subr.mxu0 0.0
    %1725 = vmatpush1.msra.mxu0 0.0
    %1726 = vmatprep.subr.mxu0 0.0
    %1727 = vmatpush1.msra.mxu0 0.0
    %1728 = vmatprep.subr.mxu0 0.0
    %1729 = vmatpush1.msra.mxu0 0.0
    %1730 = vmatprep.subr.mxu0 0.0
    %1731 = vmatpush1.msra.mxu0 0.0
    %1732 = vmatprep.subr.mxu0 0.0
    %1733 = vmatpush1.msra.mxu0 0.0
    %1734 = vmatprep.subr.mxu0 0.0
    %1735 = vmatpush1.msra.mxu0 0.0
    %1736 = vmatprep.subr.mxu0 0.0
    %1737 = vmatpush1.msra.mxu0 0.0
    %1738 = vmatprep.subr.mxu0 0.0
    %1739 = vmatpush1.msra.mxu0 0.0
    %1740 = vmatprep.subr.mxu0 0.0
    %1741 = vmatpush1.msra.mxu0 0.0
    %1742 = vmatprep.subr.mxu0 0.0
    %1743 = vmatpush1.msra.mxu0 0.0
    %1744 = vmatprep.subr.mxu0 0.0
    %1745 = vmatpush1.msra.mxu0 0.0
    %1746 = vmatprep.subr.mxu0 0.0
    %1747 = vmatpush1.msra.mxu0 0.0
    %1748 = vmatprep.subr.mxu0 0.0
    %1749 = vmatpush1.msra.mxu0 0.0
    %1750 = vmatprep.subr.mxu0 0.0
    %1751 = vmatpush1.msra.mxu0 0.0
    %1752 = vmatprep.mubr.f32.mxu0 0.0
    %1753 = vmatmul.mubr.f32.gmra.mrb[0].mxu0 %v1537
    %v1754 = vpop.f32.mrb[0].mxu0
    %v1755 = vadd.f32 0.0, %v1754
    %v1756 = vpop.f32.mrb[0].mxu0
    %1757 = vdwg.mxu0
    %v1758 = vadd.f32 %v1615, %v1530
    %v1759 = vadd.f32 %v1758, %v1685
    %v1760 = vmax.f32 %v1759, 0.0
    %v1761 = vtanh.pop %v1760
    %v1763 = vsel %vm471, %v1761, 0
    %1765 = vmatprep.subr.mxu0 0.0
    %1766 = vmatpush1.msra.mxu0 %v434
    %1767 = vmatprep.subr.mxu0 0.0
    %1768 = vmatpush1.msra.mxu0 %v435
    %1769 = vmatprep.subr.mxu0 0.0
    %1770 = vmatpush1.msra.mxu0 %v436
    %1771 = vmatprep.subr.mxu0 0.0
    %1772 = vmatpush1.msra.mxu0 %v437
    %1773 = vmatprep.subr.mxu0 0.0
    %1774 = vmatpush1.msra.mxu0 %v438
    %1775 = vmatprep.subr.mxu0 0.0
    %1776 = vmatpush1.msra.mxu0 0.0
    %1777 = vmatprep.subr.mxu0 0.0
    %1778 = vmatpush1.msra.mxu0 0.0
    %1779 = vmatprep.subr.mxu0 0.0
    %1780 = vmatpush1.msra.mxu0 0.0
    %1781 = vmatprep.subr.mxu0 0.0
    %1782 = vmatpush1.msra.mxu0 0.0
    %1783 = vmatprep.subr.mxu0 0.0
    %1784 = vmatpush1.msra.mxu0 0.0
    %1785 = vmatprep.subr.mxu0 0.0
    %1786 = vmatpush1.msra.mxu0 0.0
    %1787 = vmatprep.subr.mxu0 0.0
    %1788 = vmatpush1.msra.mxu0 0.0
    %1789 = vmatprep.subr.mxu0 0.0
    %1790 = vmatpush1.msra.mxu0 0.0
    %1791 = vmatprep.subr.mxu0 0.0
    %1792 = vmatpush1.msra.mxu0 0.0
    %1793 = vmatprep.subr.mxu0 0.0
    %1794 = vmatpush1.msra.mxu0 0.0
    %1795 = vmatprep.subr.mxu0 0.0
    %1796 = vmatpush1.msra.mxu0 0.0
    %1797 = vmatprep.subr.mxu0 0.0
    %1798 = vmatpush1.msra.mxu0 0.0
    %1799 = vmatprep.subr.mxu0 0.0
    %1800 = vmatpush1.msra.mxu0 0.0
    %1801 = vmatprep.subr.mxu0 0.0
    %1802 = vmatpush1.msra.mxu0 0.0
    %1803 = vmatprep.subr.mxu0 0.0
    %1804 = vmatpush1.msra.mxu0 0.0
    %1805 = vmatprep.subr.mxu0 0.0
    %1806 = vmatpush1.msra.mxu0 0.0
    %1807 = vmatprep.subr.mxu0 0.0
    %1808 = vmatpush1.msra.mxu0 0.0
    %1809 = vmatprep.subr.mxu0 0.0
    %1810 = vmatpush1.msra.mxu0 0.0
    %1811 = vmatprep.subr.mxu0 0.0
    %1812 = vmatpush1.msra.mxu0 0.0
    %1813 = vmatprep.subr.mxu0 0.0
    %1814 = vmatpush1.msra.mxu0 0.0
    %1815 = vmatprep.subr.mxu0 0.0
    %1816 = vmatpush1.msra.mxu0 0.0
    %1817 = vmatprep.subr.mxu0 0.0
    %1818 = vmatpush1.msra.mxu0 0.0
    %1819 = vmatprep.subr.mxu0 0.0
    %1820 = vmatpush1.msra.mxu0 0.0
    %1821 = vmatprep.subr.mxu0 0.0
    %1822 = vmatpush1.msra.mxu0 0.0
    %1823 = vmatprep.subr.mxu0 0.0
    %1824 = vmatpush1.msra.mxu0 0.0
    %1825 = vmatprep.subr.mxu0 0.0
    %1826 = vmatpush1.msra.mxu0 0.0
    %1827 = vmatprep.subr.mxu0 0.0
    %1828 = vmatpush1.msra.mxu0 0.0
    %1829 = vmatprep.mubr.f32.mxu0 0.0
    %1830 = vmatmul.mubr.f32.gmra.mrb[0].mxu0 %v1763
    %v1831 = vpop.f32.mrb[0].mxu0
    %v1832 = vadd.f32 %v1616, %v1831
    %v1833 = vpop.f32.mrb[0].mxu0
    %1834 = vdwg.mxu0
    %v1835 = vadd.f32 %v1832, %v1608
    %v1836 = vmax.f32 %v1835, 0.0
    %v1837 = vtanh.pop %v1836
    %v1839 = vsel %vm698, %v1837, 0
    %1841 = vmatprep.subr.mxu0 %v440
    %1842 = vmatpush1.msra.mxu0 %v439
    %1843 = vmatprep.subr.mxu0 0.0
    %1844 = vmatpush1.msra.mxu0 0.0
    %1845 = vmatprep.subr.mxu0 0.0
    %1846 = vmatpush1.msra.mxu0 0.0
    %1847 = vmatprep.subr.mxu0 0.0
    %1848 = vmatpush1.msra.mxu0 0.0
    %1849 = vmatprep.subr.mxu0 0.0
    %1850 = vmatpush1.msra.mxu0 0.0
    %1851 = vmatprep.subr.mxu0 0.0
    %1852 = vmatpush1.msra.mxu0 0.0
    %1853 = vmatprep.subr.mxu0 0.0
    %1854 = vmatpush1.msra.mxu0 0.0
    %1855 = vmatprep.subr.mxu0 0.0
    %1856 = vmatpush1.msra.mxu0 0.0
    %1857 = vmatprep.subr.mxu0 0.0
    %1858 = vmatpush1.msra.mxu0 0.0
    %1859 = vmatprep.subr.mxu0 0.0
    %1860 = vmatpush1.msra.mxu0 0.0
    %1861 = vmatprep.subr.mxu0 0.0
    %1862 = vmatpush1.msra.mxu0 0.0
    %1863 = vmatprep.subr.mxu0 0.0
    %1864 = vmatpush1.msra.mxu0 0.0
    %1865 = vmatprep.subr.mxu0 0.0
    %1866 = vmatpush1.msra.mxu0 0.0
    %1867 = vmatprep.subr.mxu0 0.0
    %1868 = vmatpush1.msra.mxu0 0.0
    %1869 = vmatprep.subr.mxu0 0.0
    %1870 = vmatpush1.msra.mxu0 0.0
    %1871 = vmatprep.subr.mxu0 0.0
    %1872 = vmatpush1.msra.mxu0 0.0
    %1873 = vmatprep.subr.mxu0 0.0
    %1874 = vmatpush1.msra.mxu0 0.0
    %1875 = vmatprep.subr.mxu0 0.0
    %1876 = vmatpush1.msra.mxu0 0.0
    %1877 = vmatprep.subr.mxu0 0.0
    %1878 = vmatpush1.msra.mxu0 0.0
    %1879 = vmatprep.subr.mxu0 0.0
    %1880 = vmatpush1.msra.mxu0 0.0
    %1881 = vmatprep.subr.mxu0 0.0
    %1882 = vmatpush1.msra.mxu0 0.0
    %1883 = vmatprep.subr.mxu0 0.0
    %1884 = vmatpush1.msra.mxu0 0.0
    %1885 = vmatprep.subr.mxu0 0.0
    %1886 = vmatpush1.msra.mxu0 0.0
    %1887 = vmatprep.subr.mxu0 0.0
    %1888 = vmatpush1.msra.mxu0 0.0
    %1889 = vmatprep.subr.mxu0 0.0
    %1890 = vmatpush1.msra.mxu0 0.0
    %1891 = vmatprep.subr.mxu0 0.0
    %1892 = vmatpush1.msra.mxu0 0.0
    %1893 = vmatprep.subr.mxu0 0.0
    %1894 = vmatpush1.msra.mxu0 0.0
    %1895 = vmatprep.subr.mxu0 0.0
    %1896 = vmatpush1.msra.mxu0 0.0
    %1897 = vmatprep.subr.mxu0 0.0
    %1898 = vmatpush1.msra.mxu0 0.0
    %1899 = vmatprep.subr.mxu0 0.0
    %1900 = vmatpush1.msra.mxu0 0.0
    %1901 = vmatprep.subr.mxu0 0.0
    %1902 = vmatpush1.msra.mxu0 0.0
    %1903 = vmatprep.subr.mxu0 0.0
    %1904 = vmatpush1.msra.mxu0 0.0
    %1905 = vmatprep.mubr.f32.mxu0 0.0
    %1906 = vmatmul.mubr.f32.gmra.mrb[0].mxu0 %v1839
    %v1907 = vpop.f32.mrb[0].mxu0
    %v1908 = vadd.f32 0.0, %v1907
    %v1909 = vpop.f32.mrb[0].mxu0
    %v1910 = vadd.f32 0.0, %v1909
    %1911 = vdwg.mxu0
    %v1912 = vadd.f32 %v1908, %v1617
    %v1913 = vadd.f32 %v1912, %v1755
    %v1914 = vmax.f32 %v1913, 0.0
    %v1915 = vtanh.pop %v1914
    %v1917 = vsel %vm471, %v1915, 0
    %1919 = vmatprep.subr.mxu0 %v442
    %1920 = vmatpush1.msra.mxu0 %v441
    %1921 = vmatprep.subr.mxu0 %v444
    %1922 = vmatpush1.msra.mxu0 %v443
    %1923 = vmatprep.subr.mxu0 %v446
    %1924 = vmatpush1.msra.mxu0 %v445
    %1925 = vmatprep.subr.mxu0 %v448
    %1926 = vmatpush1.msra.mxu0 %v447
    %1927 = vmatprep.subr.mxu0 %v450
    %1928 = vmatpush1.msra.mxu0 %v449
    %1929 = vmatprep.subr.mxu0 0.0
    %1930 = vmatpush1.msra.mxu0 0.0
    %1931 = vmatprep.subr.mxu0 0.0
    %1932 = vmatpush1.msra.mxu0 0.0
    %1933 = vmatprep.subr.mxu0 0.0
    %1934 = vmatpush1.msra.mxu0 0.0
    %1935 = vmatprep.subr.mxu0 0.0
    %1936 = vmatpush1.msra.mxu0 0.0
    %1937 = vmatprep.subr.mxu0 0.0
    %1938 = vmatpush1.msra.mxu0 0.0
    %1939 = vmatprep.subr.mxu0 0.0
    %1940 = vmatpush1.msra.mxu0 0.0
    %1941 = vmatprep.subr.mxu0 0.0
    %1942 = vmatpush1.msra.mxu0 0.0
    %1943 = vmatprep.subr.mxu0 0.0
    %1944 = vmatpush1.msra.mxu0 0.0
    %1945 = vmatprep.subr.mxu0 0.0
    %1946 = vmatpush1.msra.mxu0 0.0
    %1947 = vmatprep.subr.mxu0 0.0
    %1948 = vmatpush1.msra.mxu0 0.0
    %1949 = vmatprep.subr.mxu0 0.0
    %1950 = vmatpush1.msra.mxu0 0.0
    %1951 = vmatprep.subr.mxu0 0.0
    %1952 = vmatpush1.msra.mxu0 0.0
    %1953 = vmatprep.subr.mxu0 0.0
    %1954 = vmatpush1.msra.mxu0 0.0
    %1955 = vmatprep.subr.mxu0 0.0
    %1956 = vmatpush1.msra.mxu0 0.0
    %1957 = vmatprep.subr.mxu0 0.0
    %1958 = vmatpush1.msra.mxu0 0.0
    %1959 = vmatprep.subr.mxu0 0.0
    %1960 = vmatpush1.msra.mxu0 0.0
    %1961 = vmatprep.subr.mxu0 0.0
    %1962 = vmatpush1.msra.mxu0 0.0
    %1963 = vmatprep.subr.mxu0 0.0
    %1964 = vmatpush1.msra.mxu0 0.0
    %1965 = vmatprep.subr.mxu0 0.0
    %1966 = vmatpush1.msra.mxu0 0.0
    %1967 = vmatprep.subr.mxu0 0.0
    %1968 = vmatpush1.msra.mxu0 0.0
    %1969 = vmatprep.subr.mxu0 0.0
    %1970 = vmatpush1.msra.mxu0 0.0
    %1971 = vmatprep.subr.mxu0 0.0
    %1972 = vmatpush1.msra.mxu0 0.0
    %1973 = vmatprep.subr.mxu0 0.0
    %1974 = vmatpush1.msra.mxu0 0.0
    %1975 = vmatprep.subr.mxu0 0.0
    %1976 = vmatpush1.msra.mxu0 0.0
    %1977 = vmatprep.subr.mxu0 0.0
    %1978 = vmatpush1.msra.mxu0 0.0
    %1979 = vmatprep.subr.mxu0 0.0
    %1980 = vmatpush1.msra.mxu0 0.0
    %1981 = vmatprep.subr.mxu0 0.0
    %1982 = vmatpush1.msra.mxu0 0.0
    %1983 = vmatprep.mubr.f32.mxu0 0.0
    %1984 = vmatmul.mubr.f32.gmra.mrb[0].mxu0 %v1917
    %v1985 = vpop.f32.mrb[0].mxu0
    %v1986 = vadd.f32 %v456, %v1985
    %v1987 = vpop.f32.mrb[0].mxu0
    %v1988 = vadd.f32 %v460, %v1987
    %1989 = vdwg.mxu0
    %s1990 = scalar_lea.vmem [#allocation14], 24
    %1991 = vst [vmem:[%s1990] sm:$0xff] %v1986
    %s1992 = smul.u32 4, 3
    %s1993 = smul.addr %s1992, 8
    %s1994 = scalar_lea.vmem [#allocation2], %s1993
    %v1995 = vld [vmem:[%s1994] sm:$0xff]
    %v1996 = vld [vmem:[%s1994 + $0x8] sm:$0xff]
    %v1997 = vld [vmem:[%s1994 + $0x10] sm:$0xff]
    %1998 = vmatprep.subr.mxu0 0.0
    %1999 = vmatpush1.msra.mxu0 %v424
    %2000 = vmatprep.subr.mxu0 0.0
    %2001 = vmatpush1.msra.mxu0 %v425
    %2002 = vmatprep.subr.mxu0 0.0
    %2003 = vmatpush1.msra.mxu0 %v426
    %2004 = vmatprep.subr.mxu0 0.0
    %2005 = vmatpush1.msra.mxu0 %v427
    %2006 = vmatprep.subr.mxu0 0.0
    %2007 = vmatpush1.msra.mxu0 %v428
    %2008 = vmatprep.subr.mxu0 0.0
    %2009 = vmatpush1.msra.mxu0 0.0
    %2010 = vmatprep.subr.mxu0 0.0
    %2011 = vmatpush1.msra.mxu0 0.0
    %2012 = vmatprep.subr.mxu0 0.0
    %2013 = vmatpush1.msra.mxu0 0.0
    %2014 = vmatprep.subr.mxu0 0.0
    %2015 = vmatpush1.msra.mxu0 0.0
    %2016 = vmatprep.subr.mxu0 0.0
    %2017 = vmatpush1.msra.mxu0 0.0
    %2018 = vmatprep.subr.mxu0 0.0
    %2019 = vmatpush1.msra.mxu0 0.0
    %2020 = vmatprep.subr.mxu0 0.0
    %2021 = vmatpush1.msra.mxu0 0.0
    %2022 = vmatprep.subr.mxu0 0.0
    %2023 = vmatpush1.msra.mxu0 0.0
    %2024 = vmatprep.subr.mxu0 0.0
    %2025 = vmatpush1.msra.mxu0 0.0
    %2026 = vmatprep.subr.mxu0 0.0
    %2027 = vmatpush1.msra.mxu0 0.0
    %2028 = vmatprep.subr.mxu0 0.0
    %2029 = vmatpush1.msra.mxu0 0.0
    %2030 = vmatprep.subr.mxu0 0.0
    %2031 = vmatpush1.msra.mxu0 0.0
    %2032 = vmatprep.subr.mxu0 0.0
    %2033 = vmatpush1.msra.mxu0 0.0
    %2034 = vmatprep.subr.mxu0 0.0
    %2035 = vmatpush1.msra.mxu0 0.0
    %2036 = vmatprep.subr.mxu0 0.0
    %2037 = vmatpush1.msra.mxu0 0.0
    %2038 = vmatprep.subr.mxu0 0.0
    %2039 = vmatpush1.msra.mxu0 0.0
    %2040 = vmatprep.subr.mxu0 0.0
    %2041 = vmatpush1.msra.mxu0 0.0
    %2042 = vmatprep.subr.mxu0 0.0
    %2043 = vmatpush1.msra.mxu0 0.0
    %2044 = vmatprep.subr.mxu0 0.0
    %2045 = vmatpush1.msra.mxu0 0.0
    %2046 = vmatprep.subr.mxu0 0.0
    %2047 = vmatpush1.msra.mxu0 0.0
    %2048 = vmatprep.subr.mxu0 0.0
    %2049 = vmatpush1.msra.mxu0 0.0
    %2050 = vmatprep.subr.mxu0 0.0
    %2051 = vmatpush1.msra.mxu0 0.0
    %2052 = vmatprep.subr.mxu0 0.0
    %2053 = vmatpush1.msra.mxu0 0.0
    %2054 = vmatprep.subr.mxu0 0.0
    %2055 = vmatpush1.msra.mxu0 0.0
    %2056 = vmatprep.subr.mxu0 0.0
    %2057 = vmatpush1.msra.mxu0 0.0
    %2058 = vmatprep.subr.mxu0 0.0
    %2059 = vmatpush1.msra.mxu0 0.0
    %2060 = vmatprep.subr.mxu0 0.0
    %2061 = vmatpush1.msra.mxu0 0.0
    %2062 = vmatprep.mubr.f32.mxu0 0.0
    %2063 = vmatmul.mubr.f32.gmra.mrb[0].mxu0 %v1763
    %v2064 = vpop.f32.mrb[0].mxu0
    %v2065 = vadd.f32 0.0, %v2064
    %v2066 = vpop.f32.mrb[0].mxu0
    %2067 = vdwg.mxu0
    %2068 = vmatprep.subr.mxu0 0.0
    %2069 = vmatpush1.msra.mxu0 %v429
    %2070 = vmatprep.subr.mxu0 0.0
    %2071 = vmatpush1.msra.mxu0 %v430
    %2072 = vmatprep.subr.mxu0 0.0
    %2073 = vmatpush1.msra.mxu0 %v431
    %2074 = vmatprep.subr.mxu0 0.0
    %2075 = vmatpush1.msra.mxu0 %v432
    %2076 = vmatprep.subr.mxu0 0.0
    %2077 = vmatpush1.msra.mxu0 %v433
    %2078 = vmatprep.subr.mxu0 0.0
    %2079 = vmatpush1.msra.mxu0 0.0
    %2080 = vmatprep.subr.mxu0 0.0
    %2081 = vmatpush1.msra.mxu0 0.0
    %2082 = vmatprep.subr.mxu0 0.0
    %2083 = vmatpush1.msra.mxu0 0.0
    %2084 = vmatprep.subr.mxu0 0.0
    %2085 = vmatpush1.msra.mxu0 0.0
    %2086 = vmatprep.subr.mxu0 0.0
    %2087 = vmatpush1.msra.mxu0 0.0
    %2088 = vmatprep.subr.mxu0 0.0
    %2089 = vmatpush1.msra.mxu0 0.0
    %2090 = vmatprep.subr.mxu0 0.0
    %2091 = vmatpush1.msra.mxu0 0.0
    %2092 = vmatprep.subr.mxu0 0.0
    %2093 = vmatpush1.msra.mxu0 0.0
    %2094 = vmatprep.subr.mxu0 0.0
    %2095 = vmatpush1.msra.mxu0 0.0
    %2096 = vmatprep.subr.mxu0 0.0
    %2097 = vmatpush1.msra.mxu0 0.0
    %2098 = vmatprep.subr.mxu0 0.0
    %2099 = vmatpush1.msra.mxu0 0.0
    %2100 = vmatprep.subr.mxu0 0.0
    %2101 = vmatpush1.msra.mxu0 0.0
    %2102 = vmatprep.subr.mxu0 0.0
    %2103 = vmatpush1.msra.mxu0 0.0
    %2104 = vmatprep.subr.mxu0 0.0
    %2105 = vmatpush1.msra.mxu0 0.0
    %2106 = vmatprep.subr.mxu0 0.0
    %2107 = vmatpush1.msra.mxu0 0.0
    %2108 = vmatprep.subr.mxu0 0.0
    %2109 = vmatpush1.msra.mxu0 0.0
    %2110 = vmatprep.subr.mxu0 0.0
    %2111 = vmatpush1.msra.mxu0 0.0
    %2112 = vmatprep.subr.mxu0 0.0
    %2113 = vmatpush1.msra.mxu0 0.0
    %2114 = vmatprep.subr.mxu0 0.0
    %2115 = vmatpush1.msra.mxu0 0.0
    %2116 = vmatprep.subr.mxu0 0.0
    %2117 = vmatpush1.msra.mxu0 0.0
    %2118 = vmatprep.subr.mxu0 0.0
    %2119 = vmatpush1.msra.mxu0 0.0
    %2120 = vmatprep.subr.mxu0 0.0
    %2121 = vmatpush1.msra.mxu0 0.0
    %2122 = vmatprep.subr.mxu0 0.0
    %2123 = vmatpush1.msra.mxu0 0.0
    %2124 = vmatprep.subr.mxu0 0.0
    %2125 = vmatpush1.msra.mxu0 0.0
    %2126 = vmatprep.subr.mxu0 0.0
    %2127 = vmatpush1.msra.mxu0 0.0
    %2128 = vmatprep.subr.mxu0 0.0
    %2129 = vmatpush1.msra.mxu0 0.0
    %2130 = vmatprep.subr.mxu0 0.0
    %2131 = vmatpush1.msra.mxu0 0.0
    %2132 = vmatprep.mubr.f32.mxu0 0.0
    %2133 = vmatmul.mubr.f32.gmra.mrb[0].mxu0 %v1917
    %v2134 = vpop.f32.mrb[0].mxu0
    %v2135 = vadd.f32 0.0, %v2134
    %v2136 = vpop.f32.mrb[0].mxu0
    %2137 = vdwg.mxu0
    %v2138 = vadd.f32 %v1995, %v1910
    %v2139 = vadd.f32 %v2138, %v2065
    %v2140 = vmax.f32 %v2139, 0.0
    %v2141 = vtanh.pop %v2140
    %v2143 = vsel %vm471, %v2141, 0
    %2145 = vmatprep.subr.mxu0 0.0
    %2146 = vmatpush1.msra.mxu0 %v434
    %2147 = vmatprep.subr.mxu0 0.0
    %2148 = vmatpush1.msra.mxu0 %v435
    %2149 = vmatprep.subr.mxu0 0.0
    %2150 = vmatpush1.msra.mxu0 %v436
    %2151 = vmatprep.subr.mxu0 0.0
    %2152 = vmatpush1.msra.mxu0 %v437
    %2153 = vmatprep.subr.mxu0 0.0
    %2154 = vmatpush1.msra.mxu0 %v438
    %2155 = vmatprep.subr.mxu0 0.0
    %2156 = vmatpush1.msra.mxu0 0.0
    %2157 = vmatprep.subr.mxu0 0.0
    %2158 = vmatpush1.msra.mxu0 0.0
    %2159 = vmatprep.subr.mxu0 0.0
    %2160 = vmatpush1.msra.mxu0 0.0
    %2161 = vmatprep.subr.mxu0 0.0
    %2162 = vmatpush1.msra.mxu0 0.0
    %2163 = vmatprep.subr.mxu0 0.0
    %2164 = vmatpush1.msra.mxu0 0.0
    %2165 = vmatprep.subr.mxu0 0.0
    %2166 = vmatpush1.msra.mxu0 0.0
    %2167 = vmatprep.subr.mxu0 0.0
    %2168 = vmatpush1.msra.mxu0 0.0
    %2169 = vmatprep.subr.mxu0 0.0
    %2170 = vmatpush1.msra.mxu0 0.0
    %2171 = vmatprep.subr.mxu0 0.0
    %2172 = vmatpush1.msra.mxu0 0.0
    %2173 = vmatprep.subr.mxu0 0.0
    %2174 = vmatpush1.msra.mxu0 0.0
    %2175 = vmatprep.subr.mxu0 0.0
    %2176 = vmatpush1.msra.mxu0 0.0
    %2177 = vmatprep.subr.mxu0 0.0
    %2178 = vmatpush1.msra.mxu0 0.0
    %2179 = vmatprep.subr.mxu0 0.0
    %2180 = vmatpush1.msra.mxu0 0.0
    %2181 = vmatprep.subr.mxu0 0.0
    %2182 = vmatpush1.msra.mxu0 0.0
    %2183 = vmatprep.subr.mxu0 0.0
    %2184 = vmatpush1.msra.mxu0 0.0
    %2185 = vmatprep.subr.mxu0 0.0
    %2186 = vmatpush1.msra.mxu0 0.0
    %2187 = vmatprep.subr.mxu0 0.0
    %2188 = vmatpush1.msra.mxu0 0.0
    %2189 = vmatprep.subr.mxu0 0.0
    %2190 = vmatpush1.msra.mxu0 0.0
    %2191 = vmatprep.subr.mxu0 0.0
    %2192 = vmatpush1.msra.mxu0 0.0
    %2193 = vmatprep.subr.mxu0 0.0
    %2194 = vmatpush1.msra.mxu0 0.0
    %2195 = vmatprep.subr.mxu0 0.0
    %2196 = vmatpush1.msra.mxu0 0.0
    %2197 = vmatprep.subr.mxu0 0.0
    %2198 = vmatpush1.msra.mxu0 0.0
    %2199 = vmatprep.subr.mxu0 0.0
    %2200 = vmatpush1.msra.mxu0 0.0
    %2201 = vmatprep.subr.mxu0 0.0
    %2202 = vmatpush1.msra.mxu0 0.0
    %2203 = vmatprep.subr.mxu0 0.0
    %2204 = vmatpush1.msra.mxu0 0.0
    %2205 = vmatprep.subr.mxu0 0.0
    %2206 = vmatpush1.msra.mxu0 0.0
    %2207 = vmatprep.subr.mxu0 0.0
    %2208 = vmatpush1.msra.mxu0 0.0
    %2209 = vmatprep.mubr.f32.mxu0 0.0
    %2210 = vmatmul.mubr.f32.gmra.mrb[0].mxu0 %v2143
    %v2211 = vpop.f32.mrb[0].mxu0
    %v2212 = vadd.f32 %v1996, %v2211
    %v2213 = vpop.f32.mrb[0].mxu0
    %2214 = vdwg.mxu0
    %v2215 = vadd.f32 %v2212, %v1988
    %v2216 = vmax.f32 %v2215, 0.0
    %v2217 = vtanh.pop %v2216
    %v2219 = vsel %vm698, %v2217, 0
    %2221 = vmatprep.subr.mxu0 %v440
    %2222 = vmatpush1.msra.mxu0 %v439
    %2223 = vmatprep.subr.mxu0 0.0
    %2224 = vmatpush1.msra.mxu0 0.0
    %2225 = vmatprep.subr.mxu0 0.0
    %2226 = vmatpush1.msra.mxu0 0.0
    %2227 = vmatprep.subr.mxu0 0.0
    %2228 = vmatpush1.msra.mxu0 0.0
    %2229 = vmatprep.subr.mxu0 0.0
    %2230 = vmatpush1.msra.mxu0 0.0
    %2231 = vmatprep.subr.mxu0 0.0
    %2232 = vmatpush1.msra.mxu0 0.0
    %2233 = vmatprep.subr.mxu0 0.0
    %2234 = vmatpush1.msra.mxu0 0.0
    %2235 = vmatprep.subr.mxu0 0.0
    %2236 = vmatpush1.msra.mxu0 0.0
    %2237 = vmatprep.subr.mxu0 0.0
    %2238 = vmatpush1.msra.mxu0 0.0
    %2239 = vmatprep.subr.mxu0 0.0
    %2240 = vmatpush1.msra.mxu0 0.0
    %2241 = vmatprep.subr.mxu0 0.0
    %2242 = vmatpush1.msra.mxu0 0.0
    %2243 = vmatprep.subr.mxu0 0.0
    %2244 = vmatpush1.msra.mxu0 0.0
    %2245 = vmatprep.subr.mxu0 0.0
    %2246 = vmatpush1.msra.mxu0 0.0
    %2247 = vmatprep.subr.mxu0 0.0
    %2248 = vmatpush1.msra.mxu0 0.0
    %2249 = vmatprep.subr.mxu0 0.0
    %2250 = vmatpush1.msra.mxu0 0.0
    %2251 = vmatprep.subr.mxu0 0.0
    %2252 = vmatpush1.msra.mxu0 0.0
    %2253 = vmatprep.subr.mxu0 0.0
    %2254 = vmatpush1.msra.mxu0 0.0
    %2255 = vmatprep.subr.mxu0 0.0
    %2256 = vmatpush1.msra.mxu0 0.0
    %2257 = vmatprep.subr.mxu0 0.0
    %2258 = vmatpush1.msra.mxu0 0.0
    %2259 = vmatprep.subr.mxu0 0.0
    %2260 = vmatpush1.msra.mxu0 0.0
    %2261 = vmatprep.subr.mxu0 0.0
    %2262 = vmatpush1.msra.mxu0 0.0
    %2263 = vmatprep.subr.mxu0 0.0
    %2264 = vmatpush1.msra.mxu0 0.0
    %2265 = vmatprep.subr.mxu0 0.0
    %2266 = vmatpush1.msra.mxu0 0.0
    %2267 = vmatprep.subr.mxu0 0.0
    %2268 = vmatpush1.msra.mxu0 0.0
    %2269 = vmatprep.subr.mxu0 0.0
    %2270 = vmatpush1.msra.mxu0 0.0
    %2271 = vmatprep.subr.mxu0 0.0
    %2272 = vmatpush1.msra.mxu0 0.0
    %2273 = vmatprep.subr.mxu0 0.0
    %2274 = vmatpush1.msra.mxu0 0.0
    %2275 = vmatprep.subr.mxu0 0.0
    %2276 = vmatpush1.msra.mxu0 0.0
    %2277 = vmatprep.subr.mxu0 0.0
    %2278 = vmatpush1.msra.mxu0 0.0
    %2279 = vmatprep.subr.mxu0 0.0
    %2280 = vmatpush1.msra.mxu0 0.0
    %2281 = vmatprep.subr.mxu0 0.0
    %2282 = vmatpush1.msra.mxu0 0.0
    %2283 = vmatprep.subr.mxu0 0.0
    %2284 = vmatpush1.msra.mxu0 0.0
    %2285 = vmatprep.mubr.f32.mxu0 0.0
    %2286 = vmatmul.mubr.f32.gmra.mrb[0].mxu0 %v2219
    %v2287 = vpop.f32.mrb[0].mxu0
    %v2288 = vadd.f32 0.0, %v2287
    %v2289 = vpop.f32.mrb[0].mxu0
    %v2290 = vadd.f32 0.0, %v2289
    %2291 = vdwg.mxu0
    %v2292 = vadd.f32 %v2288, %v1997
    %v2293 = vadd.f32 %v2292, %v2135
    %v2294 = vmax.f32 %v2293, 0.0
    %v2295 = vtanh.pop %v2294
    %v2297 = vsel %vm471, %v2295, 0
    %2299 = vmatprep.subr.mxu0 %v442
    %2300 = vmatpush1.msra.mxu0 %v441
    %2301 = vmatprep.subr.mxu0 %v444
    %2302 = vmatpush1.msra.mxu0 %v443
    %2303 = vmatprep.subr.mxu0 %v446
    %2304 = vmatpush1.msra.mxu0 %v445
    %2305 = vmatprep.subr.mxu0 %v448
    %2306 = vmatpush1.msra.mxu0 %v447
    %2307 = vmatprep.subr.mxu0 %v450
    %2308 = vmatpush1.msra.mxu0 %v449
    %2309 = vmatprep.subr.mxu0 0.0
    %2310 = vmatpush1.msra.mxu0 0.0
    %2311 = vmatprep.subr.mxu0 0.0
    %2312 = vmatpush1.msra.mxu0 0.0
    %2313 = vmatprep.subr.mxu0 0.0
    %2314 = vmatpush1.msra.mxu0 0.0
    %2315 = vmatprep.subr.mxu0 0.0
    %2316 = vmatpush1.msra.mxu0 0.0
    %2317 = vmatprep.subr.mxu0 0.0
    %2318 = vmatpush1.msra.mxu0 0.0
    %2319 = vmatprep.subr.mxu0 0.0
    %2320 = vmatpush1.msra.mxu0 0.0
    %2321 = vmatprep.subr.mxu0 0.0
    %2322 = vmatpush1.msra.mxu0 0.0
    %2323 = vmatprep.subr.mxu0 0.0
    %2324 = vmatpush1.msra.mxu0 0.0
    %2325 = vmatprep.subr.mxu0 0.0
    %2326 = vmatpush1.msra.mxu0 0.0
    %2327 = vmatprep.subr.mxu0 0.0
    %2328 = vmatpush1.msra.mxu0 0.0
    %2329 = vmatprep.subr.mxu0 0.0
    %2330 = vmatpush1.msra.mxu0 0.0
    %2331 = vmatprep.subr.mxu0 0.0
    %2332 = vmatpush1.msra.mxu0 0.0
    %2333 = vmatprep.subr.mxu0 0.0
    %2334 = vmatpush1.msra.mxu0 0.0
    %2335 = vmatprep.subr.mxu0 0.0
    %2336 = vmatpush1.msra.mxu0 0.0
    %2337 = vmatprep.subr.mxu0 0.0
    %2338 = vmatpush1.msra.mxu0 0.0
    %2339 = vmatprep.subr.mxu0 0.0
    %2340 = vmatpush1.msra.mxu0 0.0
    %2341 = vmatprep.subr.mxu0 0.0
    %2342 = vmatpush1.msra.mxu0 0.0
    %2343 = vmatprep.subr.mxu0 0.0
    %2344 = vmatpush1.msra.mxu0 0.0
    %2345 = vmatprep.subr.mxu0 0.0
    %2346 = vmatpush1.msra.mxu0 0.0
    %2347 = vmatprep.subr.mxu0 0.0
    %2348 = vmatpush1.msra.mxu0 0.0
    %2349 = vmatprep.subr.mxu0 0.0
    %2350 = vmatpush1.msra.mxu0 0.0
    %2351 = vmatprep.subr.mxu0 0.0
    %2352 = vmatpush1.msra.mxu0 0.0
    %2353 = vmatprep.subr.mxu0 0.0
    %2354 = vmatpush1.msra.mxu0 0.0
    %2355 = vmatprep.subr.mxu0 0.0
    %2356 = vmatpush1.msra.mxu0 0.0
    %2357 = vmatprep.subr.mxu0 0.0
    %2358 = vmatpush1.msra.mxu0 0.0
    %2359 = vmatprep.subr.mxu0 0.0
    %2360 = vmatpush1.msra.mxu0 0.0
    %2361 = vmatprep.subr.mxu0 0.0
    %2362 = vmatpush1.msra.mxu0 0.0
    %2363 = vmatprep.mubr.f32.mxu0 0.0
    %2364 = vmatmul.mubr.f32.gmra.mrb[0].mxu0 %v2297
    %v2365 = vpop.f32.mrb[0].mxu0
    %v2366 = vadd.f32 %v456, %v2365
    %v2367 = vpop.f32.mrb[0].mxu0
    %v2368 = vadd.f32 %v460, %v2367
    %2369 = vdwg.mxu0
    %s2370 = scalar_lea.vmem [#allocation14], 32
    %2371 = vst [vmem:[%s2370] sm:$0xff] %v2366
    %s2372 = smul.u32 5, 3
    %s2373 = smul.addr %s2372, 8
    %s2374 = scalar_lea.vmem [#allocation2], %s2373
    %v2375 = vld [vmem:[%s2374] sm:$0xff]
    %v2376 = vld [vmem:[%s2374 + $0x8] sm:$0xff]
    %v2377 = vld [vmem:[%s2374 + $0x10] sm:$0xff]
    %2378 = vmatprep.subr.mxu0 0.0
    %2379 = vmatpush1.msra.mxu0 %v424
    %2380 = vmatprep.subr.mxu0 0.0
    %2381 = vmatpush1.msra.mxu0 %v425
    %2382 = vmatprep.subr.mxu0 0.0
    %2383 = vmatpush1.msra.mxu0 %v426
    %2384 = vmatprep.subr.mxu0 0.0
    %2385 = vmatpush1.msra.mxu0 %v427
    %2386 = vmatprep.subr.mxu0 0.0
    %2387 = vmatpush1.msra.mxu0 %v428
    %2388 = vmatprep.subr.mxu0 0.0
    %2389 = vmatpush1.msra.mxu0 0.0
    %2390 = vmatprep.subr.mxu0 0.0
    %2391 = vmatpush1.msra.mxu0 0.0
    %2392 = vmatprep.subr.mxu0 0.0
    %2393 = vmatpush1.msra.mxu0 0.0
    %2394 = vmatprep.subr.mxu0 0.0
    %2395 = vmatpush1.msra.mxu0 0.0
    %2396 = vmatprep.subr.mxu0 0.0
    %2397 = vmatpush1.msra.mxu0 0.0
    %2398 = vmatprep.subr.mxu0 0.0
    %2399 = vmatpush1.msra.mxu0 0.0
    %2400 = vmatprep.subr.mxu0 0.0
    %2401 = vmatpush1.msra.mxu0 0.0
    %2402 = vmatprep.subr.mxu0 0.0
    %2403 = vmatpush1.msra.mxu0 0.0
    %2404 = vmatprep.subr.mxu0 0.0
    %2405 = vmatpush1.msra.mxu0 0.0
    %2406 = vmatprep.subr.mxu0 0.0
    %2407 = vmatpush1.msra.mxu0 0.0
    %2408 = vmatprep.subr.mxu0 0.0
    %2409 = vmatpush1.msra.mxu0 0.0
    %2410 = vmatprep.subr.mxu0 0.0
    %2411 = vmatpush1.msra.mxu0 0.0
    %2412 = vmatprep.subr.mxu0 0.0
    %2413 = vmatpush1.msra.mxu0 0.0
    %2414 = vmatprep.subr.mxu0 0.0
    %2415 = vmatpush1.msra.mxu0 0.0
    %2416 = vmatprep.subr.mxu0 0.0
    %2417 = vmatpush1.msra.mxu0 0.0
    %2418 = vmatprep.subr.mxu0 0.0
    %2419 = vmatpush1.msra.mxu0 0.0
    %2420 = vmatprep.subr.mxu0 0.0
    %2421 = vmatpush1.msra.mxu0 0.0
    %2422 = vmatprep.subr.mxu0 0.0
    %2423 = vmatpush1.msra.mxu0 0.0
    %2424 = vmatprep.subr.mxu0 0.0
    %2425 = vmatpush1.msra.mxu0 0.0
    %2426 = vmatprep.subr.mxu0 0.0
    %2427 = vmatpush1.msra.mxu0 0.0
    %2428 = vmatprep.subr.mxu0 0.0
    %2429 = vmatpush1.msra.mxu0 0.0
    %2430 = vmatprep.subr.mxu0 0.0
    %2431 = vmatpush1.msra.mxu0 0.0
    %2432 = vmatprep.subr.mxu0 0.0
    %2433 = vmatpush1.msra.mxu0 0.0
    %2434 = vmatprep.subr.mxu0 0.0
    %2435 = vmatpush1.msra.mxu0 0.0
    %2436 = vmatprep.subr.mxu0 0.0
    %2437 = vmatpush1.msra.mxu0 0.0
    %2438 = vmatprep.subr.mxu0 0.0
    %2439 = vmatpush1.msra.mxu0 0.0
    %2440 = vmatprep.subr.mxu0 0.0
    %2441 = vmatpush1.msra.mxu0 0.0
    %2442 = vmatprep.mubr.f32.mxu0 0.0
    %2443 = vmatmul.mubr.f32.gmra.mrb[0].mxu0 %v2143
    %v2444 = vpop.f32.mrb[0].mxu0
    %v2445 = vadd.f32 0.0, %v2444
    %v2446 = vpop.f32.mrb[0].mxu0
    %2447 = vdwg.mxu0
    %2448 = vmatprep.subr.mxu0 0.0
    %2449 = vmatpush1.msra.mxu0 %v429
    %2450 = vmatprep.subr.mxu0 0.0
    %2451 = vmatpush1.msra.mxu0 %v430
    %2452 = vmatprep.subr.mxu0 0.0
    %2453 = vmatpush1.msra.mxu0 %v431
    %2454 = vmatprep.subr.mxu0 0.0
    %2455 = vmatpush1.msra.mxu0 %v432
    %2456 = vmatprep.subr.mxu0 0.0
    %2457 = vmatpush1.msra.mxu0 %v433
    %2458 = vmatprep.subr.mxu0 0.0
    %2459 = vmatpush1.msra.mxu0 0.0
    %2460 = vmatprep.subr.mxu0 0.0
    %2461 = vmatpush1.msra.mxu0 0.0
    %2462 = vmatprep.subr.mxu0 0.0
    %2463 = vmatpush1.msra.mxu0 0.0
    %2464 = vmatprep.subr.mxu0 0.0
    %2465 = vmatpush1.msra.mxu0 0.0
    %2466 = vmatprep.subr.mxu0 0.0
    %2467 = vmatpush1.msra.mxu0 0.0
    %2468 = vmatprep.subr.mxu0 0.0
    %2469 = vmatpush1.msra.mxu0 0.0
    %2470 = vmatprep.subr.mxu0 0.0
    %2471 = vmatpush1.msra.mxu0 0.0
    %2472 = vmatprep.subr.mxu0 0.0
    %2473 = vmatpush1.msra.mxu0 0.0
    %2474 = vmatprep.subr.mxu0 0.0
    %2475 = vmatpush1.msra.mxu0 0.0
    %2476 = vmatprep.subr.mxu0 0.0
    %2477 = vmatpush1.msra.mxu0 0.0
    %2478 = vmatprep.subr.mxu0 0.0
    %2479 = vmatpush1.msra.mxu0 0.0
    %2480 = vmatprep.subr.mxu0 0.0
    %2481 = vmatpush1.msra.mxu0 0.0
    %2482 = vmatprep.subr.mxu0 0.0
    %2483 = vmatpush1.msra.mxu0 0.0
    %2484 = vmatprep.subr.mxu0 0.0
    %2485 = vmatpush1.msra.mxu0 0.0
    %2486 = vmatprep.subr.mxu0 0.0
    %2487 = vmatpush1.msra.mxu0 0.0
    %2488 = vmatprep.subr.mxu0 0.0
    %2489 = vmatpush1.msra.mxu0 0.0
    %2490 = vmatprep.subr.mxu0 0.0
    %2491 = vmatpush1.msra.mxu0 0.0
    %2492 = vmatprep.subr.mxu0 0.0
    %2493 = vmatpush1.msra.mxu0 0.0
    %2494 = vmatprep.subr.mxu0 0.0
    %2495 = vmatpush1.msra.mxu0 0.0
    %2496 = vmatprep.subr.mxu0 0.0
    %2497 = vmatpush1.msra.mxu0 0.0
    %2498 = vmatprep.subr.mxu0 0.0
    %2499 = vmatpush1.msra.mxu0 0.0
    %2500 = vmatprep.subr.mxu0 0.0
    %2501 = vmatpush1.msra.mxu0 0.0
    %2502 = vmatprep.subr.mxu0 0.0
    %2503 = vmatpush1.msra.mxu0 0.0
    %2504 = vmatprep.subr.mxu0 0.0
    %2505 = vmatpush1.msra.mxu0 0.0
    %2506 = vmatprep.subr.mxu0 0.0
    %2507 = vmatpush1.msra.mxu0 0.0
    %2508 = vmatprep.subr.mxu0 0.0
    %2509 = vmatpush1.msra.mxu0 0.0
    %2510 = vmatprep.subr.mxu0 0.0
    %2511 = vmatpush1.msra.mxu0 0.0
    %2512 = vmatprep.mubr.f32.mxu0 0.0
    %2513 = vmatmul.mubr.f32.gmra.mrb[0].mxu0 %v2297
    %v2514 = vpop.f32.mrb[0].mxu0
    %v2515 = vadd.f32 0.0, %v2514
    %v2516 = vpop.f32.mrb[0].mxu0
    %2517 = vdwg.mxu0
    %v2518 = vadd.f32 %v2375, %v2290
    %v2519 = vadd.f32 %v2518, %v2445
    %v2520 = vmax.f32 %v2519, 0.0
    %v2521 = vtanh.pop %v2520
    %v2523 = vsel %vm471, %v2521, 0
    %2525 = vmatprep.subr.mxu0 0.0
    %2526 = vmatpush1.msra.mxu0 %v434
    %2527 = vmatprep.subr.mxu0 0.0
    %2528 = vmatpush1.msra.mxu0 %v435
    %2529 = vmatprep.subr.mxu0 0.0
    %2530 = vmatpush1.msra.mxu0 %v436
    %2531 = vmatprep.subr.mxu0 0.0
    %2532 = vmatpush1.msra.mxu0 %v437
    %2533 = vmatprep.subr.mxu0 0.0
    %2534 = vmatpush1.msra.mxu0 %v438
    %2535 = vmatprep.subr.mxu0 0.0
    %2536 = vmatpush1.msra.mxu0 0.0
    %2537 = vmatprep.subr.mxu0 0.0
    %2538 = vmatpush1.msra.mxu0 0.0
    %2539 = vmatprep.subr.mxu0 0.0
    %2540 = vmatpush1.msra.mxu0 0.0
    %2541 = vmatprep.subr.mxu0 0.0
    %2542 = vmatpush1.msra.mxu0 0.0
    %2543 = vmatprep.subr.mxu0 0.0
    %2544 = vmatpush1.msra.mxu0 0.0
    %2545 = vmatprep.subr.mxu0 0.0
    %2546 = vmatpush1.msra.mxu0 0.0
    %2547 = vmatprep.subr.mxu0 0.0
    %2548 = vmatpush1.msra.mxu0 0.0
    %2549 = vmatprep.subr.mxu0 0.0
    %2550 = vmatpush1.msra.mxu0 0.0
    %2551 = vmatprep.subr.mxu0 0.0
    %2552 = vmatpush1.msra.mxu0 0.0
    %2553 = vmatprep.subr.mxu0 0.0
    %2554 = vmatpush1.msra.mxu0 0.0
    %2555 = vmatprep.subr.mxu0 0.0
    %2556 = vmatpush1.msra.mxu0 0.0
    %2557 = vmatprep.subr.mxu0 0.0
    %2558 = vmatpush1.msra.mxu0 0.0
    %2559 = vmatprep.subr.mxu0 0.0
    %2560 = vmatpush1.msra.mxu0 0.0
    %2561 = vmatprep.subr.mxu0 0.0
    %2562 = vmatpush1.msra.mxu0 0.0
    %2563 = vmatprep.subr.mxu0 0.0
    %2564 = vmatpush1.msra.mxu0 0.0
    %2565 = vmatprep.subr.mxu0 0.0
    %2566 = vmatpush1.msra.mxu0 0.0
    %2567 = vmatprep.subr.mxu0 0.0
    %2568 = vmatpush1.msra.mxu0 0.0
    %2569 = vmatprep.subr.mxu0 0.0
    %2570 = vmatpush1.msra.mxu0 0.0
    %2571 = vmatprep.subr.mxu0 0.0
    %2572 = vmatpush1.msra.mxu0 0.0
    %2573 = vmatprep.subr.mxu0 0.0
    %2574 = vmatpush1.msra.mxu0 0.0
    %2575 = vmatprep.subr.mxu0 0.0
    %2576 = vmatpush1.msra.mxu0 0.0
    %2577 = vmatprep.subr.mxu0 0.0
    %2578 = vmatpush1.msra.mxu0 0.0
    %2579 = vmatprep.subr.mxu0 0.0
    %2580 = vmatpush1.msra.mxu0 0.0
    %2581 = vmatprep.subr.mxu0 0.0
    %2582 = vmatpush1.msra.mxu0 0.0
    %2583 = vmatprep.subr.mxu0 0.0
    %2584 = vmatpush1.msra.mxu0 0.0
    %2585 = vmatprep.subr.mxu0 0.0
    %2586 = vmatpush1.msra.mxu0 0.0
    %2587 = vmatprep.subr.mxu0 0.0
    %2588 = vmatpush1.msra.mxu0 0.0
    %2589 = vmatprep.mubr.f32.mxu0 0.0
    %2590 = vmatmul.mubr.f32.gmra.mrb[0].mxu0 %v2523
    %v2591 = vpop.f32.mrb[0].mxu0
    %v2592 = vadd.f32 %v2376, %v2591
    %v2593 = vpop.f32.mrb[0].mxu0
    %2594 = vdwg.mxu0
    %v2595 = vadd.f32 %v2592, %v2368
    %v2596 = vmax.f32 %v2595, 0.0
    %v2597 = vtanh.pop %v2596
    %v2599 = vsel %vm698, %v2597, 0
    %2601 = vmatprep.subr.mxu0 %v440
    %2602 = vmatpush1.msra.mxu0 %v439
    %2603 = vmatprep.subr.mxu0 0.0
    %2604 = vmatpush1.msra.mxu0 0.0
    %2605 = vmatprep.subr.mxu0 0.0
    %2606 = vmatpush1.msra.mxu0 0.0
    %2607 = vmatprep.subr.mxu0 0.0
    %2608 = vmatpush1.msra.mxu0 0.0
    %2609 = vmatprep.subr.mxu0 0.0
    %2610 = vmatpush1.msra.mxu0 0.0
    %2611 = vmatprep.subr.mxu0 0.0
    %2612 = vmatpush1.msra.mxu0 0.0
    %2613 = vmatprep.subr.mxu0 0.0
    %2614 = vmatpush1.msra.mxu0 0.0
    %2615 = vmatprep.subr.mxu0 0.0
    %2616 = vmatpush1.msra.mxu0 0.0
    %2617 = vmatprep.subr.mxu0 0.0
    %2618 = vmatpush1.msra.mxu0 0.0
    %2619 = vmatprep.subr.mxu0 0.0
    %2620 = vmatpush1.msra.mxu0 0.0
    %2621 = vmatprep.subr.mxu0 0.0
    %2622 = vmatpush1.msra.mxu0 0.0
    %2623 = vmatprep.subr.mxu0 0.0
    %2624 = vmatpush1.msra.mxu0 0.0
    %2625 = vmatprep.subr.mxu0 0.0
    %2626 = vmatpush1.msra.mxu0 0.0
    %2627 = vmatprep.subr.mxu0 0.0
    %2628 = vmatpush1.msra.mxu0 0.0
    %2629 = vmatprep.subr.mxu0 0.0
    %2630 = vmatpush1.msra.mxu0 0.0
    %2631 = vmatprep.subr.mxu0 0.0
    %2632 = vmatpush1.msra.mxu0 0.0
    %2633 = vmatprep.subr.mxu0 0.0
    %2634 = vmatpush1.msra.mxu0 0.0
    %2635 = vmatprep.subr.mxu0 0.0
    %2636 = vmatpush1.msra.mxu0 0.0
    %2637 = vmatprep.subr.mxu0 0.0
    %2638 = vmatpush1.msra.mxu0 0.0
    %2639 = vmatprep.subr.mxu0 0.0
    %2640 = vmatpush1.msra.mxu0 0.0
    %2641 = vmatprep.subr.mxu0 0.0
    %2642 = vmatpush1.msra.mxu0 0.0
    %2643 = vmatprep.subr.mxu0 0.0
    %2644 = vmatpush1.msra.mxu0 0.0
    %2645 = vmatprep.subr.mxu0 0.0
    %2646 = vmatpush1.msra.mxu0 0.0
    %2647 = vmatprep.subr.mxu0 0.0
    %2648 = vmatpush1.msra.mxu0 0.0
    %2649 = vmatprep.subr.mxu0 0.0
    %2650 = vmatpush1.msra.mxu0 0.0
    %2651 = vmatprep.subr.mxu0 0.0
    %2652 = vmatpush1.msra.mxu0 0.0
    %2653 = vmatprep.subr.mxu0 0.0
    %2654 = vmatpush1.msra.mxu0 0.0
    %2655 = vmatprep.subr.mxu0 0.0
    %2656 = vmatpush1.msra.mxu0 0.0
    %2657 = vmatprep.subr.mxu0 0.0
    %2658 = vmatpush1.msra.mxu0 0.0
    %2659 = vmatprep.subr.mxu0 0.0
    %2660 = vmatpush1.msra.mxu0 0.0
    %2661 = vmatprep.subr.mxu0 0.0
    %2662 = vmatpush1.msra.mxu0 0.0
    %2663 = vmatprep.subr.mxu0 0.0
    %2664 = vmatpush1.msra.mxu0 0.0
    %2665 = vmatprep.mubr.f32.mxu0 0.0
    %2666 = vmatmul.mubr.f32.gmra.mrb[0].mxu0 %v2599
    %v2667 = vpop.f32.mrb[0].mxu0
    %v2668 = vadd.f32 0.0, %v2667
    %v2669 = vpop.f32.mrb[0].mxu0
    %v2670 = vadd.f32 0.0, %v2669
    %2671 = vdwg.mxu0
    %v2672 = vadd.f32 %v2668, %v2377
    %v2673 = vadd.f32 %v2672, %v2515
    %v2674 = vmax.f32 %v2673, 0.0
    %v2675 = vtanh.pop %v2674
    %v2677 = vsel %vm471, %v2675, 0
    %2679 = vmatprep.subr.mxu0 %v442
    %2680 = vmatpush1.msra.mxu0 %v441
    %2681 = vmatprep.subr.mxu0 %v444
    %2682 = vmatpush1.msra.mxu0 %v443
    %2683 = vmatprep.subr.mxu0 %v446
    %2684 = vmatpush1.msra.mxu0 %v445
    %2685 = vmatprep.subr.mxu0 %v448
    %2686 = vmatpush1.msra.mxu0 %v447
    %2687 = vmatprep.subr.mxu0 %v450
    %2688 = vmatpush1.msra.mxu0 %v449
    %2689 = vmatprep.subr.mxu0 0.0
    %2690 = vmatpush1.msra.mxu0 0.0
    %2691 = vmatprep.subr.mxu0 0.0
    %2692 = vmatpush1.msra.mxu0 0.0
    %2693 = vmatprep.subr.mxu0 0.0
    %2694 = vmatpush1.msra.mxu0 0.0
    %2695 = vmatprep.subr.mxu0 0.0
    %2696 = vmatpush1.msra.mxu0 0.0
    %2697 = vmatprep.subr.mxu0 0.0
    %2698 = vmatpush1.msra.mxu0 0.0
    %2699 = vmatprep.subr.mxu0 0.0
    %2700 = vmatpush1.msra.mxu0 0.0
    %2701 = vmatprep.subr.mxu0 0.0
    %2702 = vmatpush1.msra.mxu0 0.0
    %2703 = vmatprep.subr.mxu0 0.0
    %2704 = vmatpush1.msra.mxu0 0.0
    %2705 = vmatprep.subr.mxu0 0.0
    %2706 = vmatpush1.msra.mxu0 0.0
    %2707 = vmatprep.subr.mxu0 0.0
    %2708 = vmatpush1.msra.mxu0 0.0
    %2709 = vmatprep.subr.mxu0 0.0
    %2710 = vmatpush1.msra.mxu0 0.0
    %2711 = vmatprep.subr.mxu0 0.0
    %2712 = vmatpush1.msra.mxu0 0.0
    %2713 = vmatprep.subr.mxu0 0.0
    %2714 = vmatpush1.msra.mxu0 0.0
    %2715 = vmatprep.subr.mxu0 0.0
    %2716 = vmatpush1.msra.mxu0 0.0
    %2717 = vmatprep.subr.mxu0 0.0
    %2718 = vmatpush1.msra.mxu0 0.0
    %2719 = vmatprep.subr.mxu0 0.0
    %2720 = vmatpush1.msra.mxu0 0.0
    %2721 = vmatprep.subr.mxu0 0.0
    %2722 = vmatpush1.msra.mxu0 0.0
    %2723 = vmatprep.subr.mxu0 0.0
    %2724 = vmatpush1.msra.mxu0 0.0
    %2725 = vmatprep.subr.mxu0 0.0
    %2726 = vmatpush1.msra.mxu0 0.0
    %2727 = vmatprep.subr.mxu0 0.0
    %2728 = vmatpush1.msra.mxu0 0.0
    %2729 = vmatprep.subr.mxu0 0.0
    %2730 = vmatpush1.msra.mxu0 0.0
    %2731 = vmatprep.subr.mxu0 0.0
    %2732 = vmatpush1.msra.mxu0 0.0
    %2733 = vmatprep.subr.mxu0 0.0
    %2734 = vmatpush1.msra.mxu0 0.0
    %2735 = vmatprep.subr.mxu0 0.0
    %2736 = vmatpush1.msra.mxu0 0.0
    %2737 = vmatprep.subr.mxu0 0.0
    %2738 = vmatpush1.msra.mxu0 0.0
    %2739 = vmatprep.subr.mxu0 0.0
    %2740 = vmatpush1.msra.mxu0 0.0
    %2741 = vmatprep.subr.mxu0 0.0
    %2742 = vmatpush1.msra.mxu0 0.0
    %2743 = vmatprep.mubr.f32.mxu0 0.0
    %2744 = vmatmul.mubr.f32.gmra.mrb[0].mxu0 %v2677
    %v2745 = vpop.f32.mrb[0].mxu0
    %v2746 = vadd.f32 %v456, %v2745
    %v2747 = vpop.f32.mrb[0].mxu0
    %v2748 = vadd.f32 %v460, %v2747
    %2749 = vdwg.mxu0
    %s2750 = scalar_lea.vmem [#allocation14], 40
    %2751 = vst [vmem:[%s2750] sm:$0xff] %v2746
    %s2752 = smul.u32 6, 3
    %s2753 = smul.addr %s2752, 8
    %s2754 = scalar_lea.vmem [#allocation2], %s2753
    %v2755 = vld [vmem:[%s2754] sm:$0xff]
    %v2756 = vld [vmem:[%s2754 + $0x8] sm:$0xff]
    %v2757 = vld [vmem:[%s2754 + $0x10] sm:$0xff]
    %2758 = vmatprep.subr.mxu0 0.0
    %2759 = vmatpush1.msra.mxu0 %v424
    %2760 = vmatprep.subr.mxu0 0.0
    %2761 = vmatpush1.msra.mxu0 %v425
    %2762 = vmatprep.subr.mxu0 0.0
    %2763 = vmatpush1.msra.mxu0 %v426
    %2764 = vmatprep.subr.mxu0 0.0
    %2765 = vmatpush1.msra.mxu0 %v427
    %2766 = vmatprep.subr.mxu0 0.0
    %2767 = vmatpush1.msra.mxu0 %v428
    %2768 = vmatprep.subr.mxu0 0.0
    %2769 = vmatpush1.msra.mxu0 0.0
    %2770 = vmatprep.subr.mxu0 0.0
    %2771 = vmatpush1.msra.mxu0 0.0
    %2772 = vmatprep.subr.mxu0 0.0
    %2773 = vmatpush1.msra.mxu0 0.0
    %2774 = vmatprep.subr.mxu0 0.0
    %2775 = vmatpush1.msra.mxu0 0.0
    %2776 = vmatprep.subr.mxu0 0.0
    %2777 = vmatpush1.msra.mxu0 0.0
    %2778 = vmatprep.subr.mxu0 0.0
    %2779 = vmatpush1.msra.mxu0 0.0
    %2780 = vmatprep.subr.mxu0 0.0
    %2781 = vmatpush1.msra.mxu0 0.0
    %2782 = vmatprep.subr.mxu0 0.0
    %2783 = vmatpush1.msra.mxu0 0.0
    %2784 = vmatprep.subr.mxu0 0.0
    %2785 = vmatpush1.msra.mxu0 0.0
    %2786 = vmatprep.subr.mxu0 0.0
    %2787 = vmatpush1.msra.mxu0 0.0
    %2788 = vmatprep.subr.mxu0 0.0
    %2789 = vmatpush1.msra.mxu0 0.0
    %2790 = vmatprep.subr.mxu0 0.0
    %2791 = vmatpush1.msra.mxu0 0.0
    %2792 = vmatprep.subr.mxu0 0.0
    %2793 = vmatpush1.msra.mxu0 0.0
    %2794 = vmatprep.subr.mxu0 0.0
    %2795 = vmatpush1.msra.mxu0 0.0
    %2796 = vmatprep.subr.mxu0 0.0
    %2797 = vmatpush1.msra.mxu0 0.0
    %2798 = vmatprep.subr.mxu0 0.0
    %2799 = vmatpush1.msra.mxu0 0.0
    %2800 = vmatprep.subr.mxu0 0.0
    %2801 = vmatpush1.msra.mxu0 0.0
    %2802 = vmatprep.subr.mxu0 0.0
    %2803 = vmatpush1.msra.mxu0 0.0
    %2804 = vmatprep.subr.mxu0 0.0
    %2805 = vmatpush1.msra.mxu0 0.0
    %2806 = vmatprep.subr.mxu0 0.0
    %2807 = vmatpush1.msra.mxu0 0.0
    %2808 = vmatprep.subr.mxu0 0.0
    %2809 = vmatpush1.msra.mxu0 0.0
    %2810 = vmatprep.subr.mxu0 0.0
    %2811 = vmatpush1.msra.mxu0 0.0
    %2812 = vmatprep.subr.mxu0 0.0
    %2813 = vmatpush1.msra.mxu0 0.0
    %2814 = vmatprep.subr.mxu0 0.0
    %2815 = vmatpush1.msra.mxu0 0.0
    %2816 = vmatprep.subr.mxu0 0.0
    %2817 = vmatpush1.msra.mxu0 0.0
    %2818 = vmatprep.subr.mxu0 0.0
    %2819 = vmatpush1.msra.mxu0 0.0
    %2820 = vmatprep.subr.mxu0 0.0
    %2821 = vmatpush1.msra.mxu0 0.0
    %2822 = vmatprep.mubr.f32.mxu0 0.0
    %2823 = vmatmul.mubr.f32.gmra.mrb[0].mxu0 %v2523
    %v2824 = vpop.f32.mrb[0].mxu0
    %v2825 = vadd.f32 0.0, %v2824
    %v2826 = vpop.f32.mrb[0].mxu0
    %2827 = vdwg.mxu0
    %2828 = vmatprep.subr.mxu0 0.0
    %2829 = vmatpush1.msra.mxu0 %v429
    %2830 = vmatprep.subr.mxu0 0.0
    %2831 = vmatpush1.msra.mxu0 %v430
    %2832 = vmatprep.subr.mxu0 0.0
    %2833 = vmatpush1.msra.mxu0 %v431
    %2834 = vmatprep.subr.mxu0 0.0
    %2835 = vmatpush1.msra.mxu0 %v432
    %2836 = vmatprep.subr.mxu0 0.0
    %2837 = vmatpush1.msra.mxu0 %v433
    %2838 = vmatprep.subr.mxu0 0.0
    %2839 = vmatpush1.msra.mxu0 0.0
    %2840 = vmatprep.subr.mxu0 0.0
    %2841 = vmatpush1.msra.mxu0 0.0
    %2842 = vmatprep.subr.mxu0 0.0
    %2843 = vmatpush1.msra.mxu0 0.0
    %2844 = vmatprep.subr.mxu0 0.0
    %2845 = vmatpush1.msra.mxu0 0.0
    %2846 = vmatprep.subr.mxu0 0.0
    %2847 = vmatpush1.msra.mxu0 0.0
    %2848 = vmatprep.subr.mxu0 0.0
    %2849 = vmatpush1.msra.mxu0 0.0
    %2850 = vmatprep.subr.mxu0 0.0
    %2851 = vmatpush1.msra.mxu0 0.0
    %2852 = vmatprep.subr.mxu0 0.0
    %2853 = vmatpush1.msra.mxu0 0.0
    %2854 = vmatprep.subr.mxu0 0.0
    %2855 = vmatpush1.msra.mxu0 0.0
    %2856 = vmatprep.subr.mxu0 0.0
    %2857 = vmatpush1.msra.mxu0 0.0
    %2858 = vmatprep.subr.mxu0 0.0
    %2859 = vmatpush1.msra.mxu0 0.0
    %2860 = vmatprep.subr.mxu0 0.0
    %2861 = vmatpush1.msra.mxu0 0.0
    %2862 = vmatprep.subr.mxu0 0.0
    %2863 = vmatpush1.msra.mxu0 0.0
    %2864 = vmatprep.subr.mxu0 0.0
    %2865 = vmatpush1.msra.mxu0 0.0
    %2866 = vmatprep.subr.mxu0 0.0
    %2867 = vmatpush1.msra.mxu0 0.0
    %2868 = vmatprep.subr.mxu0 0.0
    %2869 = vmatpush1.msra.mxu0 0.0
    %2870 = vmatprep.subr.mxu0 0.0
    %2871 = vmatpush1.msra.mxu0 0.0
    %2872 = vmatprep.subr.mxu0 0.0
    %2873 = vmatpush1.msra.mxu0 0.0
    %2874 = vmatprep.subr.mxu0 0.0
    %2875 = vmatpush1.msra.mxu0 0.0
    %2876 = vmatprep.subr.mxu0 0.0
    %2877 = vmatpush1.msra.mxu0 0.0
    %2878 = vmatprep.subr.mxu0 0.0
    %2879 = vmatpush1.msra.mxu0 0.0
    %2880 = vmatprep.subr.mxu0 0.0
    %2881 = vmatpush1.msra.mxu0 0.0
    %2882 = vmatprep.subr.mxu0 0.0
    %2883 = vmatpush1.msra.mxu0 0.0
    %2884 = vmatprep.subr.mxu0 0.0
    %2885 = vmatpush1.msra.mxu0 0.0
    %2886 = vmatprep.subr.mxu0 0.0
    %2887 = vmatpush1.msra.mxu0 0.0
    %2888 = vmatprep.subr.mxu0 0.0
    %2889 = vmatpush1.msra.mxu0 0.0
    %2890 = vmatprep.subr.mxu0 0.0
    %2891 = vmatpush1.msra.mxu0 0.0
    %2892 = vmatprep.mubr.f32.mxu0 0.0
    %2893 = vmatmul.mubr.f32.gmra.mrb[0].mxu0 %v2677
    %v2894 = vpop.f32.mrb[0].mxu0
    %v2895 = vadd.f32 0.0, %v2894
    %v2896 = vpop.f32.mrb[0].mxu0
    %2897 = vdwg.mxu0
    %v2898 = vadd.f32 %v2755, %v2670
    %v2899 = vadd.f32 %v2898, %v2825
    %v2900 = vmax.f32 %v2899, 0.0
    %v2901 = vtanh.pop %v2900
    %v2903 = vsel %vm471, %v2901, 0
    %2905 = vmatprep.subr.mxu0 0.0
    %2906 = vmatpush1.msra.mxu0 %v434
    %2907 = vmatprep.subr.mxu0 0.0
    %2908 = vmatpush1.msra.mxu0 %v435
    %2909 = vmatprep.subr.mxu0 0.0
    %2910 = vmatpush1.msra.mxu0 %v436
    %2911 = vmatprep.subr.mxu0 0.0
    %2912 = vmatpush1.msra.mxu0 %v437
    %2913 = vmatprep.subr.mxu0 0.0
    %2914 = vmatpush1.msra.mxu0 %v438
    %2915 = vmatprep.subr.mxu0 0.0
    %2916 = vmatpush1.msra.mxu0 0.0
    %2917 = vmatprep.subr.mxu0 0.0
    %2918 = vmatpush1.msra.mxu0 0.0
    %2919 = vmatprep.subr.mxu0 0.0
    %2920 = vmatpush1.msra.mxu0 0.0
    %2921 = vmatprep.subr.mxu0 0.0
    %2922 = vmatpush1.msra.mxu0 0.0
    %2923 = vmatprep.subr.mxu0 0.0
    %2924 = vmatpush1.msra.mxu0 0.0
    %2925 = vmatprep.subr.mxu0 0.0
    %2926 = vmatpush1.msra.mxu0 0.0
    %2927 = vmatprep.subr.mxu0 0.0
    %2928 = vmatpush1.msra.mxu0 0.0
    %2929 = vmatprep.subr.mxu0 0.0
    %2930 = vmatpush1.msra.mxu0 0.0
    %2931 = vmatprep.subr.mxu0 0.0
    %2932 = vmatpush1.msra.mxu0 0.0
    %2933 = vmatprep.subr.mxu0 0.0
    %2934 = vmatpush1.msra.mxu0 0.0
    %2935 = vmatprep.subr.mxu0 0.0
    %2936 = vmatpush1.msra.mxu0 0.0
    %2937 = vmatprep.subr.mxu0 0.0
    %2938 = vmatpush1.msra.mxu0 0.0
    %2939 = vmatprep.subr.mxu0 0.0
    %2940 = vmatpush1.msra.mxu0 0.0
    %2941 = vmatprep.subr.mxu0 0.0
    %2942 = vmatpush1.msra.mxu0 0.0
    %2943 = vmatprep.subr.mxu0 0.0
    %2944 = vmatpush1.msra.mxu0 0.0
    %2945 = vmatprep.subr.mxu0 0.0
    %2946 = vmatpush1.msra.mxu0 0.0
    %2947 = vmatprep.subr.mxu0 0.0
    %2948 = vmatpush1.msra.mxu0 0.0
    %2949 = vmatprep.subr.mxu0 0.0
    %2950 = vmatpush1.msra.mxu0 0.0
    %2951 = vmatprep.subr.mxu0 0.0
    %2952 = vmatpush1.msra.mxu0 0.0
    %2953 = vmatprep.subr.mxu0 0.0
    %2954 = vmatpush1.msra.mxu0 0.0
    %2955 = vmatprep.subr.mxu0 0.0
    %2956 = vmatpush1.msra.mxu0 0.0
    %2957 = vmatprep.subr.mxu0 0.0
    %2958 = vmatpush1.msra.mxu0 0.0
    %2959 = vmatprep.subr.mxu0 0.0
    %2960 = vmatpush1.msra.mxu0 0.0
    %2961 = vmatprep.subr.mxu0 0.0
    %2962 = vmatpush1.msra.mxu0 0.0
    %2963 = vmatprep.subr.mxu0 0.0
    %2964 = vmatpush1.msra.mxu0 0.0
    %2965 = vmatprep.subr.mxu0 0.0
    %2966 = vmatpush1.msra.mxu0 0.0
    %2967 = vmatprep.subr.mxu0 0.0
    %2968 = vmatpush1.msra.mxu0 0.0
    %2969 = vmatprep.mubr.f32.mxu0 0.0
    %2970 = vmatmul.mubr.f32.gmra.mrb[0].mxu0 %v2903
    %v2971 = vpop.f32.mrb[0].mxu0
    %v2972 = vadd.f32 %v2756, %v2971
    %v2973 = vpop.f32.mrb[0].mxu0
    %2974 = vdwg.mxu0
    %v2975 = vadd.f32 %v2972, %v2748
    %v2976 = vmax.f32 %v2975, 0.0
    %v2977 = vtanh.pop %v2976
    %v2979 = vsel %vm698, %v2977, 0
    %2981 = vmatprep.subr.mxu0 %v440
    %2982 = vmatpush1.msra.mxu0 %v439
    %2983 = vmatprep.subr.mxu0 0.0
    %2984 = vmatpush1.msra.mxu0 0.0
    %2985 = vmatprep.subr.mxu0 0.0
    %2986 = vmatpush1.msra.mxu0 0.0
    %2987 = vmatprep.subr.mxu0 0.0
    %2988 = vmatpush1.msra.mxu0 0.0
    %2989 = vmatprep.subr.mxu0 0.0
    %2990 = vmatpush1.msra.mxu0 0.0
    %2991 = vmatprep.subr.mxu0 0.0
    %2992 = vmatpush1.msra.mxu0 0.0
    %2993 = vmatprep.subr.mxu0 0.0
    %2994 = vmatpush1.msra.mxu0 0.0
    %2995 = vmatprep.subr.mxu0 0.0
    %2996 = vmatpush1.msra.mxu0 0.0
    %2997 = vmatprep.subr.mxu0 0.0
    %2998 = vmatpush1.msra.mxu0 0.0
    %2999 = vmatprep.subr.mxu0 0.0
    %3000 = vmatpush1.msra.mxu0 0.0
    %3001 = vmatprep.subr.mxu0 0.0
    %3002 = vmatpush1.msra.mxu0 0.0
    %3003 = vmatprep.subr.mxu0 0.0
    %3004 = vmatpush1.msra.mxu0 0.0
    %3005 = vmatprep.subr.mxu0 0.0
    %3006 = vmatpush1.msra.mxu0 0.0
    %3007 = vmatprep.subr.mxu0 0.0
    %3008 = vmatpush1.msra.mxu0 0.0
    %3009 = vmatprep.subr.mxu0 0.0
    %3010 = vmatpush1.msra.mxu0 0.0
    %3011 = vmatprep.subr.mxu0 0.0
    %3012 = vmatpush1.msra.mxu0 0.0
    %3013 = vmatprep.subr.mxu0 0.0
    %3014 = vmatpush1.msra.mxu0 0.0
    %3015 = vmatprep.subr.mxu0 0.0
    %3016 = vmatpush1.msra.mxu0 0.0
    %3017 = vmatprep.subr.mxu0 0.0
    %3018 = vmatpush1.msra.mxu0 0.0
    %3019 = vmatprep.subr.mxu0 0.0
    %3020 = vmatpush1.msra.mxu0 0.0
    %3021 = vmatprep.subr.mxu0 0.0
    %3022 = vmatpush1.msra.mxu0 0.0
    %3023 = vmatprep.subr.mxu0 0.0
    %3024 = vmatpush1.msra.mxu0 0.0
    %3025 = vmatprep.subr.mxu0 0.0
    %3026 = vmatpush1.msra.mxu0 0.0
    %3027 = vmatprep.subr.mxu0 0.0
    %3028 = vmatpush1.msra.mxu0 0.0
    %3029 = vmatprep.subr.mxu0 0.0
    %3030 = vmatpush1.msra.mxu0 0.0
    %3031 = vmatprep.subr.mxu0 0.0
    %3032 = vmatpush1.msra.mxu0 0.0
    %3033 = vmatprep.subr.mxu0 0.0
    %3034 = vmatpush1.msra.mxu0 0.0
    %3035 = vmatprep.subr.mxu0 0.0
    %3036 = vmatpush1.msra.mxu0 0.0
    %3037 = vmatprep.subr.mxu0 0.0
    %3038 = vmatpush1.msra.mxu0 0.0
    %3039 = vmatprep.subr.mxu0 0.0
    %3040 = vmatpush1.msra.mxu0 0.0
    %3041 = vmatprep.subr.mxu0 0.0
    %3042 = vmatpush1.msra.mxu0 0.0
    %3043 = vmatprep.subr.mxu0 0.0
    %3044 = vmatpush1.msra.mxu0 0.0
    %3045 = vmatprep.mubr.f32.mxu0 0.0
    %3046 = vmatmul.mubr.f32.gmra.mrb[0].mxu0 %v2979
    %v3047 = vpop.f32.mrb[0].mxu0
    %v3048 = vadd.f32 0.0, %v3047
    %v3049 = vpop.f32.mrb[0].mxu0
    %v3050 = vadd.f32 0.0, %v3049
    %3051 = vdwg.mxu0
    %v3052 = vadd.f32 %v3048, %v2757
    %v3053 = vadd.f32 %v3052, %v2895
    %v3054 = vmax.f32 %v3053, 0.0
    %v3055 = vtanh.pop %v3054
    %v3057 = vsel %vm471, %v3055, 0
    %3059 = vmatprep.subr.mxu0 %v442
    %3060 = vmatpush1.msra.mxu0 %v441
    %3061 = vmatprep.subr.mxu0 %v444
    %3062 = vmatpush1.msra.mxu0 %v443
    %3063 = vmatprep.subr.mxu0 %v446
    %3064 = vmatpush1.msra.mxu0 %v445
    %3065 = vmatprep.subr.mxu0 %v448
    %3066 = vmatpush1.msra.mxu0 %v447
    %3067 = vmatprep.subr.mxu0 %v450
    %3068 = vmatpush1.msra.mxu0 %v449
    %3069 = vmatprep.subr.mxu0 0.0
    %3070 = vmatpush1.msra.mxu0 0.0
    %3071 = vmatprep.subr.mxu0 0.0
    %3072 = vmatpush1.msra.mxu0 0.0
    %3073 = vmatprep.subr.mxu0 0.0
    %3074 = vmatpush1.msra.mxu0 0.0
    %3075 = vmatprep.subr.mxu0 0.0
    %3076 = vmatpush1.msra.mxu0 0.0
    %3077 = vmatprep.subr.mxu0 0.0
    %3078 = vmatpush1.msra.mxu0 0.0
    %3079 = vmatprep.subr.mxu0 0.0
    %3080 = vmatpush1.msra.mxu0 0.0
    %3081 = vmatprep.subr.mxu0 0.0
    %3082 = vmatpush1.msra.mxu0 0.0
    %3083 = vmatprep.subr.mxu0 0.0
    %3084 = vmatpush1.msra.mxu0 0.0
    %3085 = vmatprep.subr.mxu0 0.0
    %3086 = vmatpush1.msra.mxu0 0.0
    %3087 = vmatprep.subr.mxu0 0.0
    %3088 = vmatpush1.msra.mxu0 0.0
    %3089 = vmatprep.subr.mxu0 0.0
    %3090 = vmatpush1.msra.mxu0 0.0
    %3091 = vmatprep.subr.mxu0 0.0
    %3092 = vmatpush1.msra.mxu0 0.0
    %3093 = vmatprep.subr.mxu0 0.0
    %3094 = vmatpush1.msra.mxu0 0.0
    %3095 = vmatprep.subr.mxu0 0.0
    %3096 = vmatpush1.msra.mxu0 0.0
    %3097 = vmatprep.subr.mxu0 0.0
    %3098 = vmatpush1.msra.mxu0 0.0
    %3099 = vmatprep.subr.mxu0 0.0
    %3100 = vmatpush1.msra.mxu0 0.0
    %3101 = vmatprep.subr.mxu0 0.0
    %3102 = vmatpush1.msra.mxu0 0.0
    %3103 = vmatprep.subr.mxu0 0.0
    %3104 = vmatpush1.msra.mxu0 0.0
    %3105 = vmatprep.subr.mxu0 0.0
    %3106 = vmatpush1.msra.mxu0 0.0
    %3107 = vmatprep.subr.mxu0 0.0
    %3108 = vmatpush1.msra.mxu0 0.0
    %3109 = vmatprep.subr.mxu0 0.0
    %3110 = vmatpush1.msra.mxu0 0.0
    %3111 = vmatprep.subr.mxu0 0.0
    %3112 = vmatpush1.msra.mxu0 0.0
    %3113 = vmatprep.subr.mxu0 0.0
    %3114 = vmatpush1.msra.mxu0 0.0
    %3115 = vmatprep.subr.mxu0 0.0
    %3116 = vmatpush1.msra.mxu0 0.0
    %3117 = vmatprep.subr.mxu0 0.0
    %3118 = vmatpush1.msra.mxu0 0.0
    %3119 = vmatprep.subr.mxu0 0.0
    %3120 = vmatpush1.msra.mxu0 0.0
    %3121 = vmatprep.subr.mxu0 0.0
    %3122 = vmatpush1.msra.mxu0 0.0
    %3123 = vmatprep.mubr.f32.mxu0 0.0
    %3124 = vmatmul.mubr.f32.gmra.mrb[0].mxu0 %v3057
    %v3125 = vpop.f32.mrb[0].mxu0
    %v3126 = vadd.f32 %v456, %v3125
    %v3127 = vpop.f32.mrb[0].mxu0
    %v3128 = vadd.f32 %v460, %v3127
    %3129 = vdwg.mxu0
    %s3130 = scalar_lea.vmem [#allocation14], 48
    %3131 = vst [vmem:[%s3130] sm:$0xff] %v3126
    %s3132 = smul.u32 7, 3
    %s3133 = smul.addr %s3132, 8
    %s3134 = scalar_lea.vmem [#allocation2], %s3133
    %v3135 = vld [vmem:[%s3134] sm:$0xff]
    %v3136 = vld [vmem:[%s3134 + $0x8] sm:$0xff]
    %v3137 = vld [vmem:[%s3134 + $0x10] sm:$0xff]
    %3138 = vmatprep.subr.mxu0 0.0
    %3139 = vmatpush1.msra.mxu0 %v424
    %3140 = vmatprep.subr.mxu0 0.0
    %3141 = vmatpush1.msra.mxu0 %v425
    %3142 = vmatprep.subr.mxu0 0.0
    %3143 = vmatpush1.msra.mxu0 %v426
    %3144 = vmatprep.subr.mxu0 0.0
    %3145 = vmatpush1.msra.mxu0 %v427
    %3146 = vmatprep.subr.mxu0 0.0
    %3147 = vmatpush1.msra.mxu0 %v428
    %3148 = vmatprep.subr.mxu0 0.0
    %3149 = vmatpush1.msra.mxu0 0.0
    %3150 = vmatprep.subr.mxu0 0.0
    %3151 = vmatpush1.msra.mxu0 0.0
    %3152 = vmatprep.subr.mxu0 0.0
    %3153 = vmatpush1.msra.mxu0 0.0
    %3154 = vmatprep.subr.mxu0 0.0
    %3155 = vmatpush1.msra.mxu0 0.0
    %3156 = vmatprep.subr.mxu0 0.0
    %3157 = vmatpush1.msra.mxu0 0.0
    %3158 = vmatprep.subr.mxu0 0.0
    %3159 = vmatpush1.msra.mxu0 0.0
    %3160 = vmatprep.subr.mxu0 0.0
    %3161 = vmatpush1.msra.mxu0 0.0
    %3162 = vmatprep.subr.mxu0 0.0
    %3163 = vmatpush1.msra.mxu0 0.0
    %3164 = vmatprep.subr.mxu0 0.0
    %3165 = vmatpush1.msra.mxu0 0.0
    %3166 = vmatprep.subr.mxu0 0.0
    %3167 = vmatpush1.msra.mxu0 0.0
    %3168 = vmatprep.subr.mxu0 0.0
    %3169 = vmatpush1.msra.mxu0 0.0
    %3170 = vmatprep.subr.mxu0 0.0
    %3171 = vmatpush1.msra.mxu0 0.0
    %3172 = vmatprep.subr.mxu0 0.0
    %3173 = vmatpush1.msra.mxu0 0.0
    %3174 = vmatprep.subr.mxu0 0.0
    %3175 = vmatpush1.msra.mxu0 0.0
    %3176 = vmatprep.subr.mxu0 0.0
    %3177 = vmatpush1.msra.mxu0 0.0
    %3178 = vmatprep.subr.mxu0 0.0
    %3179 = vmatpush1.msra.mxu0 0.0
    %3180 = vmatprep.subr.mxu0 0.0
    %3181 = vmatpush1.msra.mxu0 0.0
    %3182 = vmatprep.subr.mxu0 0.0
    %3183 = vmatpush1.msra.mxu0 0.0
    %3184 = vmatprep.subr.mxu0 0.0
    %3185 = vmatpush1.msra.mxu0 0.0
    %3186 = vmatprep.subr.mxu0 0.0
    %3187 = vmatpush1.msra.mxu0 0.0
    %3188 = vmatprep.subr.mxu0 0.0
    %3189 = vmatpush1.msra.mxu0 0.0
    %3190 = vmatprep.subr.mxu0 0.0
    %3191 = vmatpush1.msra.mxu0 0.0
    %3192 = vmatprep.subr.mxu0 0.0
    %3193 = vmatpush1.msra.mxu0 0.0
    %3194 = vmatprep.subr.mxu0 0.0
    %3195 = vmatpush1.msra.mxu0 0.0
    %3196 = vmatprep.subr.mxu0 0.0
    %3197 = vmatpush1.msra.mxu0 0.0
    %3198 = vmatprep.subr.mxu0 0.0
    %3199 = vmatpush1.msra.mxu0 0.0
    %3200 = vmatprep.subr.mxu0 0.0
    %3201 = vmatpush1.msra.mxu0 0.0
    %3202 = vmatprep.mubr.f32.mxu0 0.0
    %3203 = vmatmul.mubr.f32.gmra.mrb[0].mxu0 %v2903
    %v3204 = vpop.f32.mrb[0].mxu0
    %v3205 = vadd.f32 0.0, %v3204
    %v3206 = vpop.f32.mrb[0].mxu0
    %3207 = vdwg.mxu0
    %3208 = vmatprep.subr.mxu0 0.0
    %3209 = vmatpush1.msra.mxu0 %v429
    %3210 = vmatprep.subr.mxu0 0.0
    %3211 = vmatpush1.msra.mxu0 %v430
    %3212 = vmatprep.subr.mxu0 0.0
    %3213 = vmatpush1.msra.mxu0 %v431
    %3214 = vmatprep.subr.mxu0 0.0
    %3215 = vmatpush1.msra.mxu0 %v432
    %3216 = vmatprep.subr.mxu0 0.0
    %3217 = vmatpush1.msra.mxu0 %v433
    %3218 = vmatprep.subr.mxu0 0.0
    %3219 = vmatpush1.msra.mxu0 0.0
    %3220 = vmatprep.subr.mxu0 0.0
    %3221 = vmatpush1.msra.mxu0 0.0
    %3222 = vmatprep.subr.mxu0 0.0
    %3223 = vmatpush1.msra.mxu0 0.0
    %3224 = vmatprep.subr.mxu0 0.0
    %3225 = vmatpush1.msra.mxu0 0.0
    %3226 = vmatprep.subr.mxu0 0.0
    %3227 = vmatpush1.msra.mxu0 0.0
    %3228 = vmatprep.subr.mxu0 0.0
    %3229 = vmatpush1.msra.mxu0 0.0
    %3230 = vmatprep.subr.mxu0 0.0
    %3231 = vmatpush1.msra.mxu0 0.0
    %3232 = vmatprep.subr.mxu0 0.0
    %3233 = vmatpush1.msra.mxu0 0.0
    %3234 = vmatprep.subr.mxu0 0.0
    %3235 = vmatpush1.msra.mxu0 0.0
    %3236 = vmatprep.subr.mxu0 0.0
    %3237 = vmatpush1.msra.mxu0 0.0
    %3238 = vmatprep.subr.mxu0 0.0
    %3239 = vmatpush1.msra.mxu0 0.0
    %3240 = vmatprep.subr.mxu0 0.0
    %3241 = vmatpush1.msra.mxu0 0.0
    %3242 = vmatprep.subr.mxu0 0.0
    %3243 = vmatpush1.msra.mxu0 0.0
    %3244 = vmatprep.subr.mxu0 0.0
    %3245 = vmatpush1.msra.mxu0 0.0
    %3246 = vmatprep.subr.mxu0 0.0
    %3247 = vmatpush1.msra.mxu0 0.0
    %3248 = vmatprep.subr.mxu0 0.0
    %3249 = vmatpush1.msra.mxu0 0.0
    %3250 = vmatprep.subr.mxu0 0.0
    %3251 = vmatpush1.msra.mxu0 0.0
    %3252 = vmatprep.subr.mxu0 0.0
    %3253 = vmatpush1.msra.mxu0 0.0
    %3254 = vmatprep.subr.mxu0 0.0
    %3255 = vmatpush1.msra.mxu0 0.0
    %3256 = vmatprep.subr.mxu0 0.0
    %3257 = vmatpush1.msra.mxu0 0.0
    %3258 = vmatprep.subr.mxu0 0.0
    %3259 = vmatpush1.msra.mxu0 0.0
    %3260 = vmatprep.subr.mxu0 0.0
    %3261 = vmatpush1.msra.mxu0 0.0
    %3262 = vmatprep.subr.mxu0 0.0
    %3263 = vmatpush1.msra.mxu0 0.0
    %3264 = vmatprep.subr.mxu0 0.0
    %3265 = vmatpush1.msra.mxu0 0.0
    %3266 = vmatprep.subr.mxu0 0.0
    %3267 = vmatpush1.msra.mxu0 0.0
    %3268 = vmatprep.subr.mxu0 0.0
    %3269 = vmatpush1.msra.mxu0 0.0
    %3270 = vmatprep.subr.mxu0 0.0
    %3271 = vmatpush1.msra.mxu0 0.0
    %3272 = vmatprep.mubr.f32.mxu0 0.0
    %3273 = vmatmul.mubr.f32.gmra.mrb[0].mxu0 %v3057
    %v3274 = vpop.f32.mrb[0].mxu0
    %v3275 = vadd.f32 0.0, %v3274
    %v3276 = vpop.f32.mrb[0].mxu0
    %3277 = vdwg.mxu0
    %v3278 = vadd.f32 %v3135, %v3050
    %v3279 = vadd.f32 %v3278, %v3205
    %v3280 = vmax.f32 %v3279, 0.0
    %v3281 = vtanh.pop %v3280
    %v3283 = vsel %vm471, %v3281, 0
    %3285 = vmatprep.subr.mxu0 0.0
    %3286 = vmatpush1.msra.mxu0 %v434
    %3287 = vmatprep.subr.mxu0 0.0
    %3288 = vmatpush1.msra.mxu0 %v435
    %3289 = vmatprep.subr.mxu0 0.0
    %3290 = vmatpush1.msra.mxu0 %v436
    %3291 = vmatprep.subr.mxu0 0.0
    %3292 = vmatpush1.msra.mxu0 %v437
    %3293 = vmatprep.subr.mxu0 0.0
    %3294 = vmatpush1.msra.mxu0 %v438
    %3295 = vmatprep.subr.mxu0 0.0
    %3296 = vmatpush1.msra.mxu0 0.0
    %3297 = vmatprep.subr.mxu0 0.0
    %3298 = vmatpush1.msra.mxu0 0.0
    %3299 = vmatprep.subr.mxu0 0.0
    %3300 = vmatpush1.msra.mxu0 0.0
    %3301 = vmatprep.subr.mxu0 0.0
    %3302 = vmatpush1.msra.mxu0 0.0
    %3303 = vmatprep.subr.mxu0 0.0
    %3304 = vmatpush1.msra.mxu0 0.0
    %3305 = vmatprep.subr.mxu0 0.0
    %3306 = vmatpush1.msra.mxu0 0.0
    %3307 = vmatprep.subr.mxu0 0.0
    %3308 = vmatpush1.msra.mxu0 0.0
    %3309 = vmatprep.subr.mxu0 0.0
    %3310 = vmatpush1.msra.mxu0 0.0
    %3311 = vmatprep.subr.mxu0 0.0
    %3312 = vmatpush1.msra.mxu0 0.0
    %3313 = vmatprep.subr.mxu0 0.0
    %3314 = vmatpush1.msra.mxu0 0.0
    %3315 = vmatprep.subr.mxu0 0.0
    %3316 = vmatpush1.msra.mxu0 0.0
    %3317 = vmatprep.subr.mxu0 0.0
    %3318 = vmatpush1.msra.mxu0 0.0
    %3319 = vmatprep.subr.mxu0 0.0
    %3320 = vmatpush1.msra.mxu0 0.0
    %3321 = vmatprep.subr.mxu0 0.0
    %3322 = vmatpush1.msra.mxu0 0.0
    %3323 = vmatprep.subr.mxu0 0.0
    %3324 = vmatpush1.msra.mxu0 0.0
    %3325 = vmatprep.subr.mxu0 0.0
    %3326 = vmatpush1.msra.mxu0 0.0
    %3327 = vmatprep.subr.mxu0 0.0
    %3328 = vmatpush1.msra.mxu0 0.0
    %3329 = vmatprep.subr.mxu0 0.0
    %3330 = vmatpush1.msra.mxu0 0.0
    %3331 = vmatprep.subr.mxu0 0.0
    %3332 = vmatpush1.msra.mxu0 0.0
    %3333 = vmatprep.subr.mxu0 0.0
    %3334 = vmatpush1.msra.mxu0 0.0
    %3335 = vmatprep.subr.mxu0 0.0
    %3336 = vmatpush1.msra.mxu0 0.0
    %3337 = vmatprep.subr.mxu0 0.0
    %3338 = vmatpush1.msra.mxu0 0.0
    %3339 = vmatprep.subr.mxu0 0.0
    %3340 = vmatpush1.msra.mxu0 0.0
    %3341 = vmatprep.subr.mxu0 0.0
    %3342 = vmatpush1.msra.mxu0 0.0
    %3343 = vmatprep.subr.mxu0 0.0
    %3344 = vmatpush1.msra.mxu0 0.0
    %3345 = vmatprep.subr.mxu0 0.0
    %3346 = vmatpush1.msra.mxu0 0.0
    %3347 = vmatprep.subr.mxu0 0.0
    %3348 = vmatpush1.msra.mxu0 0.0
    %3349 = vmatprep.mubr.f32.mxu0 0.0
    %3350 = vmatmul.mubr.f32.gmra.mrb[0].mxu0 %v3283
    %v3351 = vpop.f32.mrb[0].mxu0
    %v3352 = vadd.f32 %v3136, %v3351
    %v3353 = vpop.f32.mrb[0].mxu0
    %3354 = vdwg.mxu0
    %v3355 = vadd.f32 %v3352, %v3128
    %v3356 = vmax.f32 %v3355, 0.0
    %v3357 = vtanh.pop %v3356
    %v3359 = vsel %vm698, %v3357, 0
    %3361 = vmatprep.subr.mxu0 %v440
    %3362 = vmatpush1.msra.mxu0 %v439
    %3363 = vmatprep.subr.mxu0 0.0
    %3364 = vmatpush1.msra.mxu0 0.0
    %3365 = vmatprep.subr.mxu0 0.0
    %3366 = vmatpush1.msra.mxu0 0.0
    %3367 = vmatprep.subr.mxu0 0.0
    %3368 = vmatpush1.msra.mxu0 0.0
    %3369 = vmatprep.subr.mxu0 0.0
    %3370 = vmatpush1.msra.mxu0 0.0
    %3371 = vmatprep.subr.mxu0 0.0
    %3372 = vmatpush1.msra.mxu0 0.0
    %3373 = vmatprep.subr.mxu0 0.0
    %3374 = vmatpush1.msra.mxu0 0.0
    %3375 = vmatprep.subr.mxu0 0.0
    %3376 = vmatpush1.msra.mxu0 0.0
    %3377 = vmatprep.subr.mxu0 0.0
    %3378 = vmatpush1.msra.mxu0 0.0
    %3379 = vmatprep.subr.mxu0 0.0
    %3380 = vmatpush1.msra.mxu0 0.0
    %3381 = vmatprep.subr.mxu0 0.0
    %3382 = vmatpush1.msra.mxu0 0.0
    %3383 = vmatprep.subr.mxu0 0.0
    %3384 = vmatpush1.msra.mxu0 0.0
    %3385 = vmatprep.subr.mxu0 0.0
    %3386 = vmatpush1.msra.mxu0 0.0
    %3387 = vmatprep.subr.mxu0 0.0
    %3388 = vmatpush1.msra.mxu0 0.0
    %3389 = vmatprep.subr.mxu0 0.0
    %3390 = vmatpush1.msra.mxu0 0.0
    %3391 = vmatprep.subr.mxu0 0.0
    %3392 = vmatpush1.msra.mxu0 0.0
    %3393 = vmatprep.subr.mxu0 0.0
    %3394 = vmatpush1.msra.mxu0 0.0
    %3395 = vmatprep.subr.mxu0 0.0
    %3396 = vmatpush1.msra.mxu0 0.0
    %3397 = vmatprep.subr.mxu0 0.0
    %3398 = vmatpush1.msra.mxu0 0.0
    %3399 = vmatprep.subr.mxu0 0.0
    %3400 = vmatpush1.msra.mxu0 0.0
    %3401 = vmatprep.subr.mxu0 0.0
    %3402 = vmatpush1.msra.mxu0 0.0
    %3403 = vmatprep.subr.mxu0 0.0
    %3404 = vmatpush1.msra.mxu0 0.0
    %3405 = vmatprep.subr.mxu0 0.0
    %3406 = vmatpush1.msra.mxu0 0.0
    %3407 = vmatprep.subr.mxu0 0.0
    %3408 = vmatpush1.msra.mxu0 0.0
    %3409 = vmatprep.subr.mxu0 0.0
    %3410 = vmatpush1.msra.mxu0 0.0
    %3411 = vmatprep.subr.mxu0 0.0
    %3412 = vmatpush1.msra.mxu0 0.0
    %3413 = vmatprep.subr.mxu0 0.0
    %3414 = vmatpush1.msra.mxu0 0.0
    %3415 = vmatprep.subr.mxu0 0.0
    %3416 = vmatpush1.msra.mxu0 0.0
    %3417 = vmatprep.subr.mxu0 0.0
    %3418 = vmatpush1.msra.mxu0 0.0
    %3419 = vmatprep.subr.mxu0 0.0
    %3420 = vmatpush1.msra.mxu0 0.0
    %3421 = vmatprep.subr.mxu0 0.0
    %3422 = vmatpush1.msra.mxu0 0.0
    %3423 = vmatprep.subr.mxu0 0.0
    %3424 = vmatpush1.msra.mxu0 0.0
    %3425 = vmatprep.mubr.f32.mxu0 0.0
    %3426 = vmatmul.mubr.f32.gmra.mrb[0].mxu0 %v3359
    %v3427 = vpop.f32.mrb[0].mxu0
    %v3428 = vadd.f32 0.0, %v3427
    %v3429 = vpop.f32.mrb[0].mxu0
    %3430 = vdwg.mxu0
    %v3431 = vadd.f32 %v3428, %v3137
    %v3432 = vadd.f32 %v3431, %v3275
    %v3433 = vmax.f32 %v3432, 0.0
    %v3434 = vtanh.pop %v3433
    %v3436 = vsel %vm471, %v3434, 0
    %3438 = vmatprep.subr.mxu0 %v442
    %3439 = vmatpush1.msra.mxu0 %v441
    %3440 = vmatprep.subr.mxu0 %v444
    %3441 = vmatpush1.msra.mxu0 %v443
    %3442 = vmatprep.subr.mxu0 %v446
    %3443 = vmatpush1.msra.mxu0 %v445
    %3444 = vmatprep.subr.mxu0 %v448
    %3445 = vmatpush1.msra.mxu0 %v447
    %3446 = vmatprep.subr.mxu0 %v450
    %3447 = vmatpush1.msra.mxu0 %v449
    %3448 = vmatprep.subr.mxu0 0.0
    %3449 = vmatpush1.msra.mxu0 0.0
    %3450 = vmatprep.subr.mxu0 0.0
    %3451 = vmatpush1.msra.mxu0 0.0
    %3452 = vmatprep.subr.mxu0 0.0
    %3453 = vmatpush1.msra.mxu0 0.0
    %3454 = vmatprep.subr.mxu0 0.0
    %3455 = vmatpush1.msra.mxu0 0.0
    %3456 = vmatprep.subr.mxu0 0.0
    %3457 = vmatpush1.msra.mxu0 0.0
    %3458 = vmatprep.subr.mxu0 0.0
    %3459 = vmatpush1.msra.mxu0 0.0
    %3460 = vmatprep.subr.mxu0 0.0
    %3461 = vmatpush1.msra.mxu0 0.0
    %3462 = vmatprep.subr.mxu0 0.0
    %3463 = vmatpush1.msra.mxu0 0.0
    %3464 = vmatprep.subr.mxu0 0.0
    %3465 = vmatpush1.msra.mxu0 0.0
    %3466 = vmatprep.subr.mxu0 0.0
    %3467 = vmatpush1.msra.mxu0 0.0
    %3468 = vmatprep.subr.mxu0 0.0
    %3469 = vmatpush1.msra.mxu0 0.0
    %3470 = vmatprep.subr.mxu0 0.0
    %3471 = vmatpush1.msra.mxu0 0.0
    %3472 = vmatprep.subr.mxu0 0.0
    %3473 = vmatpush1.msra.mxu0 0.0
    %3474 = vmatprep.subr.mxu0 0.0
    %3475 = vmatpush1.msra.mxu0 0.0
    %3476 = vmatprep.subr.mxu0 0.0
    %3477 = vmatpush1.msra.mxu0 0.0
    %3478 = vmatprep.subr.mxu0 0.0
    %3479 = vmatpush1.msra.mxu0 0.0
    %3480 = vmatprep.subr.mxu0 0.0
    %3481 = vmatpush1.msra.mxu0 0.0
    %3482 = vmatprep.subr.mxu0 0.0
    %3483 = vmatpush1.msra.mxu0 0.0
    %3484 = vmatprep.subr.mxu0 0.0
    %3485 = vmatpush1.msra.mxu0 0.0
    %3486 = vmatprep.subr.mxu0 0.0
    %3487 = vmatpush1.msra.mxu0 0.0
    %3488 = vmatprep.subr.mxu0 0.0
    %3489 = vmatpush1.msra.mxu0 0.0
    %3490 = vmatprep.subr.mxu0 0.0
    %3491 = vmatpush1.msra.mxu0 0.0
    %3492 = vmatprep.subr.mxu0 0.0
    %3493 = vmatpush1.msra.mxu0 0.0
    %3494 = vmatprep.subr.mxu0 0.0
    %3495 = vmatpush1.msra.mxu0 0.0
    %3496 = vmatprep.subr.mxu0 0.0
    %3497 = vmatpush1.msra.mxu0 0.0
    %3498 = vmatprep.subr.mxu0 0.0
    %3499 = vmatpush1.msra.mxu0 0.0
    %3500 = vmatprep.subr.mxu0 0.0
    %3501 = vmatpush1.msra.mxu0 0.0
    %3502 = vmatprep.mubr.f32.mxu0 0.0
    %3503 = vmatmul.mubr.f32.gmra.mrb[0].mxu0 %v3436
    %v3504 = vpop.f32.mrb[0].mxu0
    %v3505 = vadd.f32 %v456, %v3504
    %v3506 = vpop.f32.mrb[0].mxu0
    %3507 = vdwg.mxu0
    %s3508 = scalar_lea.vmem [#allocation14], 56
    %3509 = vst [vmem:[%s3508] sm:$0xff] %v3505
    // Predicated region
    $region70: #{tpu_custom_call.1} parent=1 // pred_check
      _
    $region71: #{tpu_custom_call.1} parent=1 // pred_check_branch
      %3511 = sbr.rel (0) target = $region73
    $region72: #{tpu_custom_call.1} parent=1 // pred_region
      %s3513 = ssub.s32 1024, 1024
      %3514 = vsyncadd [#allocation5], %s3513
      %s3515 = sshll.u32 [#allocation14], 4
      %s3516 = int_to_ptr.vmem [resolvable:$true] %s3515
      %3521 = dma.vmem_to_hbm [thread:$0]  %s3516, 1024, %s11, [#allocation5], 128, 128, 8
    $region73: #{tpu_custom_call.1} parent=1 // pred_fallthru
      _
    // Predicated region
    $region74: #{tpu_custom_call.1} parent=1 // pred_check
      _
    $region75: #{tpu_custom_call.1} parent=1 // pred_check_branch
      %3523 = sbr.rel (0) target = $region77
    $region76: #{tpu_custom_call.1} parent=1 // pred_region
      %3524 = dma.done [#allocation5], 1024
    $region77: #{tpu_custom_call.1} parent=1 // pred_fallthru
      _
    %3525 = vsyncpa [#allocation4], 1
    %3526 = vsyncpa [#allocation7], 1
    %3527 = vsyncpa [#allocation10], 1
    %3528 = vsyncpa [#allocation13], 1
    %3529 = vsyncpa [#allocation5], 1

</llo_original>
